<compile_context>
chip_gen: v7x
topology: tpu7x:2x2x1
jax: 0.10.0
libtpu: 0.0.40
codegen_flags: <defaults>
</compile_context>

<pallas_src>
import jax
import jax.numpy as jnp
from jax import lax
from jax.experimental import pallas as pl
from jax.experimental.pallas import tpu as pltpu


_MATMUL_DTYPE = jnp.bfloat16      # MXU-native on all generations
_ROW_TILE = 512                   # row tile for projection / head kernels
_T_CHUNK_MAX = 16                 # max timesteps per recurrence grid step
_NEG_BIG = -1e30                  # softmax mask value for padded output lanes


def _round_up(x, m):
    return ((x + m - 1) // m) * m


def _tpu_vmem_limit_bytes():
    """Scoped-VMEM limit derived from the chip (64 MiB/core on v7x, 128 MiB on
    v5e/v6e), with headroom.  Falls back conservatively if the query fails."""
    try:
        cap = int(pltpu.get_tpu_info().vmem_capacity_bytes)
    except Exception:
        cap = 64 * 1024 * 1024
    return min(int(cap * 0.70), 100 * 1024 * 1024)


def _num_tensorcores():
    """Best-effort TensorCore count (2 on v7x).  Defaults to 1 so single-TC
    chips (v5e/v6e) never pay for a split batch grid axis."""
    try:
        info = pltpu.get_tpu_info()
        for attr in ("num_cores", "core_count", "tensorcores_per_chip",
                     "num_tensor_cores"):
            v = getattr(info, attr, None)
            if isinstance(v, int) and v > 0:
                return v
    except Exception:
        pass
    return 1


# --------------------------------------------------------------------------
# Kernel 1: input projection gi = x @ W_ih^T (+ folded biases), all timesteps
# --------------------------------------------------------------------------
def _proj_kernel(x_ref, w_ref, br_ref, bz_ref, bn_ref, gr_ref, gz_ref, gn_ref):
    Hp = gr_ref.shape[-1]
    gi = jnp.dot(x_ref[...], w_ref[...], preferred_element_type=jnp.float32)
    # Hp is a multiple of 128, so these slices are lane-aligned.
    gr_ref[...] = gi[:, 0 * Hp:1 * Hp] + br_ref[...]
    gz_ref[...] = gi[:, 1 * Hp:2 * Hp] + bz_ref[...]
    gn_ref[...] = gi[:, 2 * Hp:3 * Hp] + bn_ref[...]


def input_projection(x_flat, wih_t, bias_r, bias_z, bias_n, vmem_limit,
                     row_tile=_ROW_TILE):
    """x_flat: (N, in) bf16. Returns gi_r, gi_z, gi_n each (N, Hp) float32."""
    N, in_feat = x_flat.shape
    Hp = bias_r.shape[-1]
    tile = min(row_tile, _round_up(N, 8))
    Np = _round_up(N, tile)
    if Np != N:
        x_flat = jnp.pad(x_flat, ((0, Np - N), (0, 0)))
    gr, gz, gn = pl.pallas_call(
        _proj_kernel,
        out_shape=(jax.ShapeDtypeStruct((Np, Hp), jnp.float32),
                   jax.ShapeDtypeStruct((Np, Hp), jnp.float32),
                   jax.ShapeDtypeStruct((Np, Hp), jnp.float32)),
        grid=(Np // tile,),
        in_specs=[
            pl.BlockSpec((tile, in_feat), lambda i: (i, 0)),   # x rows (pipelined)
            pl.BlockSpec((in_feat, 3 * Hp), lambda i: (0, 0)),  # W_ih^T (resident)
            pl.BlockSpec((1, Hp), lambda i: (0, 0)),           # b_ir + b_hr
            pl.BlockSpec((1, Hp), lambda i: (0, 0)),           # b_iz + b_hz
            pl.BlockSpec((1, Hp), lambda i: (0, 0)),           # b_in
        ],
        out_specs=(pl.BlockSpec((tile, Hp), lambda i: (i, 0)),
                   pl.BlockSpec((tile, Hp), lambda i: (i, 0)),
                   pl.BlockSpec((tile, Hp), lambda i: (i, 0))),
        compiler_params=pltpu.CompilerParams(
            dimension_semantics=("parallel",),
            vmem_limit_bytes=vmem_limit),
    )(x_flat, wih_t, bias_r, bias_z, bias_n)
    return gr[:N], gz[:N], gn[:N]


# --------------------------------------------------------------------------
# Kernel 2: GRU recurrence (chunk of timesteps per grid step, fused W_hh)
# --------------------------------------------------------------------------
def _gru_rec_kernel(gr_ref, gz_ref, gn_ref, h0_ref, whh_ref, bhn_ref,
                    out_ref, h_scratch):
    tc = pl.program_id(1)
    b_block, Hp = h0_ref.shape

    @pl.when(tc == 0)
    def _():
        h_scratch[...] = h0_ref[...]

    # Hoist the (1, Hp) -> (b_block, Hp) broadcast out of the unrolled loop
    # (JAX does not CSE broadcast_in_dim).
    bhn_b = jnp.broadcast_to(bhn_ref[...], (b_block, Hp))
    t_chunk = gr_ref.shape[0]

    def step(t, h):
        hb = h.astype(_MATMUL_DTYPE)
        # Single fused (b, Hp) x (Hp, 3Hp) matmul; dot reads straight from the
        # weight ref (no whole-array hoist -> no vreg spill for large H).
        gh = jnp.dot(hb, whh_ref[...], preferred_element_type=jnp.float32)
        gh_r = gh[:, 0 * Hp:1 * Hp]
        gh_z = gh[:, 1 * Hp:2 * Hp]
        gh_n = gh[:, 2 * Hp:3 * Hp]
        # PyTorch gate order / semantics: r, z, n
        r = jax.nn.sigmoid(gr_ref[t] + gh_r)          # b_ir + b_hr folded in gi
        z = jax.nn.sigmoid(gz_ref[t] + gh_z)          # b_iz + b_hz folded in gi
        n = jnp.tanh(gn_ref[t] + r * (gh_n + bhn_b))  # b_in folded; b_hn separate
        h_new = (1.0 - z) * n + z * h
        out_ref[t] = h_new
        return h_new

    h_final = lax.fori_loop(0, t_chunk, step, h_scratch[...], unroll=True)
    h_scratch[...] = h_final


def gru_layer(gr, gz, gn, h0, whh_all, bhn, t_chunk, b_block, vmem_limit):
    """gr/gz/gn: (Tp, Bp, Hp) precomputed input-gate activations.
    Returns out (Tp, Bp, Hp) float32 (hidden state at every timestep)."""
    Tp, Bp, Hp = gr.shape
    nt = Tp // t_chunk
    nb = Bp // b_block
    gate_spec = pl.BlockSpec((t_chunk, b_block, Hp), lambda b, t: (t, b, 0))
    out = pl.pallas_call(
        _gru_rec_kernel,
        out_shape=jax.ShapeDtypeStruct((Tp, Bp, Hp), jnp.float32),
        grid=(nb, nt),
        in_specs=[
            gate_spec, gate_spec, gate_spec,
            pl.BlockSpec((b_block, Hp), lambda b, t: (b, 0)),     # h0
            pl.BlockSpec((Hp, 3 * Hp), lambda b, t: (0, 0)),      # W_hh^T fused (resident)
            pl.BlockSpec((1, Hp), lambda b, t: (0, 0)),           # b_hn
        ],
        out_specs=pl.BlockSpec((t_chunk, b_block, Hp), lambda b, t: (t, b, 0)),
        scratch_shapes=[pltpu.VMEM((b_block, Hp), jnp.float32)],
        compiler_params=pltpu.CompilerParams(
            # Time axis MUST stay "arbitrary": h carries across it in scratch.
            dimension_semantics=("parallel", "arbitrary"),
            vmem_limit_bytes=vmem_limit),
    )(gr, gz, gn, h0, whh_all, bhn)
    return out


# --------------------------------------------------------------------------
# Kernel 3: head — Linear -> softmax -> Linear -> ReLU -> (.,1) proj -> sigmoid
# Output lanes are padded to 128 so every store is a full unmasked vst.
# --------------------------------------------------------------------------
def _head_kernel(h_ref, wr_ref, br_ref, w1_ref, b1_ref, w2_ref, b2_ref,
                 values_ref, evid_ref, conf_ref):
    h = h_ref[...].astype(_MATMUL_DTYPE)
    # Padded output columns carry a -1e30 bias -> exp()==0 below, so the
    # softmax is exactly over the real O columns.
    values = jnp.dot(h, wr_ref[...],
                     preferred_element_type=jnp.float32) + br_ref[...]
    values_ref[...] = values

    m = jnp.max(values, axis=-1, keepdims=True)
    e = jnp.exp(values - m)
    evid = e / jnp.sum(e, axis=-1, keepdims=True)
    evid_ref[...] = evid

    t1 = jnp.dot(evid.astype(_MATMUL_DTYPE), w1_ref[...],
                 preferred_element_type=jnp.float32) + b1_ref[...]
    t1 = jnp.maximum(t1, 0.0)
    # Final (O -> 1) projection on the VPU/XLU (multiply + lane reduce).
    logit = jnp.sum(t1 * w2_ref[...], axis=-1, keepdims=True) + b2_ref[...]
    conf = jax.nn.sigmoid(logit)
    # Lane-dense store: broadcast across the 128-lane slab; wrapper takes lane 0.
    conf_ref[...] = jnp.broadcast_to(conf, conf_ref.shape)


def head(h_flat, wr_t, br, w1_t, b1, w2_row, b2, vmem_limit, row_tile=_ROW_TILE):
    N, Hp = h_flat.shape
    Op = br.shape[-1]
    tile = min(row_tile, _round_up(N, 8))
    Np = _round_up(N, tile)
    if Np != N:
        h_flat = jnp.pad(h_flat, ((0, Np - N), (0, 0)))
    values, evid, conf = pl.pallas_call(
        _head_kernel,
        out_shape=(jax.ShapeDtypeStruct((Np, Op), jnp.float32),
                   jax.ShapeDtypeStruct((Np, Op), jnp.float32),
                   jax.ShapeDtypeStruct((Np, 128), jnp.float32)),
        grid=(Np // tile,),
        in_specs=[
            pl.BlockSpec((tile, Hp), lambda i: (i, 0)),   # GRU output rows
            pl.BlockSpec((Hp, Op), lambda i: (0, 0)),     # W_resp^T (resident)
            pl.BlockSpec((1, Op), lambda i: (0, 0)),
            pl.BlockSpec((Op, Op), lambda i: (0, 0)),     # W_conf1^T
            pl.BlockSpec((1, Op), lambda i: (0, 0)),
            pl.BlockSpec((1, Op), lambda i: (0, 0)),      # W_conf2 (row vector)
            pl.BlockSpec((1, 1), lambda i: (0, 0)),
        ],
        out_specs=(pl.BlockSpec((tile, Op), lambda i: (i, 0)),
                   pl.BlockSpec((tile, Op), lambda i: (i, 0)),
                   pl.BlockSpec((tile, 128), lambda i: (i, 0))),
        compiler_params=pltpu.CompilerParams(
            dimension_semantics=("parallel",),
            vmem_limit_bytes=vmem_limit),
    )(h_flat, wr_t, br, w1_t, b1, w2_row, b2)
    return values[:N], evid[:N], conf[:N]


# --------------------------------------------------------------------------
# Parameter init (deterministic, PyTorch-style uniform fan-in scaling)
# --------------------------------------------------------------------------
def init_params(key, input_size, hidden_size, output_size, n_layers=1):
    keys = jax.random.split(key, 4 * n_layers + 6)
    idx = 0
    kg = 1.0 / float(hidden_size) ** 0.5
    gru = []
    for layer in range(n_layers):
        in_sz = input_size if layer == 0 else hidden_size
        wih = jax.random.uniform(keys[idx], (3 * hidden_size, in_sz),
                                 jnp.float32, -kg, kg); idx += 1
        whh = jax.random.uniform(keys[idx], (3 * hidden_size, hidden_size),
                                 jnp.float32, -kg, kg); idx += 1
        bih = jax.random.uniform(keys[idx], (3 * hidden_size,),
                                 jnp.float32, -kg, kg); idx += 1
        bhh = jax.random.uniform(keys[idx], (3 * hidden_size,),
                                 jnp.float32, -kg, kg); idx += 1
        gru.append(dict(wih=wih, whh=whh, bih=bih, bhh=bhh))

    kr = 1.0 / float(hidden_size) ** 0.5
    w_resp = jax.random.uniform(keys[idx], (output_size, hidden_size),
                                jnp.float32, -kr, kr); idx += 1
    b_resp = jax.random.uniform(keys[idx], (output_size,),
                                jnp.float32, -kr, kr); idx += 1
    kc = 1.0 / float(output_size) ** 0.5
    w_conf1 = jax.random.uniform(keys[idx], (output_size, output_size),
                                 jnp.float32, -kc, kc); idx += 1
    b_conf1 = jax.random.uniform(keys[idx], (output_size,),
                                 jnp.float32, -kc, kc); idx += 1
    w_conf2 = jax.random.uniform(keys[idx], (1, output_size),
                                 jnp.float32, -kc, kc); idx += 1
    b_conf2 = jax.random.uniform(keys[idx], (1,),
                                 jnp.float32, -kc, kc); idx += 1
    return dict(gru=gru, w_resp=w_resp, b_resp=b_resp,
                w_conf1=w_conf1, b_conf1=b_conf1,
                w_conf2=w_conf2, b_conf2=b_conf2)


# --------------------------------------------------------------------------
# Full forward (matches evidGRU.forward): returns (evid, values, conf, hn)
# --------------------------------------------------------------------------
def evid_gru_forward(params, x, h0=None):
    B, T, _ = x.shape
    H = params["gru"][0]["whh"].shape[1]
    O = params["w_resp"].shape[0]
    n_layers = len(params["gru"])
    if h0 is None:
        h0 = jnp.zeros((n_layers, B, H), jnp.float32)

    vmem_limit = _tpu_vmem_limit_bytes()
    n_tc = _num_tensorcores()

    Hp = _round_up(H, 128)          # lane-aligned hidden size inside kernels
    Op = _round_up(O, 128)          # lane-aligned head output size
    Bp = _round_up(B, 8)            # sublane-aligned batch

    b_block = Bp
    if n_tc >= 2 and Bp % (8 * n_tc) == 0:
        # TODO(synk): mark this axis core-parallel on v7x once verified.
        b_block = Bp // n_tc

    # Time chunk sized against the double-buffered VMEM footprint
    # (3 gate inputs + out, x2 buffers, f32) + resident fused W_hh weights.
    per_step = 8 * b_block * Hp * 4
    resident = 3 * Hp * Hp * 2 + 4 * b_block * Hp * 4 + (1 << 20)
    cap = max(1, min(_T_CHUNK_MAX, (vmem_limit // 2 - resident) // max(per_step, 1)))
    n_chunks = -(-T // cap)
    t_chunk = -(-T // n_chunks)
    Tp = t_chunk * n_chunks         # pad T instead of degrading to 1-step chunks

    # Transpose + bf16 cast + pad in one wrapper pass over x.
    x_tb = jnp.transpose(x, (1, 0, 2)).astype(_MATMUL_DTYPE)     # (T, B, in)
    h0 = h0.astype(jnp.float32)
    if Tp != T or Bp != B:
        x_tb = jnp.pad(x_tb, ((0, Tp - T), (0, Bp - B), (0, 0)))
    if Bp != B or Hp != H:
        h0 = jnp.pad(h0, ((0, 0), (0, Bp - B), (0, Hp - H)))

    hn_layers = []
    layer_in = x_tb
    out = None
    for layer, lp in enumerate(params["gru"]):
        in_feat = layer_in.shape[-1]
        in_sz = lp["wih"].shape[1]

        # W_ih^T: pad input rows to in_feat and each gate's columns to Hp.
        wih_t = jnp.transpose(lp["wih"])                          # (in_sz, 3H)
        wih_p = jnp.concatenate(
            [jnp.pad(wih_t[:, g * H:(g + 1) * H],
                     ((0, in_feat - in_sz), (0, Hp - H))) for g in range(3)],
            axis=1).astype(_MATMUL_DTYPE)                         # (in_feat, 3Hp)

        # Fused W_hh^T: (Hp, 3Hp), per-gate blocks lane-aligned at multiples of Hp.
        whh_t = jnp.transpose(lp["whh"])                          # (H, 3H)
        whh_p = jnp.concatenate(
            [jnp.pad(whh_t[:, g * H:(g + 1) * H],
                     ((0, Hp - H), (0, Hp - H))) for g in range(3)],
            axis=1).astype(_MATMUL_DTYPE)                         # (Hp, 3Hp)

        def pad_h(v):
            return jnp.pad(v, (0, Hp - H))[None, :]
        # Pre-fold biases: r/z gates get b_ih + b_hh; n gate keeps b_hn apart.
        bias_r = pad_h(lp["bih"][0 * H:1 * H] + lp["bhh"][0 * H:1 * H])
        bias_z = pad_h(lp["bih"][1 * H:2 * H] + lp["bhh"][1 * H:2 * H])
        bias_n = pad_h(lp["bih"][2 * H:3 * H])
        bhn = pad_h(lp["bhh"][2 * H:3 * H])

        x_flat = layer_in.reshape(Tp * Bp, in_feat)
        gr, gz, gn = input_projection(x_flat, wih_p, bias_r, bias_z, bias_n,
                                      vmem_limit)
        gr = gr.reshape(Tp, Bp, Hp)
        gz = gz.reshape(Tp, Bp, Hp)
        gn = gn.reshape(Tp, Bp, Hp)

        out = gru_layer(gr, gz, gn, h0[layer], whh_p, bhn,
                        t_chunk, b_block, vmem_limit)
        hn_layers.append(out[T - 1, :B, :H])      # hn = hidden after last real step
        layer_in = out.astype(_MATMUL_DTYPE)      # DCE'd for the last layer
        # TODO(synk): inter-layer dropout omitted (module default dropout=0).
    hn = jnp.stack(hn_layers, axis=0)             # (n_layers, B, H)

    # Head runs over the padded rows directly (T * Bp); slice afterwards.
    h_flat = out[:T].reshape(T * Bp, Hp)
    wr_p = jnp.pad(jnp.transpose(params["w_resp"]),
                   ((0, Hp - H), (0, Op - O))).astype(_MATMUL_DTYPE)   # (Hp, Op)
    br_p = jnp.pad(params["b_resp"], (0, Op - O),
                   constant_values=_NEG_BIG)[None, :]                  # (1, Op)
    w1_p = jnp.pad(jnp.transpose(params["w_conf1"]),
                   ((0, Op - O), (0, Op - O))).astype(_MATMUL_DTYPE)   # (Op, Op)
    b1_p = jnp.pad(params["b_conf1"], (0, Op - O))[None, :]            # (1, Op)
    w2_p = jnp.pad(params["w_conf2"][0], (0, Op - O))[None, :]         # (1, Op) f32
    b2_p = params["b_conf2"][None, :]                                  # (1, 1)

    values_f, evid_f, conf_f = head(h_flat, wr_p, br_p, w1_p, b1_p,
                                    w2_p, b2_p, vmem_limit)

    values = jnp.transpose(values_f.reshape(T, Bp, Op)[:, :B, :O], (1, 0, 2))
    evid = jnp.transpose(evid_f.reshape(T, Bp, Op)[:, :B, :O], (1, 0, 2))
    conf = jnp.transpose(conf_f.reshape(T, Bp, 128)[:, :B, :1], (1, 0, 2))
    return evid, values, conf, hn


# --------------------------------------------------------------------------
# Pure-JAX reference (same bf16-matmul recipe) for numerical validation
# --------------------------------------------------------------------------
def _reference_forward(params, x, h0=None):
    bf = _MATMUL_DTYPE
    B, T, _ = x.shape
    H = params["gru"][0]["whh"].shape[1]
    O = params["w_resp"].shape[0]
    n_layers = len(params["gru"])
    if h0 is None:
        h0 = jnp.zeros((n_layers, B, H), jnp.float32)

    out = jnp.transpose(x.astype(jnp.float32), (1, 0, 2))
    hn_layers = []
    for layer, lp in enumerate(params["gru"]):
        wih_t = jnp.transpose(lp["wih"]).astype(bf)
        gi = jnp.dot(out.reshape(T * B, -1).astype(bf), wih_t,
                     preferred_element_type=jnp.float32).reshape(T, B, 3 * H)
        gr = gi[..., 0 * H:1 * H] + (lp["bih"][0 * H:1 * H] + lp["bhh"][0 * H:1 * H])
        gz = gi[..., 1 * H:2 * H] + (lp["bih"][1 * H:2 * H] + lp["bhh"][1 * H:2 * H])
        gn = gi[..., 2 * H:3 * H] + lp["bih"][2 * H:3 * H]
        whr_t = jnp.transpose(lp["whh"][0 * H:1 * H]).astype(bf)
        whz_t = jnp.transpose(lp["whh"][1 * H:2 * H]).astype(bf)
        whn_t = jnp.transpose(lp["whh"][2 * H:3 * H]).astype(bf)
        bhn = lp["bhh"][2 * H:3 * H]
        h = h0[layer]
        outs = []
        for t in range(T):
            hb = h.astype(bf)
            gh_r = jnp.dot(hb, whr_t, preferred_element_type=jnp.float32)
            gh_z = jnp.dot(hb, whz_t, preferred_element_type=jnp.float32)
            gh_n = jnp.dot(hb, whn_t, preferred_element_type=jnp.float32)
            r = jax.nn.sigmoid(gr[t] + gh_r)
            z = jax.nn.sigmoid(gz[t] + gh_z)
            n = jnp.tanh(gn[t] + r * (gh_n + bhn))
            h = (1.0 - z) * n + z * h
            outs.append(h)
        out = jnp.stack(outs, axis=0)
        hn_layers.append(h)
    hn = jnp.stack(hn_layers, axis=0)

    hf = out.reshape(T * B, H)
    values = jnp.dot(hf.astype(bf), jnp.transpose(params["w_resp"]).astype(bf),
                     preferred_element_type=jnp.float32) + params["b_resp"]
    m = jnp.max(values, axis=-1, keepdims=True)
    e = jnp.exp(values - m)
    evid = e / jnp.sum(e, axis=-1, keepdims=True)
    t1 = jnp.dot(evid.astype(bf), jnp.transpose(params["w_conf1"]).astype(bf),
                 preferred_element_type=jnp.float32) + params["b_conf1"]
    t1 = jnp.maximum(t1, 0.0)
    logit = jnp.sum(t1 * params["w_conf2"][0], axis=-1, keepdims=True) + params["b_conf2"]
    conf = jax.nn.sigmoid(logit)
    values = jnp.transpose(values.reshape(T, B, O), (1, 0, 2))
    evid = jnp.transpose(evid.reshape(T, B, O), (1, 0, 2))
    conf = jnp.transpose(conf.reshape(T, B, 1), (1, 0, 2))
    return evid, values, conf, hn


if __name__ == "__main__":
    B, T, I, H, O = 2, 8, 16, 32, 10
    key = jax.random.PRNGKey(0)
    kp, kx = jax.random.split(key)
    params = init_params(kp, input_size=I, hidden_size=H,
                         output_size=O, n_layers=1)
    x = jax.random.normal(kx, (B, T, I), jnp.float32)

    fwd = jax.jit(evid_gru_forward)
    evid, values, conf, hn = fwd(params, x)
    jax.block_until_ready((evid, values, conf, hn))

    # shape / sanity checks
    assert evid.shape == (B, T, O)
    assert values.shape == (B, T, O)
    assert conf.shape == (B, T, 1)
    assert hn.shape == (1, B, H)
    assert bool(jnp.allclose(jnp.sum(evid, axis=-1), 1.0, atol=1e-3))
    assert bool(jnp.all((conf > 0.0) & (conf < 1.0)))

    # numerical check against a pure-JAX reference using the same bf16 recipe
    evid_r, values_r, conf_r, hn_r = _reference_forward(params, x)
    tol = dict(atol=5e-3, rtol=5e-3)
    assert bool(jnp.allclose(values, values_r, **tol))
    assert bool(jnp.allclose(evid, evid_r, **tol))
    assert bool(jnp.allclose(conf, conf_r, **tol))
    assert bool(jnp.allclose(hn, hn_r, **tol))

    print("KERNEL_OK")
</pallas_src>

<mosaic_0001>
module attributes {stable_mosaic.version = 11 : i64} {
  func.func @_proj_kernel(%arg0: i32, %arg1: memref<64x16xbf16, #tpu.memory_space<vmem>>, %arg2: memref<16x384xbf16, #tpu.memory_space<vmem>>, %arg3: memref<1x128xf32, #tpu.memory_space<vmem>>, %arg4: memref<1x128xf32, #tpu.memory_space<vmem>>, %arg5: memref<1x128xf32, #tpu.memory_space<vmem>>, %arg6: memref<64x128xf32, #tpu.memory_space<vmem>>, %arg7: memref<64x128xf32, #tpu.memory_space<vmem>>, %arg8: memref<64x128xf32, #tpu.memory_space<vmem>>) attributes {dimension_semantics = [#tpu.dimension_semantics<parallel>], iteration_bounds = array<i64: 1>, scalar_prefetch = 0 : i64, scratch_operands = 0 : i64, tpu.core_type = #tpu.core_type<tc>, window_params = [{transform_indices = @transform_0, window_bounds = array<i64: 64, 16>}, {pipeline_mode = #tpu.pipeline_mode<synchronous>, transform_indices = @transform_1, window_bounds = array<i64: 16, 384>}, {pipeline_mode = #tpu.pipeline_mode<synchronous>, transform_indices = @transform_2, window_bounds = array<i64: 1, 128>}, {pipeline_mode = #tpu.pipeline_mode<synchronous>, transform_indices = @transform_3, window_bounds = array<i64: 1, 128>}, {pipeline_mode = #tpu.pipeline_mode<synchronous>, transform_indices = @transform_4, window_bounds = array<i64: 1, 128>}, {transform_indices = @transform_5, window_bounds = array<i64: 64, 128>}, {transform_indices = @transform_6, window_bounds = array<i64: 64, 128>}, {transform_indices = @transform_7, window_bounds = array<i64: 64, 128>}]} {
    %c0 = arith.constant 0 : index
    %c0_0 = arith.constant 0 : index
    %0 = vector.load %arg1[%c0, %c0_0] : memref<64x16xbf16, #tpu.memory_space<vmem>>, vector<64x16xbf16>
    %c0_1 = arith.constant 0 : index
    %c0_2 = arith.constant 0 : index
    %1 = vector.load %arg2[%c0_1, %c0_2] : memref<16x384xbf16, #tpu.memory_space<vmem>>, vector<16x384xbf16>
    %cst = arith.constant dense<0.000000e+00> : vector<64x384xf32>
    %2 = tpu.matmul %0, %1, %cst {dimension_numbers = #tpu.dot_dimension_numbers<[1], [0], [0], [1], [0, 0, 1, 1], [], []>} : vector<64x16xbf16>, vector<16x384xbf16>, vector<64x384xf32> -> vector<64x384xf32>
    %3 = vector.extract_strided_slice %2 {offsets = [0, 0], sizes = [64, 128], strides = [1, 1]} : vector<64x384xf32> to vector<64x128xf32>
    %c0_3 = arith.constant 0 : index
    %c0_4 = arith.constant 0 : index
    %4 = vector.load %arg3[%c0_3, %c0_4] : memref<1x128xf32, #tpu.memory_space<vmem>>, vector<1x128xf32>
    %5 = vector.broadcast %4 : vector<1x128xf32> to vector<64x128xf32>
    %6 = arith.addf %3, %5 : vector<64x128xf32>
    %c0_5 = arith.constant 0 : index
    %c0_6 = arith.constant 0 : index
    %7 = vector.load %arg6[%c0_5, %c0_6] : memref<64x128xf32, #tpu.memory_space<vmem>>, vector<64x128xf32>
    tpu.vector_store %arg6[%c0_5, %c0_6], %6 {strides = array<i32>} : memref<64x128xf32, #tpu.memory_space<vmem>>, vector<64x128xf32>,
    %8 = vector.extract_strided_slice %2 {offsets = [0, 128], sizes = [64, 128], strides = [1, 1]} : vector<64x384xf32> to vector<64x128xf32>
    %c0_7 = arith.constant 0 : index
    %c0_8 = arith.constant 0 : index
    %9 = vector.load %arg4[%c0_7, %c0_8] : memref<1x128xf32, #tpu.memory_space<vmem>>, vector<1x128xf32>
    %10 = vector.broadcast %9 : vector<1x128xf32> to vector<64x128xf32>
    %11 = arith.addf %8, %10 : vector<64x128xf32>
    %c0_9 = arith.constant 0 : index
    %c0_10 = arith.constant 0 : index
    %12 = vector.load %arg7[%c0_9, %c0_10] : memref<64x128xf32, #tpu.memory_space<vmem>>, vector<64x128xf32>
    tpu.vector_store %arg7[%c0_9, %c0_10], %11 {strides = array<i32>} : memref<64x128xf32, #tpu.memory_space<vmem>>, vector<64x128xf32>,
    %13 = vector.extract_strided_slice %2 {offsets = [0, 256], sizes = [64, 128], strides = [1, 1]} : vector<64x384xf32> to vector<64x128xf32>
    %c0_11 = arith.constant 0 : index
    %c0_12 = arith.constant 0 : index
    %14 = vector.load %arg5[%c0_11, %c0_12] : memref<1x128xf32, #tpu.memory_space<vmem>>, vector<1x128xf32>
    %15 = vector.broadcast %14 : vector<1x128xf32> to vector<64x128xf32>
    %16 = arith.addf %13, %15 : vector<64x128xf32>
    %c0_13 = arith.constant 0 : index
    %c0_14 = arith.constant 0 : index
    %17 = vector.load %arg8[%c0_13, %c0_14] : memref<64x128xf32, #tpu.memory_space<vmem>>, vector<64x128xf32>
    tpu.vector_store %arg8[%c0_13, %c0_14], %16 {strides = array<i32>} : memref<64x128xf32, #tpu.memory_space<vmem>>, vector<64x128xf32>,
    return
  }
  func.func @transform_0(%arg0: i32) -> (i32, i32) {
    %c0_i32 = arith.constant 0 : i32
    %c0_i32_0 = arith.constant 0 : i32
    return %arg0, %c0_i32 : i32, i32
  }
  func.func @transform_1(%arg0: i32) -> (i32, i32) {
    %c0_i32 = arith.constant 0 : i32
    %c0_i32_0 = arith.constant 0 : i32
    %c0_i32_1 = arith.constant 0 : i32
    return %c0_i32, %c0_i32_0 : i32, i32
  }
  func.func @transform_2(%arg0: i32) -> (i32, i32) {
    %c0_i32 = arith.constant 0 : i32
    %c0_i32_0 = arith.constant 0 : i32
    %c0_i32_1 = arith.constant 0 : i32
    return %c0_i32, %c0_i32_0 : i32, i32
  }
  func.func @transform_3(%arg0: i32) -> (i32, i32) {
    %c0_i32 = arith.constant 0 : i32
    %c0_i32_0 = arith.constant 0 : i32
    %c0_i32_1 = arith.constant 0 : i32
    return %c0_i32, %c0_i32_0 : i32, i32
  }
  func.func @transform_4(%arg0: i32) -> (i32, i32) {
    %c0_i32 = arith.constant 0 : i32
    %c0_i32_0 = arith.constant 0 : i32
    %c0_i32_1 = arith.constant 0 : i32
    return %c0_i32, %c0_i32_0 : i32, i32
  }
  func.func @transform_5(%arg0: i32) -> (i32, i32) {
    %c0_i32 = arith.constant 0 : i32
    %c0_i32_0 = arith.constant 0 : i32
    return %arg0, %c0_i32 : i32, i32
  }
  func.func @transform_6(%arg0: i32) -> (i32, i32) {
    %c0_i32 = arith.constant 0 : i32
    %c0_i32_0 = arith.constant 0 : i32
    return %arg0, %c0_i32 : i32, i32
  }
  func.func @transform_7(%arg0: i32) -> (i32, i32) {
    %c0_i32 = arith.constant 0 : i32
    %c0_i32_0 = arith.constant 0 : i32
    return %arg0, %c0_i32 : i32, i32
  }
}

module attributes {stable_mosaic.version = 11 : i64} {
  func.func @_gru_rec_kernel(%arg0: i32, %arg1: i32, %arg2: memref<8x8x128xf32, #tpu.memory_space<vmem>>, %arg3: memref<8x8x128xf32, #tpu.memory_space<vmem>>, %arg4: memref<8x8x128xf32, #tpu.memory_space<vmem>>, %arg5: memref<8x128xf32, #tpu.memory_space<vmem>>, %arg6: memref<128x384xbf16, #tpu.memory_space<vmem>>, %arg7: memref<1x128xf32, #tpu.memory_space<vmem>>, %arg8: memref<8x8x128xf32, #tpu.memory_space<vmem>>, %arg9: memref<8x128xf32, #tpu.memory_space<vmem>>) attributes {dimension_semantics = [#tpu.dimension_semantics<parallel>, #tpu.dimension_semantics<arbitrary>], iteration_bounds = array<i64: 1, 1>, scalar_prefetch = 0 : i64, scratch_operands = 1 : i64, tpu.core_type = #tpu.core_type<tc>, window_params = [{transform_indices = @transform_0, window_bounds = array<i64: 8, 8, 128>}, {transform_indices = @transform_1, window_bounds = array<i64: 8, 8, 128>}, {transform_indices = @transform_2, window_bounds = array<i64: 8, 8, 128>}, {transform_indices = @transform_3, window_bounds = array<i64: 8, 128>}, {pipeline_mode = #tpu.pipeline_mode<synchronous>, transform_indices = @transform_4, window_bounds = array<i64: 128, 384>}, {pipeline_mode = #tpu.pipeline_mode<synchronous>, transform_indices = @transform_5, window_bounds = array<i64: 1, 128>}, {transform_indices = @transform_6, window_bounds = array<i64: 8, 8, 128>}]} {
    %c0_i32 = arith.constant 0 : i32
    %0 = arith.cmpi eq, %arg1, %c0_i32 : i32
    %1 = arith.extui %0 : i1 to i32
    %c0_i32_0 = arith.constant 0 : i32
    %2 = arith.cmpi ne, %1, %c0_i32_0 : i32
    scf.if %2 {
      %c0_118 = arith.constant 0 : index
      %c0_119 = arith.constant 0 : index
      %328 = vector.load %arg5[%c0_118, %c0_119] : memref<8x128xf32, #tpu.memory_space<vmem>>, vector<8x128xf32>
      %c0_120 = arith.constant 0 : index
      %c0_121 = arith.constant 0 : index
      %329 = vector.load %arg9[%c0_120, %c0_121] : memref<8x128xf32, #tpu.memory_space<vmem>>, vector<8x128xf32>
      tpu.vector_store %arg9[%c0_120, %c0_121], %328 {strides = array<i32>} : memref<8x128xf32, #tpu.memory_space<vmem>>, vector<8x128xf32>,
    } else {
    }
    %c0 = arith.constant 0 : index
    %c0_1 = arith.constant 0 : index
    %3 = vector.load %arg7[%c0, %c0_1] : memref<1x128xf32, #tpu.memory_space<vmem>>, vector<1x128xf32>
    %4 = vector.shape_cast %3 : vector<1x128xf32> to vector<1x128xf32>
    %5 = vector.broadcast %4 : vector<1x128xf32> to vector<8x128xf32>
    %c0_2 = arith.constant 0 : index
    %c0_3 = arith.constant 0 : index
    %6 = vector.load %arg9[%c0_2, %c0_3] : memref<8x128xf32, #tpu.memory_space<vmem>>, vector<8x128xf32>
    %c0_i32_4 = arith.constant 0 : i32
    %7 = arith.truncf %6 : vector<8x128xf32> to vector<8x128xbf16>
    %c0_5 = arith.constant 0 : index
    %c0_6 = arith.constant 0 : index
    %8 = vector.load %arg6[%c0_5, %c0_6] : memref<128x384xbf16, #tpu.memory_space<vmem>>, vector<128x384xbf16>
    %cst = arith.constant dense<0.000000e+00> : vector<8x384xf32>
    %9 = tpu.matmul %7, %8, %cst {dimension_numbers = #tpu.dot_dimension_numbers<[1], [0], [0], [1], [0, 0, 1, 1], [], []>} : vector<8x128xbf16>, vector<128x384xbf16>, vector<8x384xf32> -> vector<8x384xf32>
    %10 = vector.extract_strided_slice %9 {offsets = [0, 0], sizes = [8, 128], strides = [1, 1]} : vector<8x384xf32> to vector<8x128xf32>
    %11 = vector.extract_strided_slice %9 {offsets = [0, 128], sizes = [8, 128], strides = [1, 1]} : vector<8x384xf32> to vector<8x128xf32>
    %12 = vector.extract_strided_slice %9 {offsets = [0, 256], sizes = [8, 128], strides = [1, 1]} : vector<8x384xf32> to vector<8x128xf32>
    %13 = arith.index_cast %c0_i32_4 : i32 to index
    %c0_7 = arith.constant 0 : index
    %c0_8 = arith.constant 0 : index
    %14 = vector.load %arg2[%13, %c0_7, %c0_8] : memref<8x8x128xf32, #tpu.memory_space<vmem>>, vector<1x8x128xf32>
    %15 = vector.shape_cast %14 : vector<1x8x128xf32> to vector<8x128xf32>
    %16 = arith.addf %15, %10 : vector<8x128xf32>
    %17 = arith.negf %16 : vector<8x128xf32>
    %18 = math.exp %17 : vector<8x128xf32>
    %cst_9 = arith.constant 1.000000e+00 : f32
    %19 = vector.broadcast %cst_9 : f32 to vector<8x128xf32>
    %20 = arith.addf %19, %18 : vector<8x128xf32>
    %21 = arith.divf %19, %20 : vector<8x128xf32>
    %22 = arith.index_cast %c0_i32_4 : i32 to index
    %c0_10 = arith.constant 0 : index
    %c0_11 = arith.constant 0 : index
    %23 = vector.load %arg3[%22, %c0_10, %c0_11] : memref<8x8x128xf32, #tpu.memory_space<vmem>>, vector<1x8x128xf32>
    %24 = vector.shape_cast %23 : vector<1x8x128xf32> to vector<8x128xf32>
    %25 = arith.addf %24, %11 : vector<8x128xf32>
    %26 = arith.negf %25 : vector<8x128xf32>
    %27 = math.exp %26 : vector<8x128xf32>
    %cst_12 = arith.constant 1.000000e+00 : f32
    %28 = vector.broadcast %cst_12 : f32 to vector<8x128xf32>
    %29 = arith.addf %28, %27 : vector<8x128xf32>
    %30 = arith.divf %28, %29 : vector<8x128xf32>
    %31 = arith.index_cast %c0_i32_4 : i32 to index
    %c0_13 = arith.constant 0 : index
    %c0_14 = arith.constant 0 : index
    %32 = vector.load %arg4[%31, %c0_13, %c0_14] : memref<8x8x128xf32, #tpu.memory_space<vmem>>, vector<1x8x128xf32>
    %33 = vector.shape_cast %32 : vector<1x8x128xf32> to vector<8x128xf32>
    %34 = arith.addf %12, %5 : vector<8x128xf32>
    %35 = arith.mulf %21, %34 : vector<8x128xf32>
    %36 = arith.addf %33, %35 : vector<8x128xf32>
    %37 = math.tanh %36 : vector<8x128xf32>
    %cst_15 = arith.constant 1.000000e+00 : f32
    %38 = vector.broadcast %cst_15 : f32 to vector<8x128xf32>
    %39 = arith.subf %38, %30 : vector<8x128xf32>
    %40 = arith.mulf %39, %37 : vector<8x128xf32>
    %41 = arith.mulf %30, %6 : vector<8x128xf32>
    %42 = arith.addf %40, %41 : vector<8x128xf32>
    %43 = arith.index_cast %c0_i32_4 : i32 to index
    %c0_16 = arith.constant 0 : index
    %c0_17 = arith.constant 0 : index
    %44 = vector.load %arg8[%43, %c0_16, %c0_17] : memref<8x8x128xf32, #tpu.memory_space<vmem>>, vector<1x8x128xf32>
    %45 = vector.shape_cast %44 : vector<1x8x128xf32> to vector<8x128xf32>
    %46 = vector.shape_cast %42 : vector<8x128xf32> to vector<1x8x128xf32>
    tpu.vector_store %arg8[%43, %c0_16, %c0_17], %46 {strides = array<i32>} : memref<8x8x128xf32, #tpu.memory_space<vmem>>, vector<1x8x128xf32>,
    %c1_i32 = arith.constant 1 : i32
    %47 = arith.truncf %42 : vector<8x128xf32> to vector<8x128xbf16>
    %c0_18 = arith.constant 0 : index
    %c0_19 = arith.constant 0 : index
    %48 = vector.load %arg6[%c0_18, %c0_19] : memref<128x384xbf16, #tpu.memory_space<vmem>>, vector<128x384xbf16>
    %cst_20 = arith.constant dense<0.000000e+00> : vector<8x384xf32>
    %49 = tpu.matmul %47, %48, %cst_20 {dimension_numbers = #tpu.dot_dimension_numbers<[1], [0], [0], [1], [0, 0, 1, 1], [], []>} : vector<8x128xbf16>, vector<128x384xbf16>, vector<8x384xf32> -> vector<8x384xf32>
    %50 = vector.extract_strided_slice %49 {offsets = [0, 0], sizes = [8, 128], strides = [1, 1]} : vector<8x384xf32> to vector<8x128xf32>
    %51 = vector.extract_strided_slice %49 {offsets = [0, 128], sizes = [8, 128], strides = [1, 1]} : vector<8x384xf32> to vector<8x128xf32>
    %52 = vector.extract_strided_slice %49 {offsets = [0, 256], sizes = [8, 128], strides = [1, 1]} : vector<8x384xf32> to vector<8x128xf32>
    %53 = arith.index_cast %c1_i32 : i32 to index
    %c0_21 = arith.constant 0 : index
    %c0_22 = arith.constant 0 : index
    %54 = vector.load %arg2[%53, %c0_21, %c0_22] : memref<8x8x128xf32, #tpu.memory_space<vmem>>, vector<1x8x128xf32>
    %55 = vector.shape_cast %54 : vector<1x8x128xf32> to vector<8x128xf32>
    %56 = arith.addf %55, %50 : vector<8x128xf32>
    %57 = arith.negf %56 : vector<8x128xf32>
    %58 = math.exp %57 : vector<8x128xf32>
    %cst_23 = arith.constant 1.000000e+00 : f32
    %59 = vector.broadcast %cst_23 : f32 to vector<8x128xf32>
    %60 = arith.addf %59, %58 : vector<8x128xf32>
    %61 = arith.divf %59, %60 : vector<8x128xf32>
    %62 = arith.index_cast %c1_i32 : i32 to index
    %c0_24 = arith.constant 0 : index
    %c0_25 = arith.constant 0 : index
    %63 = vector.load %arg3[%62, %c0_24, %c0_25] : memref<8x8x128xf32, #tpu.memory_space<vmem>>, vector<1x8x128xf32>
    %64 = vector.shape_cast %63 : vector<1x8x128xf32> to vector<8x128xf32>
    %65 = arith.addf %64, %51 : vector<8x128xf32>
    %66 = arith.negf %65 : vector<8x128xf32>
    %67 = math.exp %66 : vector<8x128xf32>
    %cst_26 = arith.constant 1.000000e+00 : f32
    %68 = vector.broadcast %cst_26 : f32 to vector<8x128xf32>
    %69 = arith.addf %68, %67 : vector<8x128xf32>
    %70 = arith.divf %68, %69 : vector<8x128xf32>
    %71 = arith.index_cast %c1_i32 : i32 to index
    %c0_27 = arith.constant 0 : index
    %c0_28 = arith.constant 0 : index
    %72 = vector.load %arg4[%71, %c0_27, %c0_28] : memref<8x8x128xf32, #tpu.memory_space<vmem>>, vector<1x8x128xf32>
    %73 = vector.shape_cast %72 : vector<1x8x128xf32> to vector<8x128xf32>
    %74 = arith.addf %52, %5 : vector<8x128xf32>
    %75 = arith.mulf %61, %74 : vector<8x128xf32>
    %76 = arith.addf %73, %75 : vector<8x128xf32>
    %77 = math.tanh %76 : vector<8x128xf32>
    %cst_29 = arith.constant 1.000000e+00 : f32
    %78 = vector.broadcast %cst_29 : f32 to vector<8x128xf32>
    %79 = arith.subf %78, %70 : vector<8x128xf32>
    %80 = arith.mulf %79, %77 : vector<8x128xf32>
    %81 = arith.mulf %70, %42 : vector<8x128xf32>
    %82 = arith.addf %80, %81 : vector<8x128xf32>
    %83 = arith.index_cast %c1_i32 : i32 to index
    %c0_30 = arith.constant 0 : index
    %c0_31 = arith.constant 0 : index
    %84 = vector.load %arg8[%83, %c0_30, %c0_31] : memref<8x8x128xf32, #tpu.memory_space<vmem>>, vector<1x8x128xf32>
    %85 = vector.shape_cast %84 : vector<1x8x128xf32> to vector<8x128xf32>
    %86 = vector.shape_cast %82 : vector<8x128xf32> to vector<1x8x128xf32>
    tpu.vector_store %arg8[%83, %c0_30, %c0_31], %86 {strides = array<i32>} : memref<8x8x128xf32, #tpu.memory_space<vmem>>, vector<1x8x128xf32>,
    %c2_i32 = arith.constant 2 : i32
    %87 = arith.truncf %82 : vector<8x128xf32> to vector<8x128xbf16>
    %c0_32 = arith.constant 0 : index
    %c0_33 = arith.constant 0 : index
    %88 = vector.load %arg6[%c0_32, %c0_33] : memref<128x384xbf16, #tpu.memory_space<vmem>>, vector<128x384xbf16>
    %cst_34 = arith.constant dense<0.000000e+00> : vector<8x384xf32>
    %89 = tpu.matmul %87, %88, %cst_34 {dimension_numbers = #tpu.dot_dimension_numbers<[1], [0], [0], [1], [0, 0, 1, 1], [], []>} : vector<8x128xbf16>, vector<128x384xbf16>, vector<8x384xf32> -> vector<8x384xf32>
    %90 = vector.extract_strided_slice %89 {offsets = [0, 0], sizes = [8, 128], strides = [1, 1]} : vector<8x384xf32> to vector<8x128xf32>
    %91 = vector.extract_strided_slice %89 {offsets = [0, 128], sizes = [8, 128], strides = [1, 1]} : vector<8x384xf32> to vector<8x128xf32>
    %92 = vector.extract_strided_slice %89 {offsets = [0, 256], sizes = [8, 128], strides = [1, 1]} : vector<8x384xf32> to vector<8x128xf32>
    %93 = arith.index_cast %c2_i32 : i32 to index
    %c0_35 = arith.constant 0 : index
    %c0_36 = arith.constant 0 : index
    %94 = vector.load %arg2[%93, %c0_35, %c0_36] : memref<8x8x128xf32, #tpu.memory_space<vmem>>, vector<1x8x128xf32>
    %95 = vector.shape_cast %94 : vector<1x8x128xf32> to vector<8x128xf32>
    %96 = arith.addf %95, %90 : vector<8x128xf32>
    %97 = arith.negf %96 : vector<8x128xf32>
    %98 = math.exp %97 : vector<8x128xf32>
    %cst_37 = arith.constant 1.000000e+00 : f32
    %99 = vector.broadcast %cst_37 : f32 to vector<8x128xf32>
    %100 = arith.addf %99, %98 : vector<8x128xf32>
    %101 = arith.divf %99, %100 : vector<8x128xf32>
    %102 = arith.index_cast %c2_i32 : i32 to index
    %c0_38 = arith.constant 0 : index
    %c0_39 = arith.constant 0 : index
    %103 = vector.load %arg3[%102, %c0_38, %c0_39] : memref<8x8x128xf32, #tpu.memory_space<vmem>>, vector<1x8x128xf32>
    %104 = vector.shape_cast %103 : vector<1x8x128xf32> to vector<8x128xf32>
    %105 = arith.addf %104, %91 : vector<8x128xf32>
    %106 = arith.negf %105 : vector<8x128xf32>
    %107 = math.exp %106 : vector<8x128xf32>
    %cst_40 = arith.constant 1.000000e+00 : f32
    %108 = vector.broadcast %cst_40 : f32 to vector<8x128xf32>
    %109 = arith.addf %108, %107 : vector<8x128xf32>
    %110 = arith.divf %108, %109 : vector<8x128xf32>
    %111 = arith.index_cast %c2_i32 : i32 to index
    %c0_41 = arith.constant 0 : index
    %c0_42 = arith.constant 0 : index
    %112 = vector.load %arg4[%111, %c0_41, %c0_42] : memref<8x8x128xf32, #tpu.memory_space<vmem>>, vector<1x8x128xf32>
    %113 = vector.shape_cast %112 : vector<1x8x128xf32> to vector<8x128xf32>
    %114 = arith.addf %92, %5 : vector<8x128xf32>
    %115 = arith.mulf %101, %114 : vector<8x128xf32>
    %116 = arith.addf %113, %115 : vector<8x128xf32>
    %117 = math.tanh %116 : vector<8x128xf32>
    %cst_43 = arith.constant 1.000000e+00 : f32
    %118 = vector.broadcast %cst_43 : f32 to vector<8x128xf32>
    %119 = arith.subf %118, %110 : vector<8x128xf32>
    %120 = arith.mulf %119, %117 : vector<8x128xf32>
    %121 = arith.mulf %110, %82 : vector<8x128xf32>
    %122 = arith.addf %120, %121 : vector<8x128xf32>
    %123 = arith.index_cast %c2_i32 : i32 to index
    %c0_44 = arith.constant 0 : index
    %c0_45 = arith.constant 0 : index
    %124 = vector.load %arg8[%123, %c0_44, %c0_45] : memref<8x8x128xf32, #tpu.memory_space<vmem>>, vector<1x8x128xf32>
    %125 = vector.shape_cast %124 : vector<1x8x128xf32> to vector<8x128xf32>
    %126 = vector.shape_cast %122 : vector<8x128xf32> to vector<1x8x128xf32>
    tpu.vector_store %arg8[%123, %c0_44, %c0_45], %126 {strides = array<i32>} : memref<8x8x128xf32, #tpu.memory_space<vmem>>, vector<1x8x128xf32>,
    %c3_i32 = arith.constant 3 : i32
    %127 = arith.truncf %122 : vector<8x128xf32> to vector<8x128xbf16>
    %c0_46 = arith.constant 0 : index
    %c0_47 = arith.constant 0 : index
    %128 = vector.load %arg6[%c0_46, %c0_47] : memref<128x384xbf16, #tpu.memory_space<vmem>>, vector<128x384xbf16>
    %cst_48 = arith.constant dense<0.000000e+00> : vector<8x384xf32>
    %129 = tpu.matmul %127, %128, %cst_48 {dimension_numbers = #tpu.dot_dimension_numbers<[1], [0], [0], [1], [0, 0, 1, 1], [], []>} : vector<8x128xbf16>, vector<128x384xbf16>, vector<8x384xf32> -> vector<8x384xf32>
    %130 = vector.extract_strided_slice %129 {offsets = [0, 0], sizes = [8, 128], strides = [1, 1]} : vector<8x384xf32> to vector<8x128xf32>
    %131 = vector.extract_strided_slice %129 {offsets = [0, 128], sizes = [8, 128], strides = [1, 1]} : vector<8x384xf32> to vector<8x128xf32>
    %132 = vector.extract_strided_slice %129 {offsets = [0, 256], sizes = [8, 128], strides = [1, 1]} : vector<8x384xf32> to vector<8x128xf32>
    %133 = arith.index_cast %c3_i32 : i32 to index
    %c0_49 = arith.constant 0 : index
    %c0_50 = arith.constant 0 : index
    %134 = vector.load %arg2[%133, %c0_49, %c0_50] : memref<8x8x128xf32, #tpu.memory_space<vmem>>, vector<1x8x128xf32>
    %135 = vector.shape_cast %134 : vector<1x8x128xf32> to vector<8x128xf32>
    %136 = arith.addf %135, %130 : vector<8x128xf32>
    %137 = arith.negf %136 : vector<8x128xf32>
    %138 = math.exp %137 : vector<8x128xf32>
    %cst_51 = arith.constant 1.000000e+00 : f32
    %139 = vector.broadcast %cst_51 : f32 to vector<8x128xf32>
    %140 = arith.addf %139, %138 : vector<8x128xf32>
    %141 = arith.divf %139, %140 : vector<8x128xf32>
    %142 = arith.index_cast %c3_i32 : i32 to index
    %c0_52 = arith.constant 0 : index
    %c0_53 = arith.constant 0 : index
    %143 = vector.load %arg3[%142, %c0_52, %c0_53] : memref<8x8x128xf32, #tpu.memory_space<vmem>>, vector<1x8x128xf32>
    %144 = vector.shape_cast %143 : vector<1x8x128xf32> to vector<8x128xf32>
    %145 = arith.addf %144, %131 : vector<8x128xf32>
    %146 = arith.negf %145 : vector<8x128xf32>
    %147 = math.exp %146 : vector<8x128xf32>
    %cst_54 = arith.constant 1.000000e+00 : f32
    %148 = vector.broadcast %cst_54 : f32 to vector<8x128xf32>
    %149 = arith.addf %148, %147 : vector<8x128xf32>
    %150 = arith.divf %148, %149 : vector<8x128xf32>
    %151 = arith.index_cast %c3_i32 : i32 to index
    %c0_55 = arith.constant 0 : index
    %c0_56 = arith.constant 0 : index
    %152 = vector.load %arg4[%151, %c0_55, %c0_56] : memref<8x8x128xf32, #tpu.memory_space<vmem>>, vector<1x8x128xf32>
    %153 = vector.shape_cast %152 : vector<1x8x128xf32> to vector<8x128xf32>
    %154 = arith.addf %132, %5 : vector<8x128xf32>
    %155 = arith.mulf %141, %154 : vector<8x128xf32>
    %156 = arith.addf %153, %155 : vector<8x128xf32>
    %157 = math.tanh %156 : vector<8x128xf32>
    %cst_57 = arith.constant 1.000000e+00 : f32
    %158 = vector.broadcast %cst_57 : f32 to vector<8x128xf32>
    %159 = arith.subf %158, %150 : vector<8x128xf32>
    %160 = arith.mulf %159, %157 : vector<8x128xf32>
    %161 = arith.mulf %150, %122 : vector<8x128xf32>
    %162 = arith.addf %160, %161 : vector<8x128xf32>
    %163 = arith.index_cast %c3_i32 : i32 to index
    %c0_58 = arith.constant 0 : index
    %c0_59 = arith.constant 0 : index
    %164 = vector.load %arg8[%163, %c0_58, %c0_59] : memref<8x8x128xf32, #tpu.memory_space<vmem>>, vector<1x8x128xf32>
    %165 = vector.shape_cast %164 : vector<1x8x128xf32> to vector<8x128xf32>
    %166 = vector.shape_cast %162 : vector<8x128xf32> to vector<1x8x128xf32>
    tpu.vector_store %arg8[%163, %c0_58, %c0_59], %166 {strides = array<i32>} : memref<8x8x128xf32, #tpu.memory_space<vmem>>, vector<1x8x128xf32>,
    %c4_i32 = arith.constant 4 : i32
    %167 = arith.truncf %162 : vector<8x128xf32> to vector<8x128xbf16>
    %c0_60 = arith.constant 0 : index
    %c0_61 = arith.constant 0 : index
    %168 = vector.load %arg6[%c0_60, %c0_61] : memref<128x384xbf16, #tpu.memory_space<vmem>>, vector<128x384xbf16>
    %cst_62 = arith.constant dense<0.000000e+00> : vector<8x384xf32>
    %169 = tpu.matmul %167, %168, %cst_62 {dimension_numbers = #tpu.dot_dimension_numbers<[1], [0], [0], [1], [0, 0, 1, 1], [], []>} : vector<8x128xbf16>, vector<128x384xbf16>, vector<8x384xf32> -> vector<8x384xf32>
    %170 = vector.extract_strided_slice %169 {offsets = [0, 0], sizes = [8, 128], strides = [1, 1]} : vector<8x384xf32> to vector<8x128xf32>
    %171 = vector.extract_strided_slice %169 {offsets = [0, 128], sizes = [8, 128], strides = [1, 1]} : vector<8x384xf32> to vector<8x128xf32>
    %172 = vector.extract_strided_slice %169 {offsets = [0, 256], sizes = [8, 128], strides = [1, 1]} : vector<8x384xf32> to vector<8x128xf32>
    %173 = arith.index_cast %c4_i32 : i32 to index
    %c0_63 = arith.constant 0 : index
    %c0_64 = arith.constant 0 : index
    %174 = vector.load %arg2[%173, %c0_63, %c0_64] : memref<8x8x128xf32, #tpu.memory_space<vmem>>, vector<1x8x128xf32>
    %175 = vector.shape_cast %174 : vector<1x8x128xf32> to vector<8x128xf32>
    %176 = arith.addf %175, %170 : vector<8x128xf32>
    %177 = arith.negf %176 : vector<8x128xf32>
    %178 = math.exp %177 : vector<8x128xf32>
    %cst_65 = arith.constant 1.000000e+00 : f32
    %179 = vector.broadcast %cst_65 : f32 to vector<8x128xf32>
    %180 = arith.addf %179, %178 : vector<8x128xf32>
    %181 = arith.divf %179, %180 : vector<8x128xf32>
    %182 = arith.index_cast %c4_i32 : i32 to index
    %c0_66 = arith.constant 0 : index
    %c0_67 = arith.constant 0 : index
    %183 = vector.load %arg3[%182, %c0_66, %c0_67] : memref<8x8x128xf32, #tpu.memory_space<vmem>>, vector<1x8x128xf32>
    %184 = vector.shape_cast %183 : vector<1x8x128xf32> to vector<8x128xf32>
    %185 = arith.addf %184, %171 : vector<8x128xf32>
    %186 = arith.negf %185 : vector<8x128xf32>
    %187 = math.exp %186 : vector<8x128xf32>
    %cst_68 = arith.constant 1.000000e+00 : f32
    %188 = vector.broadcast %cst_68 : f32 to vector<8x128xf32>
    %189 = arith.addf %188, %187 : vector<8x128xf32>
    %190 = arith.divf %188, %189 : vector<8x128xf32>
    %191 = arith.index_cast %c4_i32 : i32 to index
    %c0_69 = arith.constant 0 : index
    %c0_70 = arith.constant 0 : index
    %192 = vector.load %arg4[%191, %c0_69, %c0_70] : memref<8x8x128xf32, #tpu.memory_space<vmem>>, vector<1x8x128xf32>
    %193 = vector.shape_cast %192 : vector<1x8x128xf32> to vector<8x128xf32>
    %194 = arith.addf %172, %5 : vector<8x128xf32>
    %195 = arith.mulf %181, %194 : vector<8x128xf32>
    %196 = arith.addf %193, %195 : vector<8x128xf32>
    %197 = math.tanh %196 : vector<8x128xf32>
    %cst_71 = arith.constant 1.000000e+00 : f32
    %198 = vector.broadcast %cst_71 : f32 to vector<8x128xf32>
    %199 = arith.subf %198, %190 : vector<8x128xf32>
    %200 = arith.mulf %199, %197 : vector<8x128xf32>
    %201 = arith.mulf %190, %162 : vector<8x128xf32>
    %202 = arith.addf %200, %201 : vector<8x128xf32>
    %203 = arith.index_cast %c4_i32 : i32 to index
    %c0_72 = arith.constant 0 : index
    %c0_73 = arith.constant 0 : index
    %204 = vector.load %arg8[%203, %c0_72, %c0_73] : memref<8x8x128xf32, #tpu.memory_space<vmem>>, vector<1x8x128xf32>
    %205 = vector.shape_cast %204 : vector<1x8x128xf32> to vector<8x128xf32>
    %206 = vector.shape_cast %202 : vector<8x128xf32> to vector<1x8x128xf32>
    tpu.vector_store %arg8[%203, %c0_72, %c0_73], %206 {strides = array<i32>} : memref<8x8x128xf32, #tpu.memory_space<vmem>>, vector<1x8x128xf32>,
    %c5_i32 = arith.constant 5 : i32
    %207 = arith.truncf %202 : vector<8x128xf32> to vector<8x128xbf16>
    %c0_74 = arith.constant 0 : index
    %c0_75 = arith.constant 0 : index
    %208 = vector.load %arg6[%c0_74, %c0_75] : memref<128x384xbf16, #tpu.memory_space<vmem>>, vector<128x384xbf16>
    %cst_76 = arith.constant dense<0.000000e+00> : vector<8x384xf32>
    %209 = tpu.matmul %207, %208, %cst_76 {dimension_numbers = #tpu.dot_dimension_numbers<[1], [0], [0], [1], [0, 0, 1, 1], [], []>} : vector<8x128xbf16>, vector<128x384xbf16>, vector<8x384xf32> -> vector<8x384xf32>
    %210 = vector.extract_strided_slice %209 {offsets = [0, 0], sizes = [8, 128], strides = [1, 1]} : vector<8x384xf32> to vector<8x128xf32>
    %211 = vector.extract_strided_slice %209 {offsets = [0, 128], sizes = [8, 128], strides = [1, 1]} : vector<8x384xf32> to vector<8x128xf32>
    %212 = vector.extract_strided_slice %209 {offsets = [0, 256], sizes = [8, 128], strides = [1, 1]} : vector<8x384xf32> to vector<8x128xf32>
    %213 = arith.index_cast %c5_i32 : i32 to index
    %c0_77 = arith.constant 0 : index
    %c0_78 = arith.constant 0 : index
    %214 = vector.load %arg2[%213, %c0_77, %c0_78] : memref<8x8x128xf32, #tpu.memory_space<vmem>>, vector<1x8x128xf32>
    %215 = vector.shape_cast %214 : vector<1x8x128xf32> to vector<8x128xf32>
    %216 = arith.addf %215, %210 : vector<8x128xf32>
    %217 = arith.negf %216 : vector<8x128xf32>
    %218 = math.exp %217 : vector<8x128xf32>
    %cst_79 = arith.constant 1.000000e+00 : f32
    %219 = vector.broadcast %cst_79 : f32 to vector<8x128xf32>
    %220 = arith.addf %219, %218 : vector<8x128xf32>
    %221 = arith.divf %219, %220 : vector<8x128xf32>
    %222 = arith.index_cast %c5_i32 : i32 to index
    %c0_80 = arith.constant 0 : index
    %c0_81 = arith.constant 0 : index
    %223 = vector.load %arg3[%222, %c0_80, %c0_81] : memref<8x8x128xf32, #tpu.memory_space<vmem>>, vector<1x8x128xf32>
    %224 = vector.shape_cast %223 : vector<1x8x128xf32> to vector<8x128xf32>
    %225 = arith.addf %224, %211 : vector<8x128xf32>
    %226 = arith.negf %225 : vector<8x128xf32>
    %227 = math.exp %226 : vector<8x128xf32>
    %cst_82 = arith.constant 1.000000e+00 : f32
    %228 = vector.broadcast %cst_82 : f32 to vector<8x128xf32>
    %229 = arith.addf %228, %227 : vector<8x128xf32>
    %230 = arith.divf %228, %229 : vector<8x128xf32>
    %231 = arith.index_cast %c5_i32 : i32 to index
    %c0_83 = arith.constant 0 : index
    %c0_84 = arith.constant 0 : index
    %232 = vector.load %arg4[%231, %c0_83, %c0_84] : memref<8x8x128xf32, #tpu.memory_space<vmem>>, vector<1x8x128xf32>
    %233 = vector.shape_cast %232 : vector<1x8x128xf32> to vector<8x128xf32>
    %234 = arith.addf %212, %5 : vector<8x128xf32>
    %235 = arith.mulf %221, %234 : vector<8x128xf32>
    %236 = arith.addf %233, %235 : vector<8x128xf32>
    %237 = math.tanh %236 : vector<8x128xf32>
    %cst_85 = arith.constant 1.000000e+00 : f32
    %238 = vector.broadcast %cst_85 : f32 to vector<8x128xf32>
    %239 = arith.subf %238, %230 : vector<8x128xf32>
    %240 = arith.mulf %239, %237 : vector<8x128xf32>
    %241 = arith.mulf %230, %202 : vector<8x128xf32>
    %242 = arith.addf %240, %241 : vector<8x128xf32>
    %243 = arith.index_cast %c5_i32 : i32 to index
    %c0_86 = arith.constant 0 : index
    %c0_87 = arith.constant 0 : index
    %244 = vector.load %arg8[%243, %c0_86, %c0_87] : memref<8x8x128xf32, #tpu.memory_space<vmem>>, vector<1x8x128xf32>
    %245 = vector.shape_cast %244 : vector<1x8x128xf32> to vector<8x128xf32>
    %246 = vector.shape_cast %242 : vector<8x128xf32> to vector<1x8x128xf32>
    tpu.vector_store %arg8[%243, %c0_86, %c0_87], %246 {strides = array<i32>} : memref<8x8x128xf32, #tpu.memory_space<vmem>>, vector<1x8x128xf32>,
    %c6_i32 = arith.constant 6 : i32
    %247 = arith.truncf %242 : vector<8x128xf32> to vector<8x128xbf16>
    %c0_88 = arith.constant 0 : index
    %c0_89 = arith.constant 0 : index
    %248 = vector.load %arg6[%c0_88, %c0_89] : memref<128x384xbf16, #tpu.memory_space<vmem>>, vector<128x384xbf16>
    %cst_90 = arith.constant dense<0.000000e+00> : vector<8x384xf32>
    %249 = tpu.matmul %247, %248, %cst_90 {dimension_numbers = #tpu.dot_dimension_numbers<[1], [0], [0], [1], [0, 0, 1, 1], [], []>} : vector<8x128xbf16>, vector<128x384xbf16>, vector<8x384xf32> -> vector<8x384xf32>
    %250 = vector.extract_strided_slice %249 {offsets = [0, 0], sizes = [8, 128], strides = [1, 1]} : vector<8x384xf32> to vector<8x128xf32>
    %251 = vector.extract_strided_slice %249 {offsets = [0, 128], sizes = [8, 128], strides = [1, 1]} : vector<8x384xf32> to vector<8x128xf32>
    %252 = vector.extract_strided_slice %249 {offsets = [0, 256], sizes = [8, 128], strides = [1, 1]} : vector<8x384xf32> to vector<8x128xf32>
    %253 = arith.index_cast %c6_i32 : i32 to index
    %c0_91 = arith.constant 0 : index
    %c0_92 = arith.constant 0 : index
    %254 = vector.load %arg2[%253, %c0_91, %c0_92] : memref<8x8x128xf32, #tpu.memory_space<vmem>>, vector<1x8x128xf32>
    %255 = vector.shape_cast %254 : vector<1x8x128xf32> to vector<8x128xf32>
    %256 = arith.addf %255, %250 : vector<8x128xf32>
    %257 = arith.negf %256 : vector<8x128xf32>
    %258 = math.exp %257 : vector<8x128xf32>
    %cst_93 = arith.constant 1.000000e+00 : f32
    %259 = vector.broadcast %cst_93 : f32 to vector<8x128xf32>
    %260 = arith.addf %259, %258 : vector<8x128xf32>
    %261 = arith.divf %259, %260 : vector<8x128xf32>
    %262 = arith.index_cast %c6_i32 : i32 to index
    %c0_94 = arith.constant 0 : index
    %c0_95 = arith.constant 0 : index
    %263 = vector.load %arg3[%262, %c0_94, %c0_95] : memref<8x8x128xf32, #tpu.memory_space<vmem>>, vector<1x8x128xf32>
    %264 = vector.shape_cast %263 : vector<1x8x128xf32> to vector<8x128xf32>
    %265 = arith.addf %264, %251 : vector<8x128xf32>
    %266 = arith.negf %265 : vector<8x128xf32>
    %267 = math.exp %266 : vector<8x128xf32>
    %cst_96 = arith.constant 1.000000e+00 : f32
    %268 = vector.broadcast %cst_96 : f32 to vector<8x128xf32>
    %269 = arith.addf %268, %267 : vector<8x128xf32>
    %270 = arith.divf %268, %269 : vector<8x128xf32>
    %271 = arith.index_cast %c6_i32 : i32 to index
    %c0_97 = arith.constant 0 : index
    %c0_98 = arith.constant 0 : index
    %272 = vector.load %arg4[%271, %c0_97, %c0_98] : memref<8x8x128xf32, #tpu.memory_space<vmem>>, vector<1x8x128xf32>
    %273 = vector.shape_cast %272 : vector<1x8x128xf32> to vector<8x128xf32>
    %274 = arith.addf %252, %5 : vector<8x128xf32>
    %275 = arith.mulf %261, %274 : vector<8x128xf32>
    %276 = arith.addf %273, %275 : vector<8x128xf32>
    %277 = math.tanh %276 : vector<8x128xf32>
    %cst_99 = arith.constant 1.000000e+00 : f32
    %278 = vector.broadcast %cst_99 : f32 to vector<8x128xf32>
    %279 = arith.subf %278, %270 : vector<8x128xf32>
    %280 = arith.mulf %279, %277 : vector<8x128xf32>
    %281 = arith.mulf %270, %242 : vector<8x128xf32>
    %282 = arith.addf %280, %281 : vector<8x128xf32>
    %283 = arith.index_cast %c6_i32 : i32 to index
    %c0_100 = arith.constant 0 : index
    %c0_101 = arith.constant 0 : index
    %284 = vector.load %arg8[%283, %c0_100, %c0_101] : memref<8x8x128xf32, #tpu.memory_space<vmem>>, vector<1x8x128xf32>
    %285 = vector.shape_cast %284 : vector<1x8x128xf32> to vector<8x128xf32>
    %286 = vector.shape_cast %282 : vector<8x128xf32> to vector<1x8x128xf32>
    tpu.vector_store %arg8[%283, %c0_100, %c0_101], %286 {strides = array<i32>} : memref<8x8x128xf32, #tpu.memory_space<vmem>>, vector<1x8x128xf32>,
    %c7_i32 = arith.constant 7 : i32
    %287 = arith.truncf %282 : vector<8x128xf32> to vector<8x128xbf16>
    %c0_102 = arith.constant 0 : index
    %c0_103 = arith.constant 0 : index
    %288 = vector.load %arg6[%c0_102, %c0_103] : memref<128x384xbf16, #tpu.memory_space<vmem>>, vector<128x384xbf16>
    %cst_104 = arith.constant dense<0.000000e+00> : vector<8x384xf32>
    %289 = tpu.matmul %287, %288, %cst_104 {dimension_numbers = #tpu.dot_dimension_numbers<[1], [0], [0], [1], [0, 0, 1, 1], [], []>} : vector<8x128xbf16>, vector<128x384xbf16>, vector<8x384xf32> -> vector<8x384xf32>
    %290 = vector.extract_strided_slice %289 {offsets = [0, 0], sizes = [8, 128], strides = [1, 1]} : vector<8x384xf32> to vector<8x128xf32>
    %291 = vector.extract_strided_slice %289 {offsets = [0, 128], sizes = [8, 128], strides = [1, 1]} : vector<8x384xf32> to vector<8x128xf32>
    %292 = vector.extract_strided_slice %289 {offsets = [0, 256], sizes = [8, 128], strides = [1, 1]} : vector<8x384xf32> to vector<8x128xf32>
    %293 = arith.index_cast %c7_i32 : i32 to index
    %c0_105 = arith.constant 0 : index
    %c0_106 = arith.constant 0 : index
    %294 = vector.load %arg2[%293, %c0_105, %c0_106] : memref<8x8x128xf32, #tpu.memory_space<vmem>>, vector<1x8x128xf32>
    %295 = vector.shape_cast %294 : vector<1x8x128xf32> to vector<8x128xf32>
    %296 = arith.addf %295, %290 : vector<8x128xf32>
    %297 = arith.negf %296 : vector<8x128xf32>
    %298 = math.exp %297 : vector<8x128xf32>
    %cst_107 = arith.constant 1.000000e+00 : f32
    %299 = vector.broadcast %cst_107 : f32 to vector<8x128xf32>
    %300 = arith.addf %299, %298 : vector<8x128xf32>
    %301 = arith.divf %299, %300 : vector<8x128xf32>
    %302 = arith.index_cast %c7_i32 : i32 to index
    %c0_108 = arith.constant 0 : index
    %c0_109 = arith.constant 0 : index
    %303 = vector.load %arg3[%302, %c0_108, %c0_109] : memref<8x8x128xf32, #tpu.memory_space<vmem>>, vector<1x8x128xf32>
    %304 = vector.shape_cast %303 : vector<1x8x128xf32> to vector<8x128xf32>
    %305 = arith.addf %304, %291 : vector<8x128xf32>
    %306 = arith.negf %305 : vector<8x128xf32>
    %307 = math.exp %306 : vector<8x128xf32>
    %cst_110 = arith.constant 1.000000e+00 : f32
    %308 = vector.broadcast %cst_110 : f32 to vector<8x128xf32>
    %309 = arith.addf %308, %307 : vector<8x128xf32>
    %310 = arith.divf %308, %309 : vector<8x128xf32>
    %311 = arith.index_cast %c7_i32 : i32 to index
    %c0_111 = arith.constant 0 : index
    %c0_112 = arith.constant 0 : index
    %312 = vector.load %arg4[%311, %c0_111, %c0_112] : memref<8x8x128xf32, #tpu.memory_space<vmem>>, vector<1x8x128xf32>
    %313 = vector.shape_cast %312 : vector<1x8x128xf32> to vector<8x128xf32>
    %314 = arith.addf %292, %5 : vector<8x128xf32>
    %315 = arith.mulf %301, %314 : vector<8x128xf32>
    %316 = arith.addf %313, %315 : vector<8x128xf32>
    %317 = math.tanh %316 : vector<8x128xf32>
    %cst_113 = arith.constant 1.000000e+00 : f32
    %318 = vector.broadcast %cst_113 : f32 to vector<8x128xf32>
    %319 = arith.subf %318, %310 : vector<8x128xf32>
    %320 = arith.mulf %319, %317 : vector<8x128xf32>
    %321 = arith.mulf %310, %282 : vector<8x128xf32>
    %322 = arith.addf %320, %321 : vector<8x128xf32>
    %323 = arith.index_cast %c7_i32 : i32 to index
    %c0_114 = arith.constant 0 : index
    %c0_115 = arith.constant 0 : index
    %324 = vector.load %arg8[%323, %c0_114, %c0_115] : memref<8x8x128xf32, #tpu.memory_space<vmem>>, vector<1x8x128xf32>
    %325 = vector.shape_cast %324 : vector<1x8x128xf32> to vector<8x128xf32>
    %326 = vector.shape_cast %322 : vector<8x128xf32> to vector<1x8x128xf32>
    tpu.vector_store %arg8[%323, %c0_114, %c0_115], %326 {strides = array<i32>} : memref<8x8x128xf32, #tpu.memory_space<vmem>>, vector<1x8x128xf32>,
    %c8_i32 = arith.constant 8 : i32
    %c0_116 = arith.constant 0 : index
    %c0_117 = arith.constant 0 : index
    %327 = vector.load %arg9[%c0_116, %c0_117] : memref<8x128xf32, #tpu.memory_space<vmem>>, vector<8x128xf32>
    tpu.vector_store %arg9[%c0_116, %c0_117], %322 {strides = array<i32>} : memref<8x128xf32, #tpu.memory_space<vmem>>, vector<8x128xf32>,
    return
  }
  func.func @transform_0(%arg0: i32, %arg1: i32) -> (i32, i32, i32) {
    %c0_i32 = arith.constant 0 : i32
    %c0_i32_0 = arith.constant 0 : i32
    return %arg1, %arg0, %c0_i32 : i32, i32, i32
  }
  func.func @transform_1(%arg0: i32, %arg1: i32) -> (i32, i32, i32) {
    %c0_i32 = arith.constant 0 : i32
    %c0_i32_0 = arith.constant 0 : i32
    return %arg1, %arg0, %c0_i32 : i32, i32, i32
  }
  func.func @transform_2(%arg0: i32, %arg1: i32) -> (i32, i32, i32) {
    %c0_i32 = arith.constant 0 : i32
    %c0_i32_0 = arith.constant 0 : i32
    return %arg1, %arg0, %c0_i32 : i32, i32, i32
  }
  func.func @transform_3(%arg0: i32, %arg1: i32) -> (i32, i32) {
    %c0_i32 = arith.constant 0 : i32
    %c0_i32_0 = arith.constant 0 : i32
    return %arg0, %c0_i32 : i32, i32
  }
  func.func @transform_4(%arg0: i32, %arg1: i32) -> (i32, i32) {
    %c0_i32 = arith.constant 0 : i32
    %c0_i32_0 = arith.constant 0 : i32
    %c0_i32_1 = arith.constant 0 : i32
    return %c0_i32, %c0_i32_0 : i32, i32
  }
  func.func @transform_5(%arg0: i32, %arg1: i32) -> (i32, i32) {
    %c0_i32 = arith.constant 0 : i32
    %c0_i32_0 = arith.constant 0 : i32
    %c0_i32_1 = arith.constant 0 : i32
    return %c0_i32, %c0_i32_0 : i32, i32
  }
  func.func @transform_6(%arg0: i32, %arg1: i32) -> (i32, i32, i32) {
    %c0_i32 = arith.constant 0 : i32
    %c0_i32_0 = arith.constant 0 : i32
    return %arg1, %arg0, %c0_i32 : i32, i32, i32
  }
}

module attributes {stable_mosaic.version = 11 : i64} {
  func.func @_head_kernel(%arg0: i32, %arg1: memref<64x128xf32, #tpu.memory_space<vmem>>, %arg2: memref<128x128xbf16, #tpu.memory_space<vmem>>, %arg3: memref<1x128xf32, #tpu.memory_space<vmem>>, %arg4: memref<128x128xbf16, #tpu.memory_space<vmem>>, %arg5: memref<1x128xf32, #tpu.memory_space<vmem>>, %arg6: memref<1x128xf32, #tpu.memory_space<vmem>>, %arg7: memref<1x1xf32, #tpu.memory_space<vmem>>, %arg8: memref<64x128xf32, #tpu.memory_space<vmem>>, %arg9: memref<64x128xf32, #tpu.memory_space<vmem>>, %arg10: memref<64x128xf32, #tpu.memory_space<vmem>>) attributes {dimension_semantics = [#tpu.dimension_semantics<parallel>], iteration_bounds = array<i64: 1>, scalar_prefetch = 0 : i64, scratch_operands = 0 : i64, tpu.core_type = #tpu.core_type<tc>, window_params = [{transform_indices = @transform_0, window_bounds = array<i64: 64, 128>}, {pipeline_mode = #tpu.pipeline_mode<synchronous>, transform_indices = @transform_1, window_bounds = array<i64: 128, 128>}, {pipeline_mode = #tpu.pipeline_mode<synchronous>, transform_indices = @transform_2, window_bounds = array<i64: 1, 128>}, {pipeline_mode = #tpu.pipeline_mode<synchronous>, transform_indices = @transform_3, window_bounds = array<i64: 128, 128>}, {pipeline_mode = #tpu.pipeline_mode<synchronous>, transform_indices = @transform_4, window_bounds = array<i64: 1, 128>}, {pipeline_mode = #tpu.pipeline_mode<synchronous>, transform_indices = @transform_5, window_bounds = array<i64: 1, 128>}, {pipeline_mode = #tpu.pipeline_mode<synchronous>, transform_indices = @transform_6, window_bounds = array<i64: 1, 1>}, {transform_indices = @transform_7, window_bounds = array<i64: 64, 128>}, {transform_indices = @transform_8, window_bounds = array<i64: 64, 128>}, {transform_indices = @transform_9, window_bounds = array<i64: 64, 128>}]} {
    %c0 = arith.constant 0 : index
    %c0_0 = arith.constant 0 : index
    %0 = vector.load %arg1[%c0, %c0_0] : memref<64x128xf32, #tpu.memory_space<vmem>>, vector<64x128xf32>
    %1 = arith.truncf %0 : vector<64x128xf32> to vector<64x128xbf16>
    %c0_1 = arith.constant 0 : index
    %c0_2 = arith.constant 0 : index
    %2 = vector.load %arg2[%c0_1, %c0_2] : memref<128x128xbf16, #tpu.memory_space<vmem>>, vector<128x128xbf16>
    %cst = arith.constant dense<0.000000e+00> : vector<64x128xf32>
    %3 = tpu.matmul %1, %2, %cst {dimension_numbers = #tpu.dot_dimension_numbers<[1], [0], [0], [1], [0, 0, 1, 1], [], []>} : vector<64x128xbf16>, vector<128x128xbf16>, vector<64x128xf32> -> vector<64x128xf32>
    %c0_3 = arith.constant 0 : index
    %c0_4 = arith.constant 0 : index
    %4 = vector.load %arg3[%c0_3, %c0_4] : memref<1x128xf32, #tpu.memory_space<vmem>>, vector<1x128xf32>
    %5 = vector.broadcast %4 : vector<1x128xf32> to vector<64x128xf32>
    %6 = arith.addf %3, %5 : vector<64x128xf32>
    %c0_5 = arith.constant 0 : index
    %c0_6 = arith.constant 0 : index
    %7 = vector.load %arg8[%c0_5, %c0_6] : memref<64x128xf32, #tpu.memory_space<vmem>>, vector<64x128xf32>
    tpu.vector_store %arg8[%c0_5, %c0_6], %6 {strides = array<i32>} : memref<64x128xf32, #tpu.memory_space<vmem>>, vector<64x128xf32>,
    %cst_7 = arith.constant dense<0xFF800000> : vector<64xf32>
    %8 = vector.multi_reduction <maximumf>, %6, %cst_7 [1] : vector<64x128xf32> to vector<64xf32>
    %9 = vector.shape_cast %8 : vector<64xf32> to vector<64x1xf32>
    %10 = vector.broadcast %9 : vector<64x1xf32> to vector<64x128xf32>
    %11 = arith.subf %6, %10 : vector<64x128xf32>
    %12 = math.exp %11 : vector<64x128xf32>
    %cst_8 = arith.constant dense<0.000000e+00> : vector<64xf32>
    %13 = vector.multi_reduction <add>, %12, %cst_8 [1] : vector<64x128xf32> to vector<64xf32>
    %14 = vector.shape_cast %13 : vector<64xf32> to vector<64x1xf32>
    %15 = vector.broadcast %14 : vector<64x1xf32> to vector<64x128xf32>
    %16 = arith.divf %12, %15 : vector<64x128xf32>
    %c0_9 = arith.constant 0 : index
    %c0_10 = arith.constant 0 : index
    %17 = vector.load %arg9[%c0_9, %c0_10] : memref<64x128xf32, #tpu.memory_space<vmem>>, vector<64x128xf32>
    tpu.vector_store %arg9[%c0_9, %c0_10], %16 {strides = array<i32>} : memref<64x128xf32, #tpu.memory_space<vmem>>, vector<64x128xf32>,
    %18 = arith.truncf %16 : vector<64x128xf32> to vector<64x128xbf16>
    %c0_11 = arith.constant 0 : index
    %c0_12 = arith.constant 0 : index
    %19 = vector.load %arg4[%c0_11, %c0_12] : memref<128x128xbf16, #tpu.memory_space<vmem>>, vector<128x128xbf16>
    %cst_13 = arith.constant dense<0.000000e+00> : vector<64x128xf32>
    %20 = tpu.matmul %18, %19, %cst_13 {dimension_numbers = #tpu.dot_dimension_numbers<[1], [0], [0], [1], [0, 0, 1, 1], [], []>} : vector<64x128xbf16>, vector<128x128xbf16>, vector<64x128xf32> -> vector<64x128xf32>
    %c0_14 = arith.constant 0 : index
    %c0_15 = arith.constant 0 : index
    %21 = vector.load %arg5[%c0_14, %c0_15] : memref<1x128xf32, #tpu.memory_space<vmem>>, vector<1x128xf32>
    %22 = vector.broadcast %21 : vector<1x128xf32> to vector<64x128xf32>
    %23 = arith.addf %20, %22 : vector<64x128xf32>
    %cst_16 = arith.constant 0.000000e+00 : f32
    %24 = vector.broadcast %cst_16 : f32 to vector<64x128xf32>
    %25 = arith.maximumf %23, %24 : vector<64x128xf32>
    %c0_17 = arith.constant 0 : index
    %c0_18 = arith.constant 0 : index
    %26 = vector.load %arg6[%c0_17, %c0_18] : memref<1x128xf32, #tpu.memory_space<vmem>>, vector<1x128xf32>
    %27 = vector.broadcast %26 : vector<1x128xf32> to vector<64x128xf32>
    %28 = arith.mulf %25, %27 : vector<64x128xf32>
    %cst_19 = arith.constant dense<0.000000e+00> : vector<64xf32>
    %29 = vector.multi_reduction <add>, %28, %cst_19 [1] : vector<64x128xf32> to vector<64xf32>
    %30 = vector.shape_cast %29 : vector<64xf32> to vector<64x1xf32>
    %c0_20 = arith.constant 0 : index
    %c0_21 = arith.constant 0 : index
    %31 = vector.load %arg7[%c0_20, %c0_21] : memref<1x1xf32, #tpu.memory_space<vmem>>, vector<1x1xf32>
    %32 = vector.broadcast %31 : vector<1x1xf32> to vector<64x1xf32>
    %33 = arith.addf %30, %32 : vector<64x1xf32>
    %34 = arith.negf %33 : vector<64x1xf32>
    %35 = math.exp %34 : vector<64x1xf32>
    %cst_22 = arith.constant 1.000000e+00 : f32
    %36 = vector.broadcast %cst_22 : f32 to vector<64x1xf32>
    %37 = arith.addf %36, %35 : vector<64x1xf32>
    %38 = arith.divf %36, %37 : vector<64x1xf32>
    %39 = vector.shape_cast %38 : vector<64x1xf32> to vector<64x1xf32>
    %40 = vector.broadcast %39 : vector<64x1xf32> to vector<64x128xf32>
    %c0_23 = arith.constant 0 : index
    %c0_24 = arith.constant 0 : index
    %41 = vector.load %arg10[%c0_23, %c0_24] : memref<64x128xf32, #tpu.memory_space<vmem>>, vector<64x128xf32>
    tpu.vector_store %arg10[%c0_23, %c0_24], %40 {strides = array<i32>} : memref<64x128xf32, #tpu.memory_space<vmem>>, vector<64x128xf32>,
    return
  }
  func.func @transform_0(%arg0: i32) -> (i32, i32) {
    %c0_i32 = arith.constant 0 : i32
    %c0_i32_0 = arith.constant 0 : i32
    return %arg0, %c0_i32 : i32, i32
  }
  func.func @transform_1(%arg0: i32) -> (i32, i32) {
    %c0_i32 = arith.constant 0 : i32
    %c0_i32_0 = arith.constant 0 : i32
    %c0_i32_1 = arith.constant 0 : i32
    return %c0_i32, %c0_i32_0 : i32, i32
  }
  func.func @transform_2(%arg0: i32) -> (i32, i32) {
    %c0_i32 = arith.constant 0 : i32
    %c0_i32_0 = arith.constant 0 : i32
    %c0_i32_1 = arith.constant 0 : i32
    return %c0_i32, %c0_i32_0 : i32, i32
  }
  func.func @transform_3(%arg0: i32) -> (i32, i32) {
    %c0_i32 = arith.constant 0 : i32
    %c0_i32_0 = arith.constant 0 : i32
    %c0_i32_1 = arith.constant 0 : i32
    return %c0_i32, %c0_i32_0 : i32, i32
  }
  func.func @transform_4(%arg0: i32) -> (i32, i32) {
    %c0_i32 = arith.constant 0 : i32
    %c0_i32_0 = arith.constant 0 : i32
    %c0_i32_1 = arith.constant 0 : i32
    return %c0_i32, %c0_i32_0 : i32, i32
  }
  func.func @transform_5(%arg0: i32) -> (i32, i32) {
    %c0_i32 = arith.constant 0 : i32
    %c0_i32_0 = arith.constant 0 : i32
    %c0_i32_1 = arith.constant 0 : i32
    return %c0_i32, %c0_i32_0 : i32, i32
  }
  func.func @transform_6(%arg0: i32) -> (i32, i32) {
    %c0_i32 = arith.constant 0 : i32
    %c0_i32_0 = arith.constant 0 : i32
    %c0_i32_1 = arith.constant 0 : i32
    return %c0_i32, %c0_i32_0 : i32, i32
  }
  func.func @transform_7(%arg0: i32) -> (i32, i32) {
    %c0_i32 = arith.constant 0 : i32
    %c0_i32_0 = arith.constant 0 : i32
    return %arg0, %c0_i32 : i32, i32
  }
  func.func @transform_8(%arg0: i32) -> (i32, i32) {
    %c0_i32 = arith.constant 0 : i32
    %c0_i32_0 = arith.constant 0 : i32
    return %arg0, %c0_i32 : i32, i32
  }
  func.func @transform_9(%arg0: i32) -> (i32, i32) {
    %c0_i32 = arith.constant 0 : i32
    %c0_i32_0 = arith.constant 0 : i32
    return %arg0, %c0_i32 : i32, i32
  }
}

</mosaic_0001>

<llo_original>
// kernel: evid_gru_forward.3
$region0: #{evid_gru_forward.3}
  #allocation0 [shape = 'u32[]', space=smem, size = 0x4, offset = 0x4, fixed_abs, tag = 'smem constant byte address 0x4 - core index']
  #allocation1 [shape = 'u32[144,128]{1,0:T(1,128)}', space=vmem, size = 0x12000, scoped, tag = 'internal scratch']
  %s0 = inlined_call_operand.vmem [shape: bf16[64,16], index: 0, kind: input, shape index: {}]
  %s1 = inlined_call_operand.vmem [shape: bf16[16,384], index: 1, kind: input, shape index: {}]
  %s2 = inlined_call_operand.vmem [shape: f32[1,128], index: 2, kind: input, shape index: {}]
  %s3 = inlined_call_operand.vmem [shape: f32[1,128], index: 3, kind: input, shape index: {}]
  %s4 = inlined_call_operand.vmem [shape: f32[1,128], index: 4, kind: input, shape index: {}]
  %s5 = inlined_call_operand.vmem [shape: f32[64,128], index: 5, kind: output, shape index: {0}]
  %s6 = inlined_call_operand.vmem [shape: f32[64,128], index: 6, kind: output, shape index: {1}]
  %s7 = inlined_call_operand.vmem [shape: f32[64,128], index: 7, kind: output, shape index: {2}]
  %8 = xla_tuple %s5, %s6, %s7
  %s9 = sld [smem:[#allocation0]]
  $region46: #{evid_gru_forward.3} parent=0
    _
  %s11 = ssub.s32 1, %s9
  %s12 = scalar_select 0, %s11, %s9
  // Predicated region
  $region2: #{evid_gru_forward.3} parent=0 // pred_check
    _
  $region3: #{evid_gru_forward.3} parent=0 // pred_check_branch
    %14 = sbr.rel (0) target = $region5
  $region4: #{evid_gru_forward.3} parent=0 // pred_region
    _
  $region5: #{evid_gru_forward.3} parent=0 // pred_fallthru
    _
  // Predicated region
  $region6: #{evid_gru_forward.3} parent=0 // pred_check
    _
  $region7: #{evid_gru_forward.3} parent=0 // pred_check_branch
    %16 = sbr.rel (0) target = $region9
  $region8: #{evid_gru_forward.3} parent=0 // pred_region
    _
  $region9: #{evid_gru_forward.3} parent=0 // pred_fallthru
    _
  // Predicated region
  $region10: #{evid_gru_forward.3} parent=0 // pred_check
    _
  $region11: #{evid_gru_forward.3} parent=0 // pred_check_branch
    %18 = sbr.rel (0) target = $region13
  $region12: #{evid_gru_forward.3} parent=0 // pred_region
    _
  $region13: #{evid_gru_forward.3} parent=0 // pred_fallthru
    _
  // Predicated region
  $region14: #{evid_gru_forward.3} parent=0 // pred_check
    _
  $region15: #{evid_gru_forward.3} parent=0 // pred_check_branch
    %20 = sbr.rel (0) target = $region17
  $region16: #{evid_gru_forward.3} parent=0 // pred_region
    _
  $region17: #{evid_gru_forward.3} parent=0 // pred_fallthru
    _
  // Predicated region
  $region18: #{evid_gru_forward.3} parent=0 // pred_check
    _
  $region19: #{evid_gru_forward.3} parent=0 // pred_check_branch
    %22 = sbr.rel (0) target = $region21
  $region20: #{evid_gru_forward.3} parent=0 // pred_region
    _
  $region21: #{evid_gru_forward.3} parent=0 // pred_fallthru
    _
  %v24 = vld [vmem:[%s0] sm:$0xf]
  %v25 = vld [vmem:[%s0 + $0x4] sm:$0xf]
  %v26 = vld [vmem:[%s0 + $0x8] sm:$0xf]
  %v27 = vld [vmem:[%s0 + $0xc] sm:$0xf]
  %v28 = vld [vmem:[%s0 + $0x10] sm:$0xf]
  %v29 = vld [vmem:[%s0 + $0x14] sm:$0xf]
  %v30 = vld [vmem:[%s0 + $0x18] sm:$0xf]
  %v31 = vld [vmem:[%s0 + $0x1c] sm:$0xf]
  %v32 = vld [vmem:[%s1] sm:$0xff]
  %v33 = vld [vmem:[%s1 + $0x8] sm:$0xf]
  %v34 = vld [vmem:[%s1 + $0xc] sm:$0xff]
  %v35 = vld [vmem:[%s1 + $0x14] sm:$0xf]
  %v44 = vunpack.c.l.b16 %v24
  %v45 = vunpack.c.l.b16 %v25
  %v46 = vunpack.c.l.b16 %v26
  %v47 = vunpack.c.l.b16 %v27
  %v48 = vunpack.c.l.b16 %v28
  %v49 = vunpack.c.l.b16 %v29
  %v50 = vunpack.c.l.b16 %v30
  %v51 = vunpack.c.l.b16 %v31
  %v52 = vpack.c.b16 %v45, %v44
  %v53 = vpack.c.b16 %v47, %v46
  %v54 = vpack.c.b16 %v49, %v48
  %v55 = vpack.c.b16 %v51, %v50
  %v60 = vunpack.c.l.b16 %v32
  %v61 = vunpack.c.h.b16 %v32
  %v62 = vunpack.c.l.b16 %v33
  %v63 = vunpack.c.l.b16 %v34
  %v64 = vunpack.c.h.b16 %v34
  %v65 = vunpack.c.l.b16 %v35
  %v66 = vpack.c.b16 %v63, %v60
  %v67 = vpack.c.b16 %v64, %v61
  %v68 = vpack.c.b16 %v65, %v62
  %vm72 = vcmask 130048
  %v74 = vsel %vm72, %v52, 0
  %v77 = vsel %vm72, %v53, 0
  %v80 = vsel %vm72, %v54, 0
  %v83 = vsel %vm72, %v55, 0
  %85 = vmatprep.subr.bf16.mxu0 %v67
  %86 = vmatpush1.bf16.msra.mxu0 %v66
  %87 = vmatprep.subr.bf16.mxu0 0
  %88 = vmatpush1.bf16.msra.mxu0 0
  %89 = vmatprep.subr.bf16.mxu0 0
  %90 = vmatpush1.bf16.msra.mxu0 0
  %91 = vmatprep.subr.bf16.mxu0 0
  %92 = vmatpush1.bf16.msra.mxu0 0
  %93 = vmatprep.subr.bf16.mxu0 0
  %94 = vmatpush1.bf16.msra.mxu0 0
  %95 = vmatprep.subr.bf16.mxu0 0
  %96 = vmatpush1.bf16.msra.mxu0 0
  %97 = vmatprep.subr.bf16.mxu0 0
  %98 = vmatpush1.bf16.msra.mxu0 0
  %99 = vmatprep.subr.bf16.mxu0 0
  %100 = vmatpush1.bf16.msra.mxu0 0
  %101 = vmatprep.subr.bf16.mxu0 0
  %102 = vmatpush1.bf16.msra.mxu0 0
  %103 = vmatprep.subr.bf16.mxu0 0
  %104 = vmatpush1.bf16.msra.mxu0 0
  %105 = vmatprep.subr.bf16.mxu0 0
  %106 = vmatpush1.bf16.msra.mxu0 0
  %107 = vmatprep.subr.bf16.mxu0 0
  %108 = vmatpush1.bf16.msra.mxu0 0
  %109 = vmatprep.subr.bf16.mxu0 0
  %110 = vmatpush1.bf16.msra.mxu0 0
  %111 = vmatprep.subr.bf16.mxu0 0
  %112 = vmatpush1.bf16.msra.mxu0 0
  %113 = vmatprep.subr.bf16.mxu0 0
  %114 = vmatpush1.bf16.msra.mxu0 0
  %115 = vmatprep.subr.bf16.mxu0 0
  %116 = vmatpush1.bf16.msra.mxu0 0
  %117 = vmatprep.mubr.bf16.mxu0 0
  %118 = vmatmul.mubr.bf16.gmra.mrb[0].mxu0 %v74
  %v119 = vpop.f32.mrb[0].mxu0
  %v120 = vadd.f32 0.0, %v119
  %v121 = vpop.f32.mrb[0].mxu0
  %v122 = vadd.f32 0.0, %v121
  %v123 = vpop.f32.mrb[0].mxu0
  %v124 = vadd.f32 0.0, %v123
  %v125 = vpop.f32.mrb[0].mxu0
  %v126 = vadd.f32 0.0, %v125
  %127 = vmatprep.mubr.bf16.mxu0 0
  %128 = vmatmul.mubr.bf16.gmra.mrb[0].mxu0 %v77
  %v129 = vpop.f32.mrb[0].mxu0
  %v130 = vadd.f32 0.0, %v129
  %v131 = vpop.f32.mrb[0].mxu0
  %v132 = vadd.f32 0.0, %v131
  %v133 = vpop.f32.mrb[0].mxu0
  %v134 = vadd.f32 0.0, %v133
  %v135 = vpop.f32.mrb[0].mxu0
  %v136 = vadd.f32 0.0, %v135
  %137 = vmatprep.mubr.bf16.mxu0 0
  %138 = vmatmul.mubr.bf16.gmra.mrb[0].mxu0 %v80
  %v139 = vpop.f32.mrb[0].mxu0
  %v140 = vadd.f32 0.0, %v139
  %v141 = vpop.f32.mrb[0].mxu0
  %v142 = vadd.f32 0.0, %v141
  %v143 = vpop.f32.mrb[0].mxu0
  %v144 = vadd.f32 0.0, %v143
  %v145 = vpop.f32.mrb[0].mxu0
  %v146 = vadd.f32 0.0, %v145
  %147 = vmatprep.mubr.bf16.mxu0 0
  %148 = vmatmul.mubr.bf16.gmra.mrb[0].mxu0 %v83
  %v149 = vpop.f32.mrb[0].mxu0
  %v150 = vadd.f32 0.0, %v149
  %v151 = vpop.f32.mrb[0].mxu0
  %v152 = vadd.f32 0.0, %v151
  %v153 = vpop.f32.mrb[0].mxu0
  %v154 = vadd.f32 0.0, %v153
  %v155 = vpop.f32.mrb[0].mxu0
  %v156 = vadd.f32 0.0, %v155
  %157 = vdwg.mxu0
  %158 = vmatprep.subr.bf16.mxu0 0
  %159 = vmatpush1.bf16.msra.mxu0 %v68
  %160 = vmatprep.subr.bf16.mxu0 0
  %161 = vmatpush1.bf16.msra.mxu0 0
  %162 = vmatprep.subr.bf16.mxu0 0
  %163 = vmatpush1.bf16.msra.mxu0 0
  %164 = vmatprep.subr.bf16.mxu0 0
  %165 = vmatpush1.bf16.msra.mxu0 0
  %166 = vmatprep.subr.bf16.mxu0 0
  %167 = vmatpush1.bf16.msra.mxu0 0
  %168 = vmatprep.subr.bf16.mxu0 0
  %169 = vmatpush1.bf16.msra.mxu0 0
  %170 = vmatprep.subr.bf16.mxu0 0
  %171 = vmatpush1.bf16.msra.mxu0 0
  %172 = vmatprep.subr.bf16.mxu0 0
  %173 = vmatpush1.bf16.msra.mxu0 0
  %174 = vmatprep.subr.bf16.mxu0 0
  %175 = vmatpush1.bf16.msra.mxu0 0
  %176 = vmatprep.subr.bf16.mxu0 0
  %177 = vmatpush1.bf16.msra.mxu0 0
  %178 = vmatprep.subr.bf16.mxu0 0
  %179 = vmatpush1.bf16.msra.mxu0 0
  %180 = vmatprep.subr.bf16.mxu0 0
  %181 = vmatpush1.bf16.msra.mxu0 0
  %182 = vmatprep.subr.bf16.mxu0 0
  %183 = vmatpush1.bf16.msra.mxu0 0
  %184 = vmatprep.subr.bf16.mxu0 0
  %185 = vmatpush1.bf16.msra.mxu0 0
  %186 = vmatprep.subr.bf16.mxu0 0
  %187 = vmatpush1.bf16.msra.mxu0 0
  %188 = vmatprep.subr.bf16.mxu0 0
  %189 = vmatpush1.bf16.msra.mxu0 0
  %190 = vmatprep.mubr.bf16.mxu0 0
  %191 = vmatmul.mubr.bf16.gmra.mrb[0].mxu0 %v74
  %v192 = vpop.f32.mrb[0].mxu0
  %v193 = vadd.f32 0.0, %v192
  %v194 = vpop.f32.mrb[0].mxu0
  %v195 = vpop.f32.mrb[0].mxu0
  %v196 = vadd.f32 0.0, %v195
  %v197 = vpop.f32.mrb[0].mxu0
  %198 = vmatprep.mubr.bf16.mxu0 0
  %199 = vmatmul.mubr.bf16.gmra.mrb[0].mxu0 %v77
  %v200 = vpop.f32.mrb[0].mxu0
  %v201 = vadd.f32 0.0, %v200
  %v202 = vpop.f32.mrb[0].mxu0
  %v203 = vpop.f32.mrb[0].mxu0
  %v204 = vadd.f32 0.0, %v203
  %v205 = vpop.f32.mrb[0].mxu0
  %206 = vmatprep.mubr.bf16.mxu0 0
  %207 = vmatmul.mubr.bf16.gmra.mrb[0].mxu0 %v80
  %v208 = vpop.f32.mrb[0].mxu0
  %v209 = vadd.f32 0.0, %v208
  %v210 = vpop.f32.mrb[0].mxu0
  %v211 = vpop.f32.mrb[0].mxu0
  %v212 = vadd.f32 0.0, %v211
  %v213 = vpop.f32.mrb[0].mxu0
  %214 = vmatprep.mubr.bf16.mxu0 0
  %215 = vmatmul.mubr.bf16.gmra.mrb[0].mxu0 %v83
  %v216 = vpop.f32.mrb[0].mxu0
  %v217 = vadd.f32 0.0, %v216
  %v218 = vpop.f32.mrb[0].mxu0
  %v219 = vpop.f32.mrb[0].mxu0
  %v220 = vadd.f32 0.0, %v219
  %v221 = vpop.f32.mrb[0].mxu0
  %222 = vdwg.mxu0
  %v223 = vld [vmem:[%s2] sm:$0x1]
  %v225 = vlaneseq
  %v226 = vshrl.u32 %v225, 7
  %v227 = vsub.s32 0, %v226
  %v228 = vrot.slane %v223, %v227
  %v230 = vadd.f32 %v120, %v228
  %v231 = vadd.f32 %v124, %v228
  %v232 = vadd.f32 %v130, %v228
  %v233 = vadd.f32 %v134, %v228
  %v234 = vadd.f32 %v140, %v228
  %v235 = vadd.f32 %v144, %v228
  %v236 = vadd.f32 %v150, %v228
  %v237 = vadd.f32 %v154, %v228
  %238 = vst [vmem:[%s5] sm:$0xff] %v230
  %239 = vst [vmem:[%s5 + $0x8] sm:$0xff] %v231
  %240 = vst [vmem:[%s5 + $0x10] sm:$0xff] %v232
  %241 = vst [vmem:[%s5 + $0x18] sm:$0xff] %v233
  %242 = vst [vmem:[%s5 + $0x20] sm:$0xff] %v234
  %243 = vst [vmem:[%s5 + $0x28] sm:$0xff] %v235
  %244 = vst [vmem:[%s5 + $0x30] sm:$0xff] %v236
  %245 = vst [vmem:[%s5 + $0x38] sm:$0xff] %v237
  %v246 = vld [vmem:[%s3] sm:$0x1]
  %v248 = vlaneseq
  %v249 = vshrl.u32 %v248, 7
  %v250 = vsub.s32 0, %v249
  %v251 = vrot.slane %v246, %v250
  %v253 = vadd.f32 %v122, %v251
  %v254 = vadd.f32 %v126, %v251
  %v255 = vadd.f32 %v132, %v251
  %v256 = vadd.f32 %v136, %v251
  %v257 = vadd.f32 %v142, %v251
  %v258 = vadd.f32 %v146, %v251
  %v259 = vadd.f32 %v152, %v251
  %v260 = vadd.f32 %v156, %v251
  %261 = vst [vmem:[%s6] sm:$0xff] %v253
  %262 = vst [vmem:[%s6 + $0x8] sm:$0xff] %v254
  %263 = vst [vmem:[%s6 + $0x10] sm:$0xff] %v255
  %264 = vst [vmem:[%s6 + $0x18] sm:$0xff] %v256
  %265 = vst [vmem:[%s6 + $0x20] sm:$0xff] %v257
  %266 = vst [vmem:[%s6 + $0x28] sm:$0xff] %v258
  %267 = vst [vmem:[%s6 + $0x30] sm:$0xff] %v259
  %268 = vst [vmem:[%s6 + $0x38] sm:$0xff] %v260
  %v269 = vld [vmem:[%s4] sm:$0x1]
  %v271 = vlaneseq
  %v272 = vshrl.u32 %v271, 7
  %v273 = vsub.s32 0, %v272
  %v274 = vrot.slane %v269, %v273
  %v276 = vadd.f32 %v193, %v274
  %v277 = vadd.f32 %v196, %v274
  %v278 = vadd.f32 %v201, %v274
  %v279 = vadd.f32 %v204, %v274
  %v280 = vadd.f32 %v209, %v274
  %v281 = vadd.f32 %v212, %v274
  %v282 = vadd.f32 %v217, %v274
  %v283 = vadd.f32 %v220, %v274
  %284 = vst [vmem:[%s7] sm:$0xff] %v276
  %285 = vst [vmem:[%s7 + $0x8] sm:$0xff] %v277
  %286 = vst [vmem:[%s7 + $0x10] sm:$0xff] %v278
  %287 = vst [vmem:[%s7 + $0x18] sm:$0xff] %v279
  %288 = vst [vmem:[%s7 + $0x20] sm:$0xff] %v280
  %289 = vst [vmem:[%s7 + $0x28] sm:$0xff] %v281
  %290 = vst [vmem:[%s7 + $0x30] sm:$0xff] %v282
  %291 = vst [vmem:[%s7 + $0x38] sm:$0xff] %v283
  // Predicated region
  $region22: #{evid_gru_forward.3} parent=0 // pred_check
    _
  $region23: #{evid_gru_forward.3} parent=0 // pred_check_branch
    %293 = sbr.rel (0) target = $region25
  $region24: #{evid_gru_forward.3} parent=0 // pred_region
    _
  $region25: #{evid_gru_forward.3} parent=0 // pred_fallthru
    _
  // Predicated region
  $region26: #{evid_gru_forward.3} parent=0 // pred_check
    _
  $region27: #{evid_gru_forward.3} parent=0 // pred_check_branch
    %295 = sbr.rel (0) target = $region29
  $region28: #{evid_gru_forward.3} parent=0 // pred_region
    _
  $region29: #{evid_gru_forward.3} parent=0 // pred_fallthru
    _
  // Predicated region
  $region30: #{evid_gru_forward.3} parent=0 // pred_check
    _
  $region31: #{evid_gru_forward.3} parent=0 // pred_check_branch
    %297 = sbr.rel (0) target = $region33
  $region32: #{evid_gru_forward.3} parent=0 // pred_region
    _
  $region33: #{evid_gru_forward.3} parent=0 // pred_fallthru
    _
  // Predicated region
  $region34: #{evid_gru_forward.3} parent=0 // pred_check
    _
  $region35: #{evid_gru_forward.3} parent=0 // pred_check_branch
    %299 = sbr.rel (0) target = $region37
  $region36: #{evid_gru_forward.3} parent=0 // pred_region
    _
  $region37: #{evid_gru_forward.3} parent=0 // pred_fallthru
    _
  // Predicated region
  $region38: #{evid_gru_forward.3} parent=0 // pred_check
    _
  $region39: #{evid_gru_forward.3} parent=0 // pred_check_branch
    %301 = sbr.rel (0) target = $region41
  $region40: #{evid_gru_forward.3} parent=0 // pred_region
    _
  $region41: #{evid_gru_forward.3} parent=0 // pred_fallthru
    _
  // Predicated region
  $region42: #{evid_gru_forward.3} parent=0 // pred_check
    _
  $region43: #{evid_gru_forward.3} parent=0 // pred_check_branch
    %303 = sbr.rel (0) target = $region45
  $region44: #{evid_gru_forward.3} parent=0 // pred_region
    _
  $region45: #{evid_gru_forward.3} parent=0 // pred_fallthru
    _

// kernel: evid_gru_forward.5
$region0: #{evid_gru_forward.5}
  #allocation0 [shape = 'u32[]', space=smem, size = 0x4, offset = 0x4, fixed_abs, tag = 'smem constant byte address 0x4 - core index']
  #allocation1 [shape = 'u32[144,128]{1,0:T(1,128)}', space=vmem, size = 0x12000, scoped, tag = 'internal scratch']
  #allocation2 [shape = 'f32[1,1]{1,0:T(1,128)S(1)}', space=vmem, size = 0x200, scoped, tag = 'scoped memory for evid_gru_forward.5']
  %s0 = inlined_call_operand.vmem [shape: f32[64,128], index: 0, kind: input, shape index: {}]
  %s1 = inlined_call_operand.vmem [shape: bf16[128,128], index: 1, kind: input, shape index: {}]
  %s2 = inlined_call_operand.vmem [shape: f32[1,128], index: 2, kind: input, shape index: {}]
  %s3 = inlined_call_operand.vmem [shape: bf16[128,128], index: 3, kind: input, shape index: {}]
  %s4 = inlined_call_operand.vmem [shape: f32[1,128], index: 4, kind: input, shape index: {}]
  %s5 = inlined_call_operand.vmem [shape: f32[1,128], index: 5, kind: input, shape index: {}]
  %s6 = inlined_call_operand.<no memory space> [shape: f32[1,1], index: 6, kind: input, shape index: {}]
  %s7 = inlined_call_operand.vmem [shape: f32[64,128], index: 7, kind: output, shape index: {0}]
  %s8 = inlined_call_operand.vmem [shape: f32[64,128], index: 8, kind: output, shape index: {1}]
  %s9 = inlined_call_operand.vmem [shape: f32[64,128], index: 9, kind: output, shape index: {2}]
  %10 = xla_tuple %s7, %s8, %s9
  %s11 = sld [smem:[#allocation0]]
  $region54: #{evid_gru_forward.5} parent=0
    _
  %s13 = ssub.s32 1, %s11
  %s14 = scalar_select 0, %s13, %s11
  %v15 = vstv %s6
  %16 = vst [vmem:[#allocation2] sm:$0x1] %v15
  // Predicated region
  $region2: #{evid_gru_forward.5} parent=0 // pred_check
    _
  $region3: #{evid_gru_forward.5} parent=0 // pred_check_branch
    %18 = sbr.rel (0) target = $region5
  $region4: #{evid_gru_forward.5} parent=0 // pred_region
    _
  $region5: #{evid_gru_forward.5} parent=0 // pred_fallthru
    _
  // Predicated region
  $region6: #{evid_gru_forward.5} parent=0 // pred_check
    _
  $region7: #{evid_gru_forward.5} parent=0 // pred_check_branch
    %20 = sbr.rel (0) target = $region9
  $region8: #{evid_gru_forward.5} parent=0 // pred_region
    _
  $region9: #{evid_gru_forward.5} parent=0 // pred_fallthru
    _
  // Predicated region
  $region10: #{evid_gru_forward.5} parent=0 // pred_check
    _
  $region11: #{evid_gru_forward.5} parent=0 // pred_check_branch
    %22 = sbr.rel (0) target = $region13
  $region12: #{evid_gru_forward.5} parent=0 // pred_region
    _
  $region13: #{evid_gru_forward.5} parent=0 // pred_fallthru
    _
  // Predicated region
  $region14: #{evid_gru_forward.5} parent=0 // pred_check
    _
  $region15: #{evid_gru_forward.5} parent=0 // pred_check_branch
    %24 = sbr.rel (0) target = $region17
  $region16: #{evid_gru_forward.5} parent=0 // pred_region
    _
  $region17: #{evid_gru_forward.5} parent=0 // pred_fallthru
    _
  // Predicated region
  $region18: #{evid_gru_forward.5} parent=0 // pred_check
    _
  $region19: #{evid_gru_forward.5} parent=0 // pred_check_branch
    %26 = sbr.rel (0) target = $region21
  $region20: #{evid_gru_forward.5} parent=0 // pred_region
    _
  $region21: #{evid_gru_forward.5} parent=0 // pred_fallthru
    _
  // Predicated region
  $region22: #{evid_gru_forward.5} parent=0 // pred_check
    _
  $region23: #{evid_gru_forward.5} parent=0 // pred_check_branch
    %28 = sbr.rel (0) target = $region25
  $region24: #{evid_gru_forward.5} parent=0 // pred_region
    _
  $region25: #{evid_gru_forward.5} parent=0 // pred_fallthru
    _
  // Predicated region
  $region26: #{evid_gru_forward.5} parent=0 // pred_check
    _
  $region27: #{evid_gru_forward.5} parent=0 // pred_check_branch
    %30 = sbr.rel (0) target = $region29
  $region28: #{evid_gru_forward.5} parent=0 // pred_region
    _
  $region29: #{evid_gru_forward.5} parent=0 // pred_fallthru
    _
  %v32 = vld [vmem:[%s0] sm:$0xff]
  %v33 = vld [vmem:[%s0 + $0x8] sm:$0xff]
  %v34 = vld [vmem:[%s0 + $0x10] sm:$0xff]
  %v35 = vld [vmem:[%s0 + $0x18] sm:$0xff]
  %v36 = vld [vmem:[%s0 + $0x20] sm:$0xff]
  %v37 = vld [vmem:[%s0 + $0x28] sm:$0xff]
  %v38 = vld [vmem:[%s0 + $0x30] sm:$0xff]
  %v39 = vld [vmem:[%s0 + $0x38] sm:$0xff]
  %v40 = vpack.c.bf16 %v33, %v32
  %v41 = vpack.c.bf16 %v35, %v34
  %v42 = vpack.c.bf16 %v37, %v36
  %v43 = vpack.c.bf16 %v39, %v38
  %v44 = vld [vmem:[%s1] sm:$0xf]
  %v45 = vld [vmem:[%s1 + $0x4] sm:$0xf]
  %v46 = vld [vmem:[%s1 + $0x8] sm:$0xf]
  %v47 = vld [vmem:[%s1 + $0xc] sm:$0xf]
  %v48 = vld [vmem:[%s1 + $0x10] sm:$0xf]
  %v49 = vld [vmem:[%s1 + $0x14] sm:$0xf]
  %v50 = vld [vmem:[%s1 + $0x18] sm:$0xf]
  %v51 = vld [vmem:[%s1 + $0x1c] sm:$0xf]
  %v52 = vld [vmem:[%s1 + $0x20] sm:$0xf]
  %v53 = vld [vmem:[%s1 + $0x24] sm:$0xf]
  %v54 = vld [vmem:[%s1 + $0x28] sm:$0xf]
  %v55 = vld [vmem:[%s1 + $0x2c] sm:$0xf]
  %v56 = vld [vmem:[%s1 + $0x30] sm:$0xf]
  %v57 = vld [vmem:[%s1 + $0x34] sm:$0xf]
  %v58 = vld [vmem:[%s1 + $0x38] sm:$0xf]
  %v59 = vld [vmem:[%s1 + $0x3c] sm:$0xf]
  %v60 = vld [vmem:[%s2] sm:$0x1]
  %v62 = vlaneseq
  %v63 = vshrl.u32 %v62, 7
  %v64 = vsub.s32 0, %v63
  %v65 = vrot.slane %v60, %v64
  %v83 = vunpack.c.l.b16 %v44
  %v84 = vunpack.c.l.b16 %v45
  %v85 = vunpack.c.l.b16 %v46
  %v86 = vunpack.c.l.b16 %v47
  %v87 = vunpack.c.l.b16 %v48
  %v88 = vunpack.c.l.b16 %v49
  %v89 = vunpack.c.l.b16 %v50
  %v90 = vunpack.c.l.b16 %v51
  %v91 = vunpack.c.l.b16 %v52
  %v92 = vunpack.c.l.b16 %v53
  %v93 = vunpack.c.l.b16 %v54
  %v94 = vunpack.c.l.b16 %v55
  %v95 = vunpack.c.l.b16 %v56
  %v96 = vunpack.c.l.b16 %v57
  %v97 = vunpack.c.l.b16 %v58
  %v98 = vunpack.c.l.b16 %v59
  %v99 = vpack.c.b16 %v84, %v83
  %v100 = vpack.c.b16 %v86, %v85
  %v101 = vpack.c.b16 %v88, %v87
  %v102 = vpack.c.b16 %v90, %v89
  %v103 = vpack.c.b16 %v92, %v91
  %v104 = vpack.c.b16 %v94, %v93
  %v105 = vpack.c.b16 %v96, %v95
  %v106 = vpack.c.b16 %v98, %v97
  %115 = vmatprep.subr.bf16.mxu0 0
  %116 = vmatpush1.bf16.msra.mxu0 %v99
  %117 = vmatprep.subr.bf16.mxu0 0
  %118 = vmatpush1.bf16.msra.mxu0 %v100
  %119 = vmatprep.subr.bf16.mxu0 0
  %120 = vmatpush1.bf16.msra.mxu0 %v101
  %121 = vmatprep.subr.bf16.mxu0 0
  %122 = vmatpush1.bf16.msra.mxu0 %v102
  %123 = vmatprep.subr.bf16.mxu0 0
  %124 = vmatpush1.bf16.msra.mxu0 %v103
  %125 = vmatprep.subr.bf16.mxu0 0
  %126 = vmatpush1.bf16.msra.mxu0 %v104
  %127 = vmatprep.subr.bf16.mxu0 0
  %128 = vmatpush1.bf16.msra.mxu0 %v105
  %129 = vmatprep.subr.bf16.mxu0 0
  %130 = vmatpush1.bf16.msra.mxu0 %v106
  %131 = vmatprep.subr.bf16.mxu0 0
  %132 = vmatpush1.bf16.msra.mxu0 0
  %133 = vmatprep.subr.bf16.mxu0 0
  %134 = vmatpush1.bf16.msra.mxu0 0
  %135 = vmatprep.subr.bf16.mxu0 0
  %136 = vmatpush1.bf16.msra.mxu0 0
  %137 = vmatprep.subr.bf16.mxu0 0
  %138 = vmatpush1.bf16.msra.mxu0 0
  %139 = vmatprep.subr.bf16.mxu0 0
  %140 = vmatpush1.bf16.msra.mxu0 0
  %141 = vmatprep.subr.bf16.mxu0 0
  %142 = vmatpush1.bf16.msra.mxu0 0
  %143 = vmatprep.subr.bf16.mxu0 0
  %144 = vmatpush1.bf16.msra.mxu0 0
  %145 = vmatprep.subr.bf16.mxu0 0
  %146 = vmatpush1.bf16.msra.mxu0 0
  %147 = vmatprep.mubr.bf16.mxu0 0
  %148 = vmatmul.mubr.bf16.gmra.mrb[0].mxu0 %v40
  %v149 = vpop.f32.mrb[0].mxu0
  %v150 = vadd.f32 %v65, %v149
  %v151 = vpop.f32.mrb[0].mxu0
  %v152 = vpop.f32.mrb[0].mxu0
  %v153 = vadd.f32 %v65, %v152
  %v154 = vpop.f32.mrb[0].mxu0
  %155 = vmatprep.mubr.bf16.mxu0 0
  %156 = vmatmul.mubr.bf16.gmra.mrb[0].mxu0 %v41
  %v157 = vpop.f32.mrb[0].mxu0
  %v158 = vadd.f32 %v65, %v157
  %v159 = vpop.f32.mrb[0].mxu0
  %v160 = vpop.f32.mrb[0].mxu0
  %v161 = vadd.f32 %v65, %v160
  %v162 = vpop.f32.mrb[0].mxu0
  %163 = vmatprep.mubr.bf16.mxu0 0
  %164 = vmatmul.mubr.bf16.gmra.mrb[0].mxu0 %v42
  %v165 = vpop.f32.mrb[0].mxu0
  %v166 = vadd.f32 %v65, %v165
  %v167 = vpop.f32.mrb[0].mxu0
  %v168 = vpop.f32.mrb[0].mxu0
  %v169 = vadd.f32 %v65, %v168
  %v170 = vpop.f32.mrb[0].mxu0
  %171 = vmatprep.mubr.bf16.mxu0 0
  %172 = vmatmul.mubr.bf16.gmra.mrb[0].mxu0 %v43
  %v173 = vpop.f32.mrb[0].mxu0
  %v174 = vadd.f32 %v65, %v173
  %v175 = vpop.f32.mrb[0].mxu0
  %v176 = vpop.f32.mrb[0].mxu0
  %v177 = vadd.f32 %v65, %v176
  %v178 = vpop.f32.mrb[0].mxu0
  %179 = vdwg.mxu0
  %180 = vst [vmem:[%s7] sm:$0xff] %v150
  %181 = vst [vmem:[%s7 + $0x8] sm:$0xff] %v153
  %182 = vst [vmem:[%s7 + $0x10] sm:$0xff] %v158
  %183 = vst [vmem:[%s7 + $0x18] sm:$0xff] %v161
  %184 = vst [vmem:[%s7 + $0x20] sm:$0xff] %v166
  %185 = vst [vmem:[%s7 + $0x28] sm:$0xff] %v169
  %186 = vst [vmem:[%s7 + $0x30] sm:$0xff] %v174
  %187 = vst [vmem:[%s7 + $0x38] sm:$0xff] %v177
  %188 = vmax.xlane.f32.xlu0 %v150
  %v189 = vpop.xlane.xlu0 %188
  %190 = vmax.xlane.f32.xlu0 %v153
  %v191 = vpop.xlane.xlu0 %190
  %192 = vmax.xlane.f32.xlu0 %v158
  %v193 = vpop.xlane.xlu0 %192
  %194 = vmax.xlane.f32.xlu0 %v161
  %v195 = vpop.xlane.xlu0 %194
  %196 = vmax.xlane.f32.xlu0 %v166
  %v197 = vpop.xlane.xlu0 %196
  %198 = vmax.xlane.f32.xlu0 %v169
  %v199 = vpop.xlane.xlu0 %198
  %200 = vmax.xlane.f32.xlu0 %v174
  %v201 = vpop.xlane.xlu0 %200
  %202 = vmax.xlane.f32.xlu0 %v177
  %v203 = vpop.xlane.xlu0 %202
  %v204 = vsub.f32 %v150, %v189
  %v205 = vsub.f32 %v153, %v191
  %v206 = vsub.f32 %v158, %v193
  %v207 = vsub.f32 %v161, %v195
  %v208 = vsub.f32 %v166, %v197
  %v209 = vsub.f32 %v169, %v199
  %v210 = vsub.f32 %v174, %v201
  %v211 = vsub.f32 %v177, %v203
  %v212 = vmul.f32 %v204, 1.442695
  %v213 = vpow.pop %v212
  %v214 = vmul.f32 %v205, 1.442695
  %v215 = vpow.pop %v214
  %v216 = vmul.f32 %v206, 1.442695
  %v217 = vpow.pop %v216
  %v218 = vmul.f32 %v207, 1.442695
  %v219 = vpow.pop %v218
  %v220 = vmul.f32 %v208, 1.442695
  %v221 = vpow.pop %v220
  %v222 = vmul.f32 %v209, 1.442695
  %v223 = vpow.pop %v222
  %v224 = vmul.f32 %v210, 1.442695
  %v225 = vpow.pop %v224
  %v226 = vmul.f32 %v211, 1.442695
  %v227 = vpow.pop %v226
  %228 = vadd.xlane.f32.xlu0 %v213
  %v229 = vpop.xlane.xlu0 %228
  %230 = vadd.xlane.f32.xlu0 %v215
  %v231 = vpop.xlane.xlu0 %230
  %232 = vadd.xlane.f32.xlu0 %v217
  %v233 = vpop.xlane.xlu0 %232
  %234 = vadd.xlane.f32.xlu0 %v219
  %v235 = vpop.xlane.xlu0 %234
  %236 = vadd.xlane.f32.xlu0 %v221
  %v237 = vpop.xlane.xlu0 %236
  %238 = vadd.xlane.f32.xlu0 %v223
  %v239 = vpop.xlane.xlu0 %238
  %240 = vadd.xlane.f32.xlu0 %v225
  %v241 = vpop.xlane.xlu0 %240
  %242 = vadd.xlane.f32.xlu0 %v227
  %v243 = vpop.xlane.xlu0 %242
  %v244 = vrcp.pop %v229
  %v245 = vmul.f32 %v213, %v244
  %v246 = vrcp.pop %v231
  %v247 = vmul.f32 %v215, %v246
  %v248 = vrcp.pop %v233
  %v249 = vmul.f32 %v217, %v248
  %v250 = vrcp.pop %v235
  %v251 = vmul.f32 %v219, %v250
  %v252 = vrcp.pop %v237
  %v253 = vmul.f32 %v221, %v252
  %v254 = vrcp.pop %v239
  %v255 = vmul.f32 %v223, %v254
  %v256 = vrcp.pop %v241
  %v257 = vmul.f32 %v225, %v256
  %v258 = vrcp.pop %v243
  %v259 = vmul.f32 %v227, %v258
  %260 = vst [vmem:[%s8] sm:$0xff] %v245
  %261 = vst [vmem:[%s8 + $0x8] sm:$0xff] %v247
  %262 = vst [vmem:[%s8 + $0x10] sm:$0xff] %v249
  %263 = vst [vmem:[%s8 + $0x18] sm:$0xff] %v251
  %264 = vst [vmem:[%s8 + $0x20] sm:$0xff] %v253
  %265 = vst [vmem:[%s8 + $0x28] sm:$0xff] %v255
  %266 = vst [vmem:[%s8 + $0x30] sm:$0xff] %v257
  %267 = vst [vmem:[%s8 + $0x38] sm:$0xff] %v259
  %v268 = vpack.c.bf16 %v247, %v245
  %v269 = vpack.c.bf16 %v251, %v249
  %v270 = vpack.c.bf16 %v255, %v253
  %v271 = vpack.c.bf16 %v259, %v257
  %v272 = vld [vmem:[%s3] sm:$0xf]
  %v273 = vld [vmem:[%s3 + $0x4] sm:$0xf]
  %v274 = vld [vmem:[%s3 + $0x8] sm:$0xf]
  %v275 = vld [vmem:[%s3 + $0xc] sm:$0xf]
  %v276 = vld [vmem:[%s3 + $0x10] sm:$0xf]
  %v277 = vld [vmem:[%s3 + $0x14] sm:$0xf]
  %v278 = vld [vmem:[%s3 + $0x18] sm:$0xf]
  %v279 = vld [vmem:[%s3 + $0x1c] sm:$0xf]
  %v280 = vld [vmem:[%s3 + $0x20] sm:$0xf]
  %v281 = vld [vmem:[%s3 + $0x24] sm:$0xf]
  %v282 = vld [vmem:[%s3 + $0x28] sm:$0xf]
  %v283 = vld [vmem:[%s3 + $0x2c] sm:$0xf]
  %v284 = vld [vmem:[%s3 + $0x30] sm:$0xf]
  %v285 = vld [vmem:[%s3 + $0x34] sm:$0xf]
  %v286 = vld [vmem:[%s3 + $0x38] sm:$0xf]
  %v287 = vld [vmem:[%s3 + $0x3c] sm:$0xf]
  %v288 = vld [vmem:[%s4] sm:$0x1]
  %v290 = vlaneseq
  %v291 = vshrl.u32 %v290, 7
  %v292 = vsub.s32 0, %v291
  %v293 = vrot.slane %v288, %v292
  %v311 = vunpack.c.l.b16 %v272
  %v312 = vunpack.c.l.b16 %v273
  %v313 = vunpack.c.l.b16 %v274
  %v314 = vunpack.c.l.b16 %v275
  %v315 = vunpack.c.l.b16 %v276
  %v316 = vunpack.c.l.b16 %v277
  %v317 = vunpack.c.l.b16 %v278
  %v318 = vunpack.c.l.b16 %v279
  %v319 = vunpack.c.l.b16 %v280
  %v320 = vunpack.c.l.b16 %v281
  %v321 = vunpack.c.l.b16 %v282
  %v322 = vunpack.c.l.b16 %v283
  %v323 = vunpack.c.l.b16 %v284
  %v324 = vunpack.c.l.b16 %v285
  %v325 = vunpack.c.l.b16 %v286
  %v326 = vunpack.c.l.b16 %v287
  %v327 = vpack.c.b16 %v312, %v311
  %v328 = vpack.c.b16 %v314, %v313
  %v329 = vpack.c.b16 %v316, %v315
  %v330 = vpack.c.b16 %v318, %v317
  %v331 = vpack.c.b16 %v320, %v319
  %v332 = vpack.c.b16 %v322, %v321
  %v333 = vpack.c.b16 %v324, %v323
  %v334 = vpack.c.b16 %v326, %v325
  %343 = vmatprep.subr.bf16.mxu0 0
  %344 = vmatpush1.bf16.msra.mxu0 %v327
  %345 = vmatprep.subr.bf16.mxu0 0
  %346 = vmatpush1.bf16.msra.mxu0 %v328
  %347 = vmatprep.subr.bf16.mxu0 0
  %348 = vmatpush1.bf16.msra.mxu0 %v329
  %349 = vmatprep.subr.bf16.mxu0 0
  %350 = vmatpush1.bf16.msra.mxu0 %v330
  %351 = vmatprep.subr.bf16.mxu0 0
  %352 = vmatpush1.bf16.msra.mxu0 %v331
  %353 = vmatprep.subr.bf16.mxu0 0
  %354 = vmatpush1.bf16.msra.mxu0 %v332
  %355 = vmatprep.subr.bf16.mxu0 0
  %356 = vmatpush1.bf16.msra.mxu0 %v333
  %357 = vmatprep.subr.bf16.mxu0 0
  %358 = vmatpush1.bf16.msra.mxu0 %v334
  %359 = vmatprep.subr.bf16.mxu0 0
  %360 = vmatpush1.bf16.msra.mxu0 0
  %361 = vmatprep.subr.bf16.mxu0 0
  %362 = vmatpush1.bf16.msra.mxu0 0
  %363 = vmatprep.subr.bf16.mxu0 0
  %364 = vmatpush1.bf16.msra.mxu0 0
  %365 = vmatprep.subr.bf16.mxu0 0
  %366 = vmatpush1.bf16.msra.mxu0 0
  %367 = vmatprep.subr.bf16.mxu0 0
  %368 = vmatpush1.bf16.msra.mxu0 0
  %369 = vmatprep.subr.bf16.mxu0 0
  %370 = vmatpush1.bf16.msra.mxu0 0
  %371 = vmatprep.subr.bf16.mxu0 0
  %372 = vmatpush1.bf16.msra.mxu0 0
  %373 = vmatprep.subr.bf16.mxu0 0
  %374 = vmatpush1.bf16.msra.mxu0 0
  %375 = vmatprep.mubr.bf16.mxu0 0
  %376 = vmatmul.mubr.bf16.gmra.mrb[0].mxu0 %v268
  %v377 = vpop.f32.mrb[0].mxu0
  %v378 = vadd.f32 %v293, %v377
  %v379 = vpop.f32.mrb[0].mxu0
  %v380 = vpop.f32.mrb[0].mxu0
  %v381 = vadd.f32 %v293, %v380
  %v382 = vpop.f32.mrb[0].mxu0
  %383 = vmatprep.mubr.bf16.mxu0 0
  %384 = vmatmul.mubr.bf16.gmra.mrb[0].mxu0 %v269
  %v385 = vpop.f32.mrb[0].mxu0
  %v386 = vadd.f32 %v293, %v385
  %v387 = vpop.f32.mrb[0].mxu0
  %v388 = vpop.f32.mrb[0].mxu0
  %v389 = vadd.f32 %v293, %v388
  %v390 = vpop.f32.mrb[0].mxu0
  %391 = vmatprep.mubr.bf16.mxu0 0
  %392 = vmatmul.mubr.bf16.gmra.mrb[0].mxu0 %v270
  %v393 = vpop.f32.mrb[0].mxu0
  %v394 = vadd.f32 %v293, %v393
  %v395 = vpop.f32.mrb[0].mxu0
  %v396 = vpop.f32.mrb[0].mxu0
  %v397 = vadd.f32 %v293, %v396
  %v398 = vpop.f32.mrb[0].mxu0
  %399 = vmatprep.mubr.bf16.mxu0 0
  %400 = vmatmul.mubr.bf16.gmra.mrb[0].mxu0 %v271
  %v401 = vpop.f32.mrb[0].mxu0
  %v402 = vadd.f32 %v293, %v401
  %v403 = vpop.f32.mrb[0].mxu0
  %v404 = vpop.f32.mrb[0].mxu0
  %v405 = vadd.f32 %v293, %v404
  %v406 = vpop.f32.mrb[0].mxu0
  %407 = vdwg.mxu0
  %v408 = vmax.f32 %v378, 0.0
  %v409 = vmax.f32 %v381, 0.0
  %v410 = vmax.f32 %v386, 0.0
  %v411 = vmax.f32 %v389, 0.0
  %v412 = vmax.f32 %v394, 0.0
  %v413 = vmax.f32 %v397, 0.0
  %v414 = vmax.f32 %v402, 0.0
  %v415 = vmax.f32 %v405, 0.0
  %v416 = vld [vmem:[%s5] sm:$0x1]
  %v418 = vlaneseq
  %v419 = vshrl.u32 %v418, 7
  %v420 = vsub.s32 0, %v419
  %v421 = vrot.slane %v416, %v420
  %v423 = vmul.f32 %v408, %v421
  %v424 = vmul.f32 %v409, %v421
  %v425 = vmul.f32 %v410, %v421
  %v426 = vmul.f32 %v411, %v421
  %v427 = vmul.f32 %v412, %v421
  %v428 = vmul.f32 %v413, %v421
  %v429 = vmul.f32 %v414, %v421
  %v430 = vmul.f32 %v415, %v421
  %431 = vadd.xlane.f32.xlu0 %v423
  %v432 = vpop.xlane.xlu0 %431
  %433 = vadd.xlane.f32.xlu0 %v424
  %v434 = vpop.xlane.xlu0 %433
  %435 = vadd.xlane.f32.xlu0 %v425
  %v436 = vpop.xlane.xlu0 %435
  %437 = vadd.xlane.f32.xlu0 %v426
  %v438 = vpop.xlane.xlu0 %437
  %439 = vadd.xlane.f32.xlu0 %v427
  %v440 = vpop.xlane.xlu0 %439
  %441 = vadd.xlane.f32.xlu0 %v428
  %v442 = vpop.xlane.xlu0 %441
  %443 = vadd.xlane.f32.xlu0 %v429
  %v444 = vpop.xlane.xlu0 %443
  %445 = vadd.xlane.f32.xlu0 %v430
  %v446 = vpop.xlane.xlu0 %445
  %v447 = vld [vmem:[#allocation2] sm:$0x1]
  %v449 = vlaneseq
  %v450 = vshrl.u32 %v449, 7
  %v451 = vsub.s32 0, %v450
  %v452 = vrot.slane %v447, %v451
  %v454 = vadd.f32 %v432, %v452
  %v455 = vadd.f32 %v434, %v452
  %v456 = vadd.f32 %v436, %v452
  %v457 = vadd.f32 %v438, %v452
  %v458 = vadd.f32 %v440, %v452
  %v459 = vadd.f32 %v442, %v452
  %v460 = vadd.f32 %v444, %v452
  %v461 = vadd.f32 %v446, %v452
  %v462 = vxor.u32 %v454, 2147483648
  %v463 = vxor.u32 %v455, 2147483648
  %v464 = vxor.u32 %v456, 2147483648
  %v465 = vxor.u32 %v457, 2147483648
  %v466 = vxor.u32 %v458, 2147483648
  %v467 = vxor.u32 %v459, 2147483648
  %v468 = vxor.u32 %v460, 2147483648
  %v469 = vxor.u32 %v461, 2147483648
  %v470 = vmul.f32 %v462, 1.442695
  %v471 = vpow.pop %v470
  %v472 = vmul.f32 %v463, 1.442695
  %v473 = vpow.pop %v472
  %v474 = vmul.f32 %v464, 1.442695
  %v475 = vpow.pop %v474
  %v476 = vmul.f32 %v465, 1.442695
  %v477 = vpow.pop %v476
  %v478 = vmul.f32 %v466, 1.442695
  %v479 = vpow.pop %v478
  %v480 = vmul.f32 %v467, 1.442695
  %v481 = vpow.pop %v480
  %v482 = vmul.f32 %v468, 1.442695
  %v483 = vpow.pop %v482
  %v484 = vmul.f32 %v469, 1.442695
  %v485 = vpow.pop %v484
  %v486 = vadd.f32 %v471, 1.0
  %v487 = vadd.f32 %v473, 1.0
  %v488 = vadd.f32 %v475, 1.0
  %v489 = vadd.f32 %v477, 1.0
  %v490 = vadd.f32 %v479, 1.0
  %v491 = vadd.f32 %v481, 1.0
  %v492 = vadd.f32 %v483, 1.0
  %v493 = vadd.f32 %v485, 1.0
  %v494 = vrcp.pop %v486
  %v495 = vmul.f32 1.0, %v494
  %v496 = vrcp.pop %v487
  %v497 = vmul.f32 1.0, %v496
  %v498 = vrcp.pop %v488
  %v499 = vmul.f32 1.0, %v498
  %v500 = vrcp.pop %v489
  %v501 = vmul.f32 1.0, %v500
  %v502 = vrcp.pop %v490
  %v503 = vmul.f32 1.0, %v502
  %v504 = vrcp.pop %v491
  %v505 = vmul.f32 1.0, %v504
  %v506 = vrcp.pop %v492
  %v507 = vmul.f32 1.0, %v506
  %v508 = vrcp.pop %v493
  %v509 = vmul.f32 1.0, %v508
  %511 = vset.pattern.permute.xlu0 0
  %512 = vperm.xlu0 %511, %v495
  %v513 = vpop.permute.xlu0 %512
  %516 = vset.pattern.permute.xlu0 0
  %517 = vperm.xlu0 %516, %v497
  %v518 = vpop.permute.xlu0 %517
  %521 = vset.pattern.permute.xlu0 0
  %522 = vperm.xlu0 %521, %v499
  %v523 = vpop.permute.xlu0 %522
  %526 = vset.pattern.permute.xlu0 0
  %527 = vperm.xlu0 %526, %v501
  %v528 = vpop.permute.xlu0 %527
  %531 = vset.pattern.permute.xlu0 0
  %532 = vperm.xlu0 %531, %v503
  %v533 = vpop.permute.xlu0 %532
  %536 = vset.pattern.permute.xlu0 0
  %537 = vperm.xlu0 %536, %v505
  %v538 = vpop.permute.xlu0 %537
  %541 = vset.pattern.permute.xlu0 0
  %542 = vperm.xlu0 %541, %v507
  %v543 = vpop.permute.xlu0 %542
  %546 = vset.pattern.permute.xlu0 0
  %547 = vperm.xlu0 %546, %v509
  %v548 = vpop.permute.xlu0 %547
  %550 = vst [vmem:[%s9] sm:$0xff] %v513
  %551 = vst [vmem:[%s9 + $0x8] sm:$0xff] %v518
  %552 = vst [vmem:[%s9 + $0x10] sm:$0xff] %v523
  %553 = vst [vmem:[%s9 + $0x18] sm:$0xff] %v528
  %554 = vst [vmem:[%s9 + $0x20] sm:$0xff] %v533
  %555 = vst [vmem:[%s9 + $0x28] sm:$0xff] %v538
  %556 = vst [vmem:[%s9 + $0x30] sm:$0xff] %v543
  %557 = vst [vmem:[%s9 + $0x38] sm:$0xff] %v548
  // Predicated region
  $region30: #{evid_gru_forward.5} parent=0 // pred_check
    _
  $region31: #{evid_gru_forward.5} parent=0 // pred_check_branch
    %559 = sbr.rel (0) target = $region33
  $region32: #{evid_gru_forward.5} parent=0 // pred_region
    _
  $region33: #{evid_gru_forward.5} parent=0 // pred_fallthru
    _
  // Predicated region
  $region34: #{evid_gru_forward.5} parent=0 // pred_check
    _
  $region35: #{evid_gru_forward.5} parent=0 // pred_check_branch
    %561 = sbr.rel (0) target = $region37
  $region36: #{evid_gru_forward.5} parent=0 // pred_region
    _
  $region37: #{evid_gru_forward.5} parent=0 // pred_fallthru
    _
  // Predicated region
  $region38: #{evid_gru_forward.5} parent=0 // pred_check
    _
  $region39: #{evid_gru_forward.5} parent=0 // pred_check_branch
    %563 = sbr.rel (0) target = $region41
  $region40: #{evid_gru_forward.5} parent=0 // pred_region
    _
  $region41: #{evid_gru_forward.5} parent=0 // pred_fallthru
    _
  // Predicated region
  $region42: #{evid_gru_forward.5} parent=0 // pred_check
    _
  $region43: #{evid_gru_forward.5} parent=0 // pred_check_branch
    %565 = sbr.rel (0) target = $region45
  $region44: #{evid_gru_forward.5} parent=0 // pred_region
    _
  $region45: #{evid_gru_forward.5} parent=0 // pred_fallthru
    _
  // Predicated region
  $region46: #{evid_gru_forward.5} parent=0 // pred_check
    _
  $region47: #{evid_gru_forward.5} parent=0 // pred_check_branch
    %567 = sbr.rel (0) target = $region49
  $region48: #{evid_gru_forward.5} parent=0 // pred_region
    _
  $region49: #{evid_gru_forward.5} parent=0 // pred_fallthru
    _
  // Predicated region
  $region50: #{evid_gru_forward.5} parent=0 // pred_check
    _
  $region51: #{evid_gru_forward.5} parent=0 // pred_check_branch
    %569 = sbr.rel (0) target = $region53
  $region52: #{evid_gru_forward.5} parent=0 // pred_region
    _
  $region53: #{evid_gru_forward.5} parent=0 // pred_fallthru
    _

// kernel: evid_gru_forward.4
$region0: #{evid_gru_forward.4}
  #allocation0 [shape = 'u32[]', space=smem, size = 0x4, offset = 0x4, fixed_abs, tag = 'smem constant byte address 0x4 - core index']
  #allocation1 [shape = 'u32[144,128]{1,0:T(1,128)}', space=vmem, size = 0x12000, scoped, tag = 'internal scratch']
  #allocation2 [shape = 'f32[8,128]{1,0:T(8,128)}', space=vmem, size = 0x1000, scoped, tag = 'scratch operand']
  %s0 = inlined_call_operand.vmem [shape: f32[8,8,128], index: 0, kind: input, shape index: {}]
  %s1 = inlined_call_operand.vmem [shape: f32[8,8,128], index: 1, kind: input, shape index: {}]
  %s2 = inlined_call_operand.vmem [shape: f32[8,8,128], index: 2, kind: input, shape index: {}]
  %s3 = inlined_call_operand.vmem [shape: f32[8,128], index: 3, kind: input, shape index: {}]
  %s4 = inlined_call_operand.vmem [shape: bf16[128,384], index: 4, kind: input, shape index: {}]
  %s5 = inlined_call_operand.vmem [shape: f32[1,128], index: 5, kind: input, shape index: {}]
  %s6 = inlined_call_operand.vmem [shape: f32[8,8,128], index: 6, kind: output, shape index: {}]
  %s7 = sld [smem:[#allocation0]]
  $region38: #{evid_gru_forward.4} parent=0
    _
  %s9 = ssub.s32 1, %s7
  %s10 = scalar_select 0, %s9, %s7
  // Predicated region
  $region2: #{evid_gru_forward.4} parent=0 // pred_check
    _
  $region3: #{evid_gru_forward.4} parent=0 // pred_check_branch
    %12 = sbr.rel (0) target = $region5
  $region4: #{evid_gru_forward.4} parent=0 // pred_region
    _
  $region5: #{evid_gru_forward.4} parent=0 // pred_fallthru
    _
  // Predicated region
  $region6: #{evid_gru_forward.4} parent=0 // pred_check
    _
  $region7: #{evid_gru_forward.4} parent=0 // pred_check_branch
    %14 = sbr.rel (0) target = $region9
  $region8: #{evid_gru_forward.4} parent=0 // pred_region
    _
  $region9: #{evid_gru_forward.4} parent=0 // pred_fallthru
    _
  // Predicated region
  $region10: #{evid_gru_forward.4} parent=0 // pred_check
    _
  $region11: #{evid_gru_forward.4} parent=0 // pred_check_branch
    %16 = sbr.rel (0) target = $region13
  $region12: #{evid_gru_forward.4} parent=0 // pred_region
    _
  $region13: #{evid_gru_forward.4} parent=0 // pred_fallthru
    _
  // Predicated region
  $region14: #{evid_gru_forward.4} parent=0 // pred_check
    _
  $region15: #{evid_gru_forward.4} parent=0 // pred_check_branch
    %18 = sbr.rel (0) target = $region17
  $region16: #{evid_gru_forward.4} parent=0 // pred_region
    _
  $region17: #{evid_gru_forward.4} parent=0 // pred_fallthru
    _
  // Predicated region
  $region18: #{evid_gru_forward.4} parent=0 // pred_check
    _
  $region19: #{evid_gru_forward.4} parent=0 // pred_check_branch
    %20 = sbr.rel (0) target = $region21
  $region20: #{evid_gru_forward.4} parent=0 // pred_region
    _
  $region21: #{evid_gru_forward.4} parent=0 // pred_fallthru
    _
  // Predicated region
  $region22: #{evid_gru_forward.4} parent=0 // pred_check
    _
  $region23: #{evid_gru_forward.4} parent=0 // pred_check_branch
    %22 = sbr.rel (0) target = $region25
  $region24: #{evid_gru_forward.4} parent=0 // pred_region
    _
  $region25: #{evid_gru_forward.4} parent=0 // pred_fallthru
    _
  %p24 = scmp.eq.s32.totalorder 0, 0
  // Predicated region
  $region26: #{evid_gru_forward.4} parent=0 // pred_check
    %p25 = pneg %p24
  $region27: #{evid_gru_forward.4} parent=0 // pred_check_branch
    %27 = sbr.rel (%p25) target = $region29
  $region28: #{evid_gru_forward.4} parent=0 // pred_region
    %v28 = vld [vmem:[%s3] sm:$0xff]
    %29 = vst [vmem:[#allocation2] sm:$0xff] %v28
  $region29: #{evid_gru_forward.4} parent=0 // pred_fallthru
    _
  %v30 = vld [vmem:[%s5] sm:$0x1]
  %v32 = vlaneseq
  %v33 = vshrl.u32 %v32, 7
  %v34 = vsub.s32 0, %v33
  %v35 = vrot.slane %v30, %v34
  %v37 = vld [vmem:[#allocation2] sm:$0xff]
  %v38 = vpack.c.bf16 %v37, %v37
  %v39 = vld [vmem:[%s4] sm:$0xff]
  %v40 = vld [vmem:[%s4 + $0x8] sm:$0xf]
  %v41 = vld [vmem:[%s4 + $0xc] sm:$0xff]
  %v42 = vld [vmem:[%s4 + $0x14] sm:$0xf]
  %v43 = vld [vmem:[%s4 + $0x18] sm:$0xff]
  %v44 = vld [vmem:[%s4 + $0x20] sm:$0xf]
  %v45 = vld [vmem:[%s4 + $0x24] sm:$0xff]
  %v46 = vld [vmem:[%s4 + $0x2c] sm:$0xf]
  %v47 = vld [vmem:[%s4 + $0x30] sm:$0xff]
  %v48 = vld [vmem:[%s4 + $0x38] sm:$0xf]
  %v49 = vld [vmem:[%s4 + $0x3c] sm:$0xff]
  %v50 = vld [vmem:[%s4 + $0x44] sm:$0xf]
  %v51 = vld [vmem:[%s4 + $0x48] sm:$0xff]
  %v52 = vld [vmem:[%s4 + $0x50] sm:$0xf]
  %v53 = vld [vmem:[%s4 + $0x54] sm:$0xff]
  %v54 = vld [vmem:[%s4 + $0x5c] sm:$0xf]
  %v55 = vld [vmem:[%s4 + $0x60] sm:$0xff]
  %v56 = vld [vmem:[%s4 + $0x68] sm:$0xf]
  %v57 = vld [vmem:[%s4 + $0x6c] sm:$0xff]
  %v58 = vld [vmem:[%s4 + $0x74] sm:$0xf]
  %v59 = vld [vmem:[%s4 + $0x78] sm:$0xff]
  %v60 = vld [vmem:[%s4 + $0x80] sm:$0xf]
  %v61 = vld [vmem:[%s4 + $0x84] sm:$0xff]
  %v62 = vld [vmem:[%s4 + $0x8c] sm:$0xf]
  %v63 = vld [vmem:[%s4 + $0x90] sm:$0xff]
  %v64 = vld [vmem:[%s4 + $0x98] sm:$0xf]
  %v65 = vld [vmem:[%s4 + $0x9c] sm:$0xff]
  %v66 = vld [vmem:[%s4 + $0xa4] sm:$0xf]
  %v67 = vld [vmem:[%s4 + $0xa8] sm:$0xff]
  %v68 = vld [vmem:[%s4 + $0xb0] sm:$0xf]
  %v69 = vld [vmem:[%s4 + $0xb4] sm:$0xff]
  %v70 = vld [vmem:[%s4 + $0xbc] sm:$0xf]
  %v103 = vunpack.c.l.b16 %v39
  %v104 = vunpack.c.h.b16 %v39
  %v105 = vunpack.c.l.b16 %v40
  %v106 = vunpack.c.l.b16 %v41
  %v107 = vunpack.c.h.b16 %v41
  %v108 = vunpack.c.l.b16 %v42
  %v109 = vunpack.c.l.b16 %v43
  %v110 = vunpack.c.h.b16 %v43
  %v111 = vunpack.c.l.b16 %v44
  %v112 = vunpack.c.l.b16 %v45
  %v113 = vunpack.c.h.b16 %v45
  %v114 = vunpack.c.l.b16 %v46
  %v115 = vunpack.c.l.b16 %v47
  %v116 = vunpack.c.h.b16 %v47
  %v117 = vunpack.c.l.b16 %v48
  %v118 = vunpack.c.l.b16 %v49
  %v119 = vunpack.c.h.b16 %v49
  %v120 = vunpack.c.l.b16 %v50
  %v121 = vunpack.c.l.b16 %v51
  %v122 = vunpack.c.h.b16 %v51
  %v123 = vunpack.c.l.b16 %v52
  %v124 = vunpack.c.l.b16 %v53
  %v125 = vunpack.c.h.b16 %v53
  %v126 = vunpack.c.l.b16 %v54
  %v127 = vunpack.c.l.b16 %v55
  %v128 = vunpack.c.h.b16 %v55
  %v129 = vunpack.c.l.b16 %v56
  %v130 = vunpack.c.l.b16 %v57
  %v131 = vunpack.c.h.b16 %v57
  %v132 = vunpack.c.l.b16 %v58
  %v133 = vunpack.c.l.b16 %v59
  %v134 = vunpack.c.h.b16 %v59
  %v135 = vunpack.c.l.b16 %v60
  %v136 = vunpack.c.l.b16 %v61
  %v137 = vunpack.c.h.b16 %v61
  %v138 = vunpack.c.l.b16 %v62
  %v139 = vunpack.c.l.b16 %v63
  %v140 = vunpack.c.h.b16 %v63
  %v141 = vunpack.c.l.b16 %v64
  %v142 = vunpack.c.l.b16 %v65
  %v143 = vunpack.c.h.b16 %v65
  %v144 = vunpack.c.l.b16 %v66
  %v145 = vunpack.c.l.b16 %v67
  %v146 = vunpack.c.h.b16 %v67
  %v147 = vunpack.c.l.b16 %v68
  %v148 = vunpack.c.l.b16 %v69
  %v149 = vunpack.c.h.b16 %v69
  %v150 = vunpack.c.l.b16 %v70
  %v151 = vpack.c.b16 %v106, %v103
  %v152 = vpack.c.b16 %v107, %v104
  %v153 = vpack.c.b16 %v108, %v105
  %v154 = vpack.c.b16 %v112, %v109
  %v155 = vpack.c.b16 %v113, %v110
  %v156 = vpack.c.b16 %v114, %v111
  %v157 = vpack.c.b16 %v118, %v115
  %v158 = vpack.c.b16 %v119, %v116
  %v159 = vpack.c.b16 %v120, %v117
  %v160 = vpack.c.b16 %v124, %v121
  %v161 = vpack.c.b16 %v125, %v122
  %v162 = vpack.c.b16 %v126, %v123
  %v163 = vpack.c.b16 %v130, %v127
  %v164 = vpack.c.b16 %v131, %v128
  %v165 = vpack.c.b16 %v132, %v129
  %v166 = vpack.c.b16 %v136, %v133
  %v167 = vpack.c.b16 %v137, %v134
  %v168 = vpack.c.b16 %v138, %v135
  %v169 = vpack.c.b16 %v142, %v139
  %v170 = vpack.c.b16 %v143, %v140
  %v171 = vpack.c.b16 %v144, %v141
  %v172 = vpack.c.b16 %v148, %v145
  %v173 = vpack.c.b16 %v149, %v146
  %v174 = vpack.c.b16 %v150, %v147
  %199 = vmatprep.subr.bf16.mxu0 %v152
  %200 = vmatpush1.bf16.msra.mxu0 %v151
  %201 = vmatprep.subr.bf16.mxu0 %v155
  %202 = vmatpush1.bf16.msra.mxu0 %v154
  %203 = vmatprep.subr.bf16.mxu0 %v158
  %204 = vmatpush1.bf16.msra.mxu0 %v157
  %205 = vmatprep.subr.bf16.mxu0 %v161
  %206 = vmatpush1.bf16.msra.mxu0 %v160
  %207 = vmatprep.subr.bf16.mxu0 %v164
  %208 = vmatpush1.bf16.msra.mxu0 %v163
  %209 = vmatprep.subr.bf16.mxu0 %v167
  %210 = vmatpush1.bf16.msra.mxu0 %v166
  %211 = vmatprep.subr.bf16.mxu0 %v170
  %212 = vmatpush1.bf16.msra.mxu0 %v169
  %213 = vmatprep.subr.bf16.mxu0 %v173
  %214 = vmatpush1.bf16.msra.mxu0 %v172
  %215 = vmatprep.subr.bf16.mxu0 0
  %216 = vmatpush1.bf16.msra.mxu0 0
  %217 = vmatprep.subr.bf16.mxu0 0
  %218 = vmatpush1.bf16.msra.mxu0 0
  %219 = vmatprep.subr.bf16.mxu0 0
  %220 = vmatpush1.bf16.msra.mxu0 0
  %221 = vmatprep.subr.bf16.mxu0 0
  %222 = vmatpush1.bf16.msra.mxu0 0
  %223 = vmatprep.subr.bf16.mxu0 0
  %224 = vmatpush1.bf16.msra.mxu0 0
  %225 = vmatprep.subr.bf16.mxu0 0
  %226 = vmatpush1.bf16.msra.mxu0 0
  %227 = vmatprep.subr.bf16.mxu0 0
  %228 = vmatpush1.bf16.msra.mxu0 0
  %229 = vmatprep.subr.bf16.mxu0 0
  %230 = vmatpush1.bf16.msra.mxu0 0
  %231 = vmatprep.mubr.bf16.mxu0 0
  %232 = vmatmul.mubr.bf16.gmra.mrb[0].mxu0 %v38
  %v233 = vpop.f32.mrb[0].mxu0
  %v234 = vadd.f32 0.0, %v233
  %v235 = vpop.f32.mrb[0].mxu0
  %v236 = vadd.f32 0.0, %v235
  %v237 = vpop.f32.mrb[0].mxu0
  %v238 = vpop.f32.mrb[0].mxu0
  %239 = vdwg.mxu0
  %240 = vmatprep.subr.bf16.mxu0 0
  %241 = vmatpush1.bf16.msra.mxu0 %v153
  %242 = vmatprep.subr.bf16.mxu0 0
  %243 = vmatpush1.bf16.msra.mxu0 %v156
  %244 = vmatprep.subr.bf16.mxu0 0
  %245 = vmatpush1.bf16.msra.mxu0 %v159
  %246 = vmatprep.subr.bf16.mxu0 0
  %247 = vmatpush1.bf16.msra.mxu0 %v162
  %248 = vmatprep.subr.bf16.mxu0 0
  %249 = vmatpush1.bf16.msra.mxu0 %v165
  %250 = vmatprep.subr.bf16.mxu0 0
  %251 = vmatpush1.bf16.msra.mxu0 %v168
  %252 = vmatprep.subr.bf16.mxu0 0
  %253 = vmatpush1.bf16.msra.mxu0 %v171
  %254 = vmatprep.subr.bf16.mxu0 0
  %255 = vmatpush1.bf16.msra.mxu0 %v174
  %256 = vmatprep.subr.bf16.mxu0 0
  %257 = vmatpush1.bf16.msra.mxu0 0
  %258 = vmatprep.subr.bf16.mxu0 0
  %259 = vmatpush1.bf16.msra.mxu0 0
  %260 = vmatprep.subr.bf16.mxu0 0
  %261 = vmatpush1.bf16.msra.mxu0 0
  %262 = vmatprep.subr.bf16.mxu0 0
  %263 = vmatpush1.bf16.msra.mxu0 0
  %264 = vmatprep.subr.bf16.mxu0 0
  %265 = vmatpush1.bf16.msra.mxu0 0
  %266 = vmatprep.subr.bf16.mxu0 0
  %267 = vmatpush1.bf16.msra.mxu0 0
  %268 = vmatprep.subr.bf16.mxu0 0
  %269 = vmatpush1.bf16.msra.mxu0 0
  %270 = vmatprep.subr.bf16.mxu0 0
  %271 = vmatpush1.bf16.msra.mxu0 0
  %272 = vmatprep.mubr.bf16.mxu0 0
  %273 = vmatmul.mubr.bf16.gmra.mrb[0].mxu0 %v38
  %v274 = vpop.f32.mrb[0].mxu0
  %v275 = vadd.f32 0.0, %v274
  %v276 = vpop.f32.mrb[0].mxu0
  %v277 = vpop.f32.mrb[0].mxu0
  %v278 = vpop.f32.mrb[0].mxu0
  %279 = vdwg.mxu0
  %v280 = vld [vmem:[%s0] sm:$0xff]
  %v281 = vadd.f32 %v280, %v234
  %v282 = vxor.u32 %v281, 2147483648
  %v283 = vmul.f32 %v282, 1.442695
  %v284 = vpow.pop %v283
  %v285 = vadd.f32 %v284, 1.0
  %v286 = vrcp.pop %v285
  %v287 = vmul.f32 1.0, %v286
  %v288 = vld [vmem:[%s1] sm:$0xff]
  %v289 = vadd.f32 %v288, %v236
  %v290 = vxor.u32 %v289, 2147483648
  %v291 = vmul.f32 %v290, 1.442695
  %v292 = vpow.pop %v291
  %v293 = vadd.f32 %v292, 1.0
  %v294 = vrcp.pop %v293
  %v295 = vmul.f32 1.0, %v294
  %v296 = vld [vmem:[%s2] sm:$0xff]
  %v297 = vadd.f32 %v275, %v35
  %v298 = vmul.f32 %v287, %v297
  %v299 = vadd.f32 %v296, %v298
  %v300 = vtanh.pop %v299
  %v301 = vsub.f32 1.0, %v295
  %v302 = vmul.f32 %v301, %v300
  %v303 = vmul.f32 %v295, %v37
  %v304 = vadd.f32 %v302, %v303
  %305 = vst [vmem:[%s6] sm:$0xff] %v304
  %v306 = vpack.c.bf16 %v304, %v304
  %v307 = vld [vmem:[%s4] sm:$0xff]
  %v308 = vld [vmem:[%s4 + $0x8] sm:$0xf]
  %v309 = vld [vmem:[%s4 + $0xc] sm:$0xff]
  %v310 = vld [vmem:[%s4 + $0x14] sm:$0xf]
  %v311 = vld [vmem:[%s4 + $0x18] sm:$0xff]
  %v312 = vld [vmem:[%s4 + $0x20] sm:$0xf]
  %v313 = vld [vmem:[%s4 + $0x24] sm:$0xff]
  %v314 = vld [vmem:[%s4 + $0x2c] sm:$0xf]
  %v315 = vld [vmem:[%s4 + $0x30] sm:$0xff]
  %v316 = vld [vmem:[%s4 + $0x38] sm:$0xf]
  %v317 = vld [vmem:[%s4 + $0x3c] sm:$0xff]
  %v318 = vld [vmem:[%s4 + $0x44] sm:$0xf]
  %v319 = vld [vmem:[%s4 + $0x48] sm:$0xff]
  %v320 = vld [vmem:[%s4 + $0x50] sm:$0xf]
  %v321 = vld [vmem:[%s4 + $0x54] sm:$0xff]
  %v322 = vld [vmem:[%s4 + $0x5c] sm:$0xf]
  %v323 = vld [vmem:[%s4 + $0x60] sm:$0xff]
  %v324 = vld [vmem:[%s4 + $0x68] sm:$0xf]
  %v325 = vld [vmem:[%s4 + $0x6c] sm:$0xff]
  %v326 = vld [vmem:[%s4 + $0x74] sm:$0xf]
  %v327 = vld [vmem:[%s4 + $0x78] sm:$0xff]
  %v328 = vld [vmem:[%s4 + $0x80] sm:$0xf]
  %v329 = vld [vmem:[%s4 + $0x84] sm:$0xff]
  %v330 = vld [vmem:[%s4 + $0x8c] sm:$0xf]
  %v331 = vld [vmem:[%s4 + $0x90] sm:$0xff]
  %v332 = vld [vmem:[%s4 + $0x98] sm:$0xf]
  %v333 = vld [vmem:[%s4 + $0x9c] sm:$0xff]
  %v334 = vld [vmem:[%s4 + $0xa4] sm:$0xf]
  %v335 = vld [vmem:[%s4 + $0xa8] sm:$0xff]
  %v336 = vld [vmem:[%s4 + $0xb0] sm:$0xf]
  %v337 = vld [vmem:[%s4 + $0xb4] sm:$0xff]
  %v338 = vld [vmem:[%s4 + $0xbc] sm:$0xf]
  %v371 = vunpack.c.l.b16 %v307
  %v372 = vunpack.c.h.b16 %v307
  %v373 = vunpack.c.l.b16 %v308
  %v374 = vunpack.c.l.b16 %v309
  %v375 = vunpack.c.h.b16 %v309
  %v376 = vunpack.c.l.b16 %v310
  %v377 = vunpack.c.l.b16 %v311
  %v378 = vunpack.c.h.b16 %v311
  %v379 = vunpack.c.l.b16 %v312
  %v380 = vunpack.c.l.b16 %v313
  %v381 = vunpack.c.h.b16 %v313
  %v382 = vunpack.c.l.b16 %v314
  %v383 = vunpack.c.l.b16 %v315
  %v384 = vunpack.c.h.b16 %v315
  %v385 = vunpack.c.l.b16 %v316
  %v386 = vunpack.c.l.b16 %v317
  %v387 = vunpack.c.h.b16 %v317
  %v388 = vunpack.c.l.b16 %v318
  %v389 = vunpack.c.l.b16 %v319
  %v390 = vunpack.c.h.b16 %v319
  %v391 = vunpack.c.l.b16 %v320
  %v392 = vunpack.c.l.b16 %v321
  %v393 = vunpack.c.h.b16 %v321
  %v394 = vunpack.c.l.b16 %v322
  %v395 = vunpack.c.l.b16 %v323
  %v396 = vunpack.c.h.b16 %v323
  %v397 = vunpack.c.l.b16 %v324
  %v398 = vunpack.c.l.b16 %v325
  %v399 = vunpack.c.h.b16 %v325
  %v400 = vunpack.c.l.b16 %v326
  %v401 = vunpack.c.l.b16 %v327
  %v402 = vunpack.c.h.b16 %v327
  %v403 = vunpack.c.l.b16 %v328
  %v404 = vunpack.c.l.b16 %v329
  %v405 = vunpack.c.h.b16 %v329
  %v406 = vunpack.c.l.b16 %v330
  %v407 = vunpack.c.l.b16 %v331
  %v408 = vunpack.c.h.b16 %v331
  %v409 = vunpack.c.l.b16 %v332
  %v410 = vunpack.c.l.b16 %v333
  %v411 = vunpack.c.h.b16 %v333
  %v412 = vunpack.c.l.b16 %v334
  %v413 = vunpack.c.l.b16 %v335
  %v414 = vunpack.c.h.b16 %v335
  %v415 = vunpack.c.l.b16 %v336
  %v416 = vunpack.c.l.b16 %v337
  %v417 = vunpack.c.h.b16 %v337
  %v418 = vunpack.c.l.b16 %v338
  %v419 = vpack.c.b16 %v374, %v371
  %v420 = vpack.c.b16 %v375, %v372
  %v421 = vpack.c.b16 %v376, %v373
  %v422 = vpack.c.b16 %v380, %v377
  %v423 = vpack.c.b16 %v381, %v378
  %v424 = vpack.c.b16 %v382, %v379
  %v425 = vpack.c.b16 %v386, %v383
  %v426 = vpack.c.b16 %v387, %v384
  %v427 = vpack.c.b16 %v388, %v385
  %v428 = vpack.c.b16 %v392, %v389
  %v429 = vpack.c.b16 %v393, %v390
  %v430 = vpack.c.b16 %v394, %v391
  %v431 = vpack.c.b16 %v398, %v395
  %v432 = vpack.c.b16 %v399, %v396
  %v433 = vpack.c.b16 %v400, %v397
  %v434 = vpack.c.b16 %v404, %v401
  %v435 = vpack.c.b16 %v405, %v402
  %v436 = vpack.c.b16 %v406, %v403
  %v437 = vpack.c.b16 %v410, %v407
  %v438 = vpack.c.b16 %v411, %v408
  %v439 = vpack.c.b16 %v412, %v409
  %v440 = vpack.c.b16 %v416, %v413
  %v441 = vpack.c.b16 %v417, %v414
  %v442 = vpack.c.b16 %v418, %v415
  %467 = vmatprep.subr.bf16.mxu0 %v420
  %468 = vmatpush1.bf16.msra.mxu0 %v419
  %469 = vmatprep.subr.bf16.mxu0 %v423
  %470 = vmatpush1.bf16.msra.mxu0 %v422
  %471 = vmatprep.subr.bf16.mxu0 %v426
  %472 = vmatpush1.bf16.msra.mxu0 %v425
  %473 = vmatprep.subr.bf16.mxu0 %v429
  %474 = vmatpush1.bf16.msra.mxu0 %v428
  %475 = vmatprep.subr.bf16.mxu0 %v432
  %476 = vmatpush1.bf16.msra.mxu0 %v431
  %477 = vmatprep.subr.bf16.mxu0 %v435
  %478 = vmatpush1.bf16.msra.mxu0 %v434
  %479 = vmatprep.subr.bf16.mxu0 %v438
  %480 = vmatpush1.bf16.msra.mxu0 %v437
  %481 = vmatprep.subr.bf16.mxu0 %v441
  %482 = vmatpush1.bf16.msra.mxu0 %v440
  %483 = vmatprep.subr.bf16.mxu0 0
  %484 = vmatpush1.bf16.msra.mxu0 0
  %485 = vmatprep.subr.bf16.mxu0 0
  %486 = vmatpush1.bf16.msra.mxu0 0
  %487 = vmatprep.subr.bf16.mxu0 0
  %488 = vmatpush1.bf16.msra.mxu0 0
  %489 = vmatprep.subr.bf16.mxu0 0
  %490 = vmatpush1.bf16.msra.mxu0 0
  %491 = vmatprep.subr.bf16.mxu0 0
  %492 = vmatpush1.bf16.msra.mxu0 0
  %493 = vmatprep.subr.bf16.mxu0 0
  %494 = vmatpush1.bf16.msra.mxu0 0
  %495 = vmatprep.subr.bf16.mxu0 0
  %496 = vmatpush1.bf16.msra.mxu0 0
  %497 = vmatprep.subr.bf16.mxu0 0
  %498 = vmatpush1.bf16.msra.mxu0 0
  %499 = vmatprep.mubr.bf16.mxu0 0
  %500 = vmatmul.mubr.bf16.gmra.mrb[0].mxu0 %v306
  %v501 = vpop.f32.mrb[0].mxu0
  %v502 = vadd.f32 0.0, %v501
  %v503 = vpop.f32.mrb[0].mxu0
  %v504 = vadd.f32 0.0, %v503
  %v505 = vpop.f32.mrb[0].mxu0
  %v506 = vpop.f32.mrb[0].mxu0
  %507 = vdwg.mxu0
  %508 = vmatprep.subr.bf16.mxu0 0
  %509 = vmatpush1.bf16.msra.mxu0 %v421
  %510 = vmatprep.subr.bf16.mxu0 0
  %511 = vmatpush1.bf16.msra.mxu0 %v424
  %512 = vmatprep.subr.bf16.mxu0 0
  %513 = vmatpush1.bf16.msra.mxu0 %v427
  %514 = vmatprep.subr.bf16.mxu0 0
  %515 = vmatpush1.bf16.msra.mxu0 %v430
  %516 = vmatprep.subr.bf16.mxu0 0
  %517 = vmatpush1.bf16.msra.mxu0 %v433
  %518 = vmatprep.subr.bf16.mxu0 0
  %519 = vmatpush1.bf16.msra.mxu0 %v436
  %520 = vmatprep.subr.bf16.mxu0 0
  %521 = vmatpush1.bf16.msra.mxu0 %v439
  %522 = vmatprep.subr.bf16.mxu0 0
  %523 = vmatpush1.bf16.msra.mxu0 %v442
  %524 = vmatprep.subr.bf16.mxu0 0
  %525 = vmatpush1.bf16.msra.mxu0 0
  %526 = vmatprep.subr.bf16.mxu0 0
  %527 = vmatpush1.bf16.msra.mxu0 0
  %528 = vmatprep.subr.bf16.mxu0 0
  %529 = vmatpush1.bf16.msra.mxu0 0
  %530 = vmatprep.subr.bf16.mxu0 0
  %531 = vmatpush1.bf16.msra.mxu0 0
  %532 = vmatprep.subr.bf16.mxu0 0
  %533 = vmatpush1.bf16.msra.mxu0 0
  %534 = vmatprep.subr.bf16.mxu0 0
  %535 = vmatpush1.bf16.msra.mxu0 0
  %536 = vmatprep.subr.bf16.mxu0 0
  %537 = vmatpush1.bf16.msra.mxu0 0
  %538 = vmatprep.subr.bf16.mxu0 0
  %539 = vmatpush1.bf16.msra.mxu0 0
  %540 = vmatprep.mubr.bf16.mxu0 0
  %541 = vmatmul.mubr.bf16.gmra.mrb[0].mxu0 %v306
  %v542 = vpop.f32.mrb[0].mxu0
  %v543 = vadd.f32 0.0, %v542
  %v544 = vpop.f32.mrb[0].mxu0
  %v545 = vpop.f32.mrb[0].mxu0
  %v546 = vpop.f32.mrb[0].mxu0
  %547 = vdwg.mxu0
  %s548 = scalar_lea.vmem %s0, 8
  %v549 = vld [vmem:[%s548] sm:$0xff]
  %v550 = vadd.f32 %v549, %v502
  %v551 = vxor.u32 %v550, 2147483648
  %v552 = vmul.f32 %v551, 1.442695
  %v553 = vpow.pop %v552
  %v554 = vadd.f32 %v553, 1.0
  %v555 = vrcp.pop %v554
  %v556 = vmul.f32 1.0, %v555
  %s557 = scalar_lea.vmem %s1, 8
  %v558 = vld [vmem:[%s557] sm:$0xff]
  %v559 = vadd.f32 %v558, %v504
  %v560 = vxor.u32 %v559, 2147483648
  %v561 = vmul.f32 %v560, 1.442695
  %v562 = vpow.pop %v561
  %v563 = vadd.f32 %v562, 1.0
  %v564 = vrcp.pop %v563
  %v565 = vmul.f32 1.0, %v564
  %s566 = scalar_lea.vmem %s2, 8
  %v567 = vld [vmem:[%s566] sm:$0xff]
  %v568 = vadd.f32 %v543, %v35
  %v569 = vmul.f32 %v556, %v568
  %v570 = vadd.f32 %v567, %v569
  %v571 = vtanh.pop %v570
  %v572 = vsub.f32 1.0, %v565
  %v573 = vmul.f32 %v572, %v571
  %v574 = vmul.f32 %v565, %v304
  %v575 = vadd.f32 %v573, %v574
  %s576 = scalar_lea.vmem %s6, 8
  %577 = vst [vmem:[%s576] sm:$0xff] %v575
  %v578 = vpack.c.bf16 %v575, %v575
  %v579 = vld [vmem:[%s4] sm:$0xff]
  %v580 = vld [vmem:[%s4 + $0x8] sm:$0xf]
  %v581 = vld [vmem:[%s4 + $0xc] sm:$0xff]
  %v582 = vld [vmem:[%s4 + $0x14] sm:$0xf]
  %v583 = vld [vmem:[%s4 + $0x18] sm:$0xff]
  %v584 = vld [vmem:[%s4 + $0x20] sm:$0xf]
  %v585 = vld [vmem:[%s4 + $0x24] sm:$0xff]
  %v586 = vld [vmem:[%s4 + $0x2c] sm:$0xf]
  %v587 = vld [vmem:[%s4 + $0x30] sm:$0xff]
  %v588 = vld [vmem:[%s4 + $0x38] sm:$0xf]
  %v589 = vld [vmem:[%s4 + $0x3c] sm:$0xff]
  %v590 = vld [vmem:[%s4 + $0x44] sm:$0xf]
  %v591 = vld [vmem:[%s4 + $0x48] sm:$0xff]
  %v592 = vld [vmem:[%s4 + $0x50] sm:$0xf]
  %v593 = vld [vmem:[%s4 + $0x54] sm:$0xff]
  %v594 = vld [vmem:[%s4 + $0x5c] sm:$0xf]
  %v595 = vld [vmem:[%s4 + $0x60] sm:$0xff]
  %v596 = vld [vmem:[%s4 + $0x68] sm:$0xf]
  %v597 = vld [vmem:[%s4 + $0x6c] sm:$0xff]
  %v598 = vld [vmem:[%s4 + $0x74] sm:$0xf]
  %v599 = vld [vmem:[%s4 + $0x78] sm:$0xff]
  %v600 = vld [vmem:[%s4 + $0x80] sm:$0xf]
  %v601 = vld [vmem:[%s4 + $0x84] sm:$0xff]
  %v602 = vld [vmem:[%s4 + $0x8c] sm:$0xf]
  %v603 = vld [vmem:[%s4 + $0x90] sm:$0xff]
  %v604 = vld [vmem:[%s4 + $0x98] sm:$0xf]
  %v605 = vld [vmem:[%s4 + $0x9c] sm:$0xff]
  %v606 = vld [vmem:[%s4 + $0xa4] sm:$0xf]
  %v607 = vld [vmem:[%s4 + $0xa8] sm:$0xff]
  %v608 = vld [vmem:[%s4 + $0xb0] sm:$0xf]
  %v609 = vld [vmem:[%s4 + $0xb4] sm:$0xff]
  %v610 = vld [vmem:[%s4 + $0xbc] sm:$0xf]
  %v643 = vunpack.c.l.b16 %v579
  %v644 = vunpack.c.h.b16 %v579
  %v645 = vunpack.c.l.b16 %v580
  %v646 = vunpack.c.l.b16 %v581
  %v647 = vunpack.c.h.b16 %v581
  %v648 = vunpack.c.l.b16 %v582
  %v649 = vunpack.c.l.b16 %v583
  %v650 = vunpack.c.h.b16 %v583
  %v651 = vunpack.c.l.b16 %v584
  %v652 = vunpack.c.l.b16 %v585
  %v653 = vunpack.c.h.b16 %v585
  %v654 = vunpack.c.l.b16 %v586
  %v655 = vunpack.c.l.b16 %v587
  %v656 = vunpack.c.h.b16 %v587
  %v657 = vunpack.c.l.b16 %v588
  %v658 = vunpack.c.l.b16 %v589
  %v659 = vunpack.c.h.b16 %v589
  %v660 = vunpack.c.l.b16 %v590
  %v661 = vunpack.c.l.b16 %v591
  %v662 = vunpack.c.h.b16 %v591
  %v663 = vunpack.c.l.b16 %v592
  %v664 = vunpack.c.l.b16 %v593
  %v665 = vunpack.c.h.b16 %v593
  %v666 = vunpack.c.l.b16 %v594
  %v667 = vunpack.c.l.b16 %v595
  %v668 = vunpack.c.h.b16 %v595
  %v669 = vunpack.c.l.b16 %v596
  %v670 = vunpack.c.l.b16 %v597
  %v671 = vunpack.c.h.b16 %v597
  %v672 = vunpack.c.l.b16 %v598
  %v673 = vunpack.c.l.b16 %v599
  %v674 = vunpack.c.h.b16 %v599
  %v675 = vunpack.c.l.b16 %v600
  %v676 = vunpack.c.l.b16 %v601
  %v677 = vunpack.c.h.b16 %v601
  %v678 = vunpack.c.l.b16 %v602
  %v679 = vunpack.c.l.b16 %v603
  %v680 = vunpack.c.h.b16 %v603
  %v681 = vunpack.c.l.b16 %v604
  %v682 = vunpack.c.l.b16 %v605
  %v683 = vunpack.c.h.b16 %v605
  %v684 = vunpack.c.l.b16 %v606
  %v685 = vunpack.c.l.b16 %v607
  %v686 = vunpack.c.h.b16 %v607
  %v687 = vunpack.c.l.b16 %v608
  %v688 = vunpack.c.l.b16 %v609
  %v689 = vunpack.c.h.b16 %v609
  %v690 = vunpack.c.l.b16 %v610
  %v691 = vpack.c.b16 %v646, %v643
  %v692 = vpack.c.b16 %v647, %v644
  %v693 = vpack.c.b16 %v648, %v645
  %v694 = vpack.c.b16 %v652, %v649
  %v695 = vpack.c.b16 %v653, %v650
  %v696 = vpack.c.b16 %v654, %v651
  %v697 = vpack.c.b16 %v658, %v655
  %v698 = vpack.c.b16 %v659, %v656
  %v699 = vpack.c.b16 %v660, %v657
  %v700 = vpack.c.b16 %v664, %v661
  %v701 = vpack.c.b16 %v665, %v662
  %v702 = vpack.c.b16 %v666, %v663
  %v703 = vpack.c.b16 %v670, %v667
  %v704 = vpack.c.b16 %v671, %v668
  %v705 = vpack.c.b16 %v672, %v669
  %v706 = vpack.c.b16 %v676, %v673
  %v707 = vpack.c.b16 %v677, %v674
  %v708 = vpack.c.b16 %v678, %v675
  %v709 = vpack.c.b16 %v682, %v679
  %v710 = vpack.c.b16 %v683, %v680
  %v711 = vpack.c.b16 %v684, %v681
  %v712 = vpack.c.b16 %v688, %v685
  %v713 = vpack.c.b16 %v689, %v686
  %v714 = vpack.c.b16 %v690, %v687
  %739 = vmatprep.subr.bf16.mxu0 %v692
  %740 = vmatpush1.bf16.msra.mxu0 %v691
  %741 = vmatprep.subr.bf16.mxu0 %v695
  %742 = vmatpush1.bf16.msra.mxu0 %v694
  %743 = vmatprep.subr.bf16.mxu0 %v698
  %744 = vmatpush1.bf16.msra.mxu0 %v697
  %745 = vmatprep.subr.bf16.mxu0 %v701
  %746 = vmatpush1.bf16.msra.mxu0 %v700
  %747 = vmatprep.subr.bf16.mxu0 %v704
  %748 = vmatpush1.bf16.msra.mxu0 %v703
  %749 = vmatprep.subr.bf16.mxu0 %v707
  %750 = vmatpush1.bf16.msra.mxu0 %v706
  %751 = vmatprep.subr.bf16.mxu0 %v710
  %752 = vmatpush1.bf16.msra.mxu0 %v709
  %753 = vmatprep.subr.bf16.mxu0 %v713
  %754 = vmatpush1.bf16.msra.mxu0 %v712
  %755 = vmatprep.subr.bf16.mxu0 0
  %756 = vmatpush1.bf16.msra.mxu0 0
  %757 = vmatprep.subr.bf16.mxu0 0
  %758 = vmatpush1.bf16.msra.mxu0 0
  %759 = vmatprep.subr.bf16.mxu0 0
  %760 = vmatpush1.bf16.msra.mxu0 0
  %761 = vmatprep.subr.bf16.mxu0 0
  %762 = vmatpush1.bf16.msra.mxu0 0
  %763 = vmatprep.subr.bf16.mxu0 0
  %764 = vmatpush1.bf16.msra.mxu0 0
  %765 = vmatprep.subr.bf16.mxu0 0
  %766 = vmatpush1.bf16.msra.mxu0 0
  %767 = vmatprep.subr.bf16.mxu0 0
  %768 = vmatpush1.bf16.msra.mxu0 0
  %769 = vmatprep.subr.bf16.mxu0 0
  %770 = vmatpush1.bf16.msra.mxu0 0
  %771 = vmatprep.mubr.bf16.mxu0 0
  %772 = vmatmul.mubr.bf16.gmra.mrb[0].mxu0 %v578
  %v773 = vpop.f32.mrb[0].mxu0
  %v774 = vadd.f32 0.0, %v773
  %v775 = vpop.f32.mrb[0].mxu0
  %v776 = vadd.f32 0.0, %v775
  %v777 = vpop.f32.mrb[0].mxu0
  %v778 = vpop.f32.mrb[0].mxu0
  %779 = vdwg.mxu0
  %780 = vmatprep.subr.bf16.mxu0 0
  %781 = vmatpush1.bf16.msra.mxu0 %v693
  %782 = vmatprep.subr.bf16.mxu0 0
  %783 = vmatpush1.bf16.msra.mxu0 %v696
  %784 = vmatprep.subr.bf16.mxu0 0
  %785 = vmatpush1.bf16.msra.mxu0 %v699
  %786 = vmatprep.subr.bf16.mxu0 0
  %787 = vmatpush1.bf16.msra.mxu0 %v702
  %788 = vmatprep.subr.bf16.mxu0 0
  %789 = vmatpush1.bf16.msra.mxu0 %v705
  %790 = vmatprep.subr.bf16.mxu0 0
  %791 = vmatpush1.bf16.msra.mxu0 %v708
  %792 = vmatprep.subr.bf16.mxu0 0
  %793 = vmatpush1.bf16.msra.mxu0 %v711
  %794 = vmatprep.subr.bf16.mxu0 0
  %795 = vmatpush1.bf16.msra.mxu0 %v714
  %796 = vmatprep.subr.bf16.mxu0 0
  %797 = vmatpush1.bf16.msra.mxu0 0
  %798 = vmatprep.subr.bf16.mxu0 0
  %799 = vmatpush1.bf16.msra.mxu0 0
  %800 = vmatprep.subr.bf16.mxu0 0
  %801 = vmatpush1.bf16.msra.mxu0 0
  %802 = vmatprep.subr.bf16.mxu0 0
  %803 = vmatpush1.bf16.msra.mxu0 0
  %804 = vmatprep.subr.bf16.mxu0 0
  %805 = vmatpush1.bf16.msra.mxu0 0
  %806 = vmatprep.subr.bf16.mxu0 0
  %807 = vmatpush1.bf16.msra.mxu0 0
  %808 = vmatprep.subr.bf16.mxu0 0
  %809 = vmatpush1.bf16.msra.mxu0 0
  %810 = vmatprep.subr.bf16.mxu0 0
  %811 = vmatpush1.bf16.msra.mxu0 0
  %812 = vmatprep.mubr.bf16.mxu0 0
  %813 = vmatmul.mubr.bf16.gmra.mrb[0].mxu0 %v578
  %v814 = vpop.f32.mrb[0].mxu0
  %v815 = vadd.f32 0.0, %v814
  %v816 = vpop.f32.mrb[0].mxu0
  %v817 = vpop.f32.mrb[0].mxu0
  %v818 = vpop.f32.mrb[0].mxu0
  %819 = vdwg.mxu0
  %s820 = scalar_lea.vmem %s0, 16
  %v821 = vld [vmem:[%s820] sm:$0xff]
  %v822 = vadd.f32 %v821, %v774
  %v823 = vxor.u32 %v822, 2147483648
  %v824 = vmul.f32 %v823, 1.442695
  %v825 = vpow.pop %v824
  %v826 = vadd.f32 %v825, 1.0
  %v827 = vrcp.pop %v826
  %v828 = vmul.f32 1.0, %v827
  %s829 = scalar_lea.vmem %s1, 16
  %v830 = vld [vmem:[%s829] sm:$0xff]
  %v831 = vadd.f32 %v830, %v776
  %v832 = vxor.u32 %v831, 2147483648
  %v833 = vmul.f32 %v832, 1.442695
  %v834 = vpow.pop %v833
  %v835 = vadd.f32 %v834, 1.0
  %v836 = vrcp.pop %v835
  %v837 = vmul.f32 1.0, %v836
  %s838 = scalar_lea.vmem %s2, 16
  %v839 = vld [vmem:[%s838] sm:$0xff]
  %v840 = vadd.f32 %v815, %v35
  %v841 = vmul.f32 %v828, %v840
  %v842 = vadd.f32 %v839, %v841
  %v843 = vtanh.pop %v842
  %v844 = vsub.f32 1.0, %v837
  %v845 = vmul.f32 %v844, %v843
  %v846 = vmul.f32 %v837, %v575
  %v847 = vadd.f32 %v845, %v846
  %s848 = scalar_lea.vmem %s6, 16
  %849 = vst [vmem:[%s848] sm:$0xff] %v847
  %v850 = vpack.c.bf16 %v847, %v847
  %v851 = vld [vmem:[%s4] sm:$0xff]
  %v852 = vld [vmem:[%s4 + $0x8] sm:$0xf]
  %v853 = vld [vmem:[%s4 + $0xc] sm:$0xff]
  %v854 = vld [vmem:[%s4 + $0x14] sm:$0xf]
  %v855 = vld [vmem:[%s4 + $0x18] sm:$0xff]
  %v856 = vld [vmem:[%s4 + $0x20] sm:$0xf]
  %v857 = vld [vmem:[%s4 + $0x24] sm:$0xff]
  %v858 = vld [vmem:[%s4 + $0x2c] sm:$0xf]
  %v859 = vld [vmem:[%s4 + $0x30] sm:$0xff]
  %v860 = vld [vmem:[%s4 + $0x38] sm:$0xf]
  %v861 = vld [vmem:[%s4 + $0x3c] sm:$0xff]
  %v862 = vld [vmem:[%s4 + $0x44] sm:$0xf]
  %v863 = vld [vmem:[%s4 + $0x48] sm:$0xff]
  %v864 = vld [vmem:[%s4 + $0x50] sm:$0xf]
  %v865 = vld [vmem:[%s4 + $0x54] sm:$0xff]
  %v866 = vld [vmem:[%s4 + $0x5c] sm:$0xf]
  %v867 = vld [vmem:[%s4 + $0x60] sm:$0xff]
  %v868 = vld [vmem:[%s4 + $0x68] sm:$0xf]
  %v869 = vld [vmem:[%s4 + $0x6c] sm:$0xff]
  %v870 = vld [vmem:[%s4 + $0x74] sm:$0xf]
  %v871 = vld [vmem:[%s4 + $0x78] sm:$0xff]
  %v872 = vld [vmem:[%s4 + $0x80] sm:$0xf]
  %v873 = vld [vmem:[%s4 + $0x84] sm:$0xff]
  %v874 = vld [vmem:[%s4 + $0x8c] sm:$0xf]
  %v875 = vld [vmem:[%s4 + $0x90] sm:$0xff]
  %v876 = vld [vmem:[%s4 + $0x98] sm:$0xf]
  %v877 = vld [vmem:[%s4 + $0x9c] sm:$0xff]
  %v878 = vld [vmem:[%s4 + $0xa4] sm:$0xf]
  %v879 = vld [vmem:[%s4 + $0xa8] sm:$0xff]
  %v880 = vld [vmem:[%s4 + $0xb0] sm:$0xf]
  %v881 = vld [vmem:[%s4 + $0xb4] sm:$0xff]
  %v882 = vld [vmem:[%s4 + $0xbc] sm:$0xf]
  %v915 = vunpack.c.l.b16 %v851
  %v916 = vunpack.c.h.b16 %v851
  %v917 = vunpack.c.l.b16 %v852
  %v918 = vunpack.c.l.b16 %v853
  %v919 = vunpack.c.h.b16 %v853
  %v920 = vunpack.c.l.b16 %v854
  %v921 = vunpack.c.l.b16 %v855
  %v922 = vunpack.c.h.b16 %v855
  %v923 = vunpack.c.l.b16 %v856
  %v924 = vunpack.c.l.b16 %v857
  %v925 = vunpack.c.h.b16 %v857
  %v926 = vunpack.c.l.b16 %v858
  %v927 = vunpack.c.l.b16 %v859
  %v928 = vunpack.c.h.b16 %v859
  %v929 = vunpack.c.l.b16 %v860
  %v930 = vunpack.c.l.b16 %v861
  %v931 = vunpack.c.h.b16 %v861
  %v932 = vunpack.c.l.b16 %v862
  %v933 = vunpack.c.l.b16 %v863
  %v934 = vunpack.c.h.b16 %v863
  %v935 = vunpack.c.l.b16 %v864
  %v936 = vunpack.c.l.b16 %v865
  %v937 = vunpack.c.h.b16 %v865
  %v938 = vunpack.c.l.b16 %v866
  %v939 = vunpack.c.l.b16 %v867
  %v940 = vunpack.c.h.b16 %v867
  %v941 = vunpack.c.l.b16 %v868
  %v942 = vunpack.c.l.b16 %v869
  %v943 = vunpack.c.h.b16 %v869
  %v944 = vunpack.c.l.b16 %v870
  %v945 = vunpack.c.l.b16 %v871
  %v946 = vunpack.c.h.b16 %v871
  %v947 = vunpack.c.l.b16 %v872
  %v948 = vunpack.c.l.b16 %v873
  %v949 = vunpack.c.h.b16 %v873
  %v950 = vunpack.c.l.b16 %v874
  %v951 = vunpack.c.l.b16 %v875
  %v952 = vunpack.c.h.b16 %v875
  %v953 = vunpack.c.l.b16 %v876
  %v954 = vunpack.c.l.b16 %v877
  %v955 = vunpack.c.h.b16 %v877
  %v956 = vunpack.c.l.b16 %v878
  %v957 = vunpack.c.l.b16 %v879
  %v958 = vunpack.c.h.b16 %v879
  %v959 = vunpack.c.l.b16 %v880
  %v960 = vunpack.c.l.b16 %v881
  %v961 = vunpack.c.h.b16 %v881
  %v962 = vunpack.c.l.b16 %v882
  %v963 = vpack.c.b16 %v918, %v915
  %v964 = vpack.c.b16 %v919, %v916
  %v965 = vpack.c.b16 %v920, %v917
  %v966 = vpack.c.b16 %v924, %v921
  %v967 = vpack.c.b16 %v925, %v922
  %v968 = vpack.c.b16 %v926, %v923
  %v969 = vpack.c.b16 %v930, %v927
  %v970 = vpack.c.b16 %v931, %v928
  %v971 = vpack.c.b16 %v932, %v929
  %v972 = vpack.c.b16 %v936, %v933
  %v973 = vpack.c.b16 %v937, %v934
  %v974 = vpack.c.b16 %v938, %v935
  %v975 = vpack.c.b16 %v942, %v939
  %v976 = vpack.c.b16 %v943, %v940
  %v977 = vpack.c.b16 %v944, %v941
  %v978 = vpack.c.b16 %v948, %v945
  %v979 = vpack.c.b16 %v949, %v946
  %v980 = vpack.c.b16 %v950, %v947
  %v981 = vpack.c.b16 %v954, %v951
  %v982 = vpack.c.b16 %v955, %v952
  %v983 = vpack.c.b16 %v956, %v953
  %v984 = vpack.c.b16 %v960, %v957
  %v985 = vpack.c.b16 %v961, %v958
  %v986 = vpack.c.b16 %v962, %v959
  %1011 = vmatprep.subr.bf16.mxu0 %v964
  %1012 = vmatpush1.bf16.msra.mxu0 %v963
  %1013 = vmatprep.subr.bf16.mxu0 %v967
  %1014 = vmatpush1.bf16.msra.mxu0 %v966
  %1015 = vmatprep.subr.bf16.mxu0 %v970
  %1016 = vmatpush1.bf16.msra.mxu0 %v969
  %1017 = vmatprep.subr.bf16.mxu0 %v973
  %1018 = vmatpush1.bf16.msra.mxu0 %v972
  %1019 = vmatprep.subr.bf16.mxu0 %v976
  %1020 = vmatpush1.bf16.msra.mxu0 %v975
  %1021 = vmatprep.subr.bf16.mxu0 %v979
  %1022 = vmatpush1.bf16.msra.mxu0 %v978
  %1023 = vmatprep.subr.bf16.mxu0 %v982
  %1024 = vmatpush1.bf16.msra.mxu0 %v981
  %1025 = vmatprep.subr.bf16.mxu0 %v985
  %1026 = vmatpush1.bf16.msra.mxu0 %v984
  %1027 = vmatprep.subr.bf16.mxu0 0
  %1028 = vmatpush1.bf16.msra.mxu0 0
  %1029 = vmatprep.subr.bf16.mxu0 0
  %1030 = vmatpush1.bf16.msra.mxu0 0
  %1031 = vmatprep.subr.bf16.mxu0 0
  %1032 = vmatpush1.bf16.msra.mxu0 0
  %1033 = vmatprep.subr.bf16.mxu0 0
  %1034 = vmatpush1.bf16.msra.mxu0 0
  %1035 = vmatprep.subr.bf16.mxu0 0
  %1036 = vmatpush1.bf16.msra.mxu0 0
  %1037 = vmatprep.subr.bf16.mxu0 0
  %1038 = vmatpush1.bf16.msra.mxu0 0
  %1039 = vmatprep.subr.bf16.mxu0 0
  %1040 = vmatpush1.bf16.msra.mxu0 0
  %1041 = vmatprep.subr.bf16.mxu0 0
  %1042 = vmatpush1.bf16.msra.mxu0 0
  %1043 = vmatprep.mubr.bf16.mxu0 0
  %1044 = vmatmul.mubr.bf16.gmra.mrb[0].mxu0 %v850
  %v1045 = vpop.f32.mrb[0].mxu0
  %v1046 = vadd.f32 0.0, %v1045
  %v1047 = vpop.f32.mrb[0].mxu0
  %v1048 = vadd.f32 0.0, %v1047
  %v1049 = vpop.f32.mrb[0].mxu0
  %v1050 = vpop.f32.mrb[0].mxu0
  %1051 = vdwg.mxu0
  %1052 = vmatprep.subr.bf16.mxu0 0
  %1053 = vmatpush1.bf16.msra.mxu0 %v965
  %1054 = vmatprep.subr.bf16.mxu0 0
  %1055 = vmatpush1.bf16.msra.mxu0 %v968
  %1056 = vmatprep.subr.bf16.mxu0 0
  %1057 = vmatpush1.bf16.msra.mxu0 %v971
  %1058 = vmatprep.subr.bf16.mxu0 0
  %1059 = vmatpush1.bf16.msra.mxu0 %v974
  %1060 = vmatprep.subr.bf16.mxu0 0
  %1061 = vmatpush1.bf16.msra.mxu0 %v977
  %1062 = vmatprep.subr.bf16.mxu0 0
  %1063 = vmatpush1.bf16.msra.mxu0 %v980
  %1064 = vmatprep.subr.bf16.mxu0 0
  %1065 = vmatpush1.bf16.msra.mxu0 %v983
  %1066 = vmatprep.subr.bf16.mxu0 0
  %1067 = vmatpush1.bf16.msra.mxu0 %v986
  %1068 = vmatprep.subr.bf16.mxu0 0
  %1069 = vmatpush1.bf16.msra.mxu0 0
  %1070 = vmatprep.subr.bf16.mxu0 0
  %1071 = vmatpush1.bf16.msra.mxu0 0
  %1072 = vmatprep.subr.bf16.mxu0 0
  %1073 = vmatpush1.bf16.msra.mxu0 0
  %1074 = vmatprep.subr.bf16.mxu0 0
  %1075 = vmatpush1.bf16.msra.mxu0 0
  %1076 = vmatprep.subr.bf16.mxu0 0
  %1077 = vmatpush1.bf16.msra.mxu0 0
  %1078 = vmatprep.subr.bf16.mxu0 0
  %1079 = vmatpush1.bf16.msra.mxu0 0
  %1080 = vmatprep.subr.bf16.mxu0 0
  %1081 = vmatpush1.bf16.msra.mxu0 0
  %1082 = vmatprep.subr.bf16.mxu0 0
  %1083 = vmatpush1.bf16.msra.mxu0 0
  %1084 = vmatprep.mubr.bf16.mxu0 0
  %1085 = vmatmul.mubr.bf16.gmra.mrb[0].mxu0 %v850
  %v1086 = vpop.f32.mrb[0].mxu0
  %v1087 = vadd.f32 0.0, %v1086
  %v1088 = vpop.f32.mrb[0].mxu0
  %v1089 = vpop.f32.mrb[0].mxu0
  %v1090 = vpop.f32.mrb[0].mxu0
  %1091 = vdwg.mxu0
  %s1092 = scalar_lea.vmem %s0, 24
  %v1093 = vld [vmem:[%s1092] sm:$0xff]
  %v1094 = vadd.f32 %v1093, %v1046
  %v1095 = vxor.u32 %v1094, 2147483648
  %v1096 = vmul.f32 %v1095, 1.442695
  %v1097 = vpow.pop %v1096
  %v1098 = vadd.f32 %v1097, 1.0
  %v1099 = vrcp.pop %v1098
  %v1100 = vmul.f32 1.0, %v1099
  %s1101 = scalar_lea.vmem %s1, 24
  %v1102 = vld [vmem:[%s1101] sm:$0xff]
  %v1103 = vadd.f32 %v1102, %v1048
  %v1104 = vxor.u32 %v1103, 2147483648
  %v1105 = vmul.f32 %v1104, 1.442695
  %v1106 = vpow.pop %v1105
  %v1107 = vadd.f32 %v1106, 1.0
  %v1108 = vrcp.pop %v1107
  %v1109 = vmul.f32 1.0, %v1108
  %s1110 = scalar_lea.vmem %s2, 24
  %v1111 = vld [vmem:[%s1110] sm:$0xff]
  %v1112 = vadd.f32 %v1087, %v35
  %v1113 = vmul.f32 %v1100, %v1112
  %v1114 = vadd.f32 %v1111, %v1113
  %v1115 = vtanh.pop %v1114
  %v1116 = vsub.f32 1.0, %v1109
  %v1117 = vmul.f32 %v1116, %v1115
  %v1118 = vmul.f32 %v1109, %v847
  %v1119 = vadd.f32 %v1117, %v1118
  %s1120 = scalar_lea.vmem %s6, 24
  %1121 = vst [vmem:[%s1120] sm:$0xff] %v1119
  %v1122 = vpack.c.bf16 %v1119, %v1119
  %v1123 = vld [vmem:[%s4] sm:$0xff]
  %v1124 = vld [vmem:[%s4 + $0x8] sm:$0xf]
  %v1125 = vld [vmem:[%s4 + $0xc] sm:$0xff]
  %v1126 = vld [vmem:[%s4 + $0x14] sm:$0xf]
  %v1127 = vld [vmem:[%s4 + $0x18] sm:$0xff]
  %v1128 = vld [vmem:[%s4 + $0x20] sm:$0xf]
  %v1129 = vld [vmem:[%s4 + $0x24] sm:$0xff]
  %v1130 = vld [vmem:[%s4 + $0x2c] sm:$0xf]
  %v1131 = vld [vmem:[%s4 + $0x30] sm:$0xff]
  %v1132 = vld [vmem:[%s4 + $0x38] sm:$0xf]
  %v1133 = vld [vmem:[%s4 + $0x3c] sm:$0xff]
  %v1134 = vld [vmem:[%s4 + $0x44] sm:$0xf]
  %v1135 = vld [vmem:[%s4 + $0x48] sm:$0xff]
  %v1136 = vld [vmem:[%s4 + $0x50] sm:$0xf]
  %v1137 = vld [vmem:[%s4 + $0x54] sm:$0xff]
  %v1138 = vld [vmem:[%s4 + $0x5c] sm:$0xf]
  %v1139 = vld [vmem:[%s4 + $0x60] sm:$0xff]
  %v1140 = vld [vmem:[%s4 + $0x68] sm:$0xf]
  %v1141 = vld [vmem:[%s4 + $0x6c] sm:$0xff]
  %v1142 = vld [vmem:[%s4 + $0x74] sm:$0xf]
  %v1143 = vld [vmem:[%s4 + $0x78] sm:$0xff]
  %v1144 = vld [vmem:[%s4 + $0x80] sm:$0xf]
  %v1145 = vld [vmem:[%s4 + $0x84] sm:$0xff]
  %v1146 = vld [vmem:[%s4 + $0x8c] sm:$0xf]
  %v1147 = vld [vmem:[%s4 + $0x90] sm:$0xff]
  %v1148 = vld [vmem:[%s4 + $0x98] sm:$0xf]
  %v1149 = vld [vmem:[%s4 + $0x9c] sm:$0xff]
  %v1150 = vld [vmem:[%s4 + $0xa4] sm:$0xf]
  %v1151 = vld [vmem:[%s4 + $0xa8] sm:$0xff]
  %v1152 = vld [vmem:[%s4 + $0xb0] sm:$0xf]
  %v1153 = vld [vmem:[%s4 + $0xb4] sm:$0xff]
  %v1154 = vld [vmem:[%s4 + $0xbc] sm:$0xf]
  %v1187 = vunpack.c.l.b16 %v1123
  %v1188 = vunpack.c.h.b16 %v1123
  %v1189 = vunpack.c.l.b16 %v1124
  %v1190 = vunpack.c.l.b16 %v1125
  %v1191 = vunpack.c.h.b16 %v1125
  %v1192 = vunpack.c.l.b16 %v1126
  %v1193 = vunpack.c.l.b16 %v1127
  %v1194 = vunpack.c.h.b16 %v1127
  %v1195 = vunpack.c.l.b16 %v1128
  %v1196 = vunpack.c.l.b16 %v1129
  %v1197 = vunpack.c.h.b16 %v1129
  %v1198 = vunpack.c.l.b16 %v1130
  %v1199 = vunpack.c.l.b16 %v1131
  %v1200 = vunpack.c.h.b16 %v1131
  %v1201 = vunpack.c.l.b16 %v1132
  %v1202 = vunpack.c.l.b16 %v1133
  %v1203 = vunpack.c.h.b16 %v1133
  %v1204 = vunpack.c.l.b16 %v1134
  %v1205 = vunpack.c.l.b16 %v1135
  %v1206 = vunpack.c.h.b16 %v1135
  %v1207 = vunpack.c.l.b16 %v1136
  %v1208 = vunpack.c.l.b16 %v1137
  %v1209 = vunpack.c.h.b16 %v1137
  %v1210 = vunpack.c.l.b16 %v1138
  %v1211 = vunpack.c.l.b16 %v1139
  %v1212 = vunpack.c.h.b16 %v1139
  %v1213 = vunpack.c.l.b16 %v1140
  %v1214 = vunpack.c.l.b16 %v1141
  %v1215 = vunpack.c.h.b16 %v1141
  %v1216 = vunpack.c.l.b16 %v1142
  %v1217 = vunpack.c.l.b16 %v1143
  %v1218 = vunpack.c.h.b16 %v1143
  %v1219 = vunpack.c.l.b16 %v1144
  %v1220 = vunpack.c.l.b16 %v1145
  %v1221 = vunpack.c.h.b16 %v1145
  %v1222 = vunpack.c.l.b16 %v1146
  %v1223 = vunpack.c.l.b16 %v1147
  %v1224 = vunpack.c.h.b16 %v1147
  %v1225 = vunpack.c.l.b16 %v1148
  %v1226 = vunpack.c.l.b16 %v1149
  %v1227 = vunpack.c.h.b16 %v1149
  %v1228 = vunpack.c.l.b16 %v1150
  %v1229 = vunpack.c.l.b16 %v1151
  %v1230 = vunpack.c.h.b16 %v1151
  %v1231 = vunpack.c.l.b16 %v1152
  %v1232 = vunpack.c.l.b16 %v1153
  %v1233 = vunpack.c.h.b16 %v1153
  %v1234 = vunpack.c.l.b16 %v1154
  %v1235 = vpack.c.b16 %v1190, %v1187
  %v1236 = vpack.c.b16 %v1191, %v1188
  %v1237 = vpack.c.b16 %v1192, %v1189
  %v1238 = vpack.c.b16 %v1196, %v1193
  %v1239 = vpack.c.b16 %v1197, %v1194
  %v1240 = vpack.c.b16 %v1198, %v1195
  %v1241 = vpack.c.b16 %v1202, %v1199
  %v1242 = vpack.c.b16 %v1203, %v1200
  %v1243 = vpack.c.b16 %v1204, %v1201
  %v1244 = vpack.c.b16 %v1208, %v1205
  %v1245 = vpack.c.b16 %v1209, %v1206
  %v1246 = vpack.c.b16 %v1210, %v1207
  %v1247 = vpack.c.b16 %v1214, %v1211
  %v1248 = vpack.c.b16 %v1215, %v1212
  %v1249 = vpack.c.b16 %v1216, %v1213
  %v1250 = vpack.c.b16 %v1220, %v1217
  %v1251 = vpack.c.b16 %v1221, %v1218
  %v1252 = vpack.c.b16 %v1222, %v1219
  %v1253 = vpack.c.b16 %v1226, %v1223
  %v1254 = vpack.c.b16 %v1227, %v1224
  %v1255 = vpack.c.b16 %v1228, %v1225
  %v1256 = vpack.c.b16 %v1232, %v1229
  %v1257 = vpack.c.b16 %v1233, %v1230
  %v1258 = vpack.c.b16 %v1234, %v1231
  %1283 = vmatprep.subr.bf16.mxu0 %v1236
  %1284 = vmatpush1.bf16.msra.mxu0 %v1235
  %1285 = vmatprep.subr.bf16.mxu0 %v1239
  %1286 = vmatpush1.bf16.msra.mxu0 %v1238
  %1287 = vmatprep.subr.bf16.mxu0 %v1242
  %1288 = vmatpush1.bf16.msra.mxu0 %v1241
  %1289 = vmatprep.subr.bf16.mxu0 %v1245
  %1290 = vmatpush1.bf16.msra.mxu0 %v1244
  %1291 = vmatprep.subr.bf16.mxu0 %v1248
  %1292 = vmatpush1.bf16.msra.mxu0 %v1247
  %1293 = vmatprep.subr.bf16.mxu0 %v1251
  %1294 = vmatpush1.bf16.msra.mxu0 %v1250
  %1295 = vmatprep.subr.bf16.mxu0 %v1254
  %1296 = vmatpush1.bf16.msra.mxu0 %v1253
  %1297 = vmatprep.subr.bf16.mxu0 %v1257
  %1298 = vmatpush1.bf16.msra.mxu0 %v1256
  %1299 = vmatprep.subr.bf16.mxu0 0
  %1300 = vmatpush1.bf16.msra.mxu0 0
  %1301 = vmatprep.subr.bf16.mxu0 0
  %1302 = vmatpush1.bf16.msra.mxu0 0
  %1303 = vmatprep.subr.bf16.mxu0 0
  %1304 = vmatpush1.bf16.msra.mxu0 0
  %1305 = vmatprep.subr.bf16.mxu0 0
  %1306 = vmatpush1.bf16.msra.mxu0 0
  %1307 = vmatprep.subr.bf16.mxu0 0
  %1308 = vmatpush1.bf16.msra.mxu0 0
  %1309 = vmatprep.subr.bf16.mxu0 0
  %1310 = vmatpush1.bf16.msra.mxu0 0
  %1311 = vmatprep.subr.bf16.mxu0 0
  %1312 = vmatpush1.bf16.msra.mxu0 0
  %1313 = vmatprep.subr.bf16.mxu0 0
  %1314 = vmatpush1.bf16.msra.mxu0 0
  %1315 = vmatprep.mubr.bf16.mxu0 0
  %1316 = vmatmul.mubr.bf16.gmra.mrb[0].mxu0 %v1122
  %v1317 = vpop.f32.mrb[0].mxu0
  %v1318 = vadd.f32 0.0, %v1317
  %v1319 = vpop.f32.mrb[0].mxu0
  %v1320 = vadd.f32 0.0, %v1319
  %v1321 = vpop.f32.mrb[0].mxu0
  %v1322 = vpop.f32.mrb[0].mxu0
  %1323 = vdwg.mxu0
  %1324 = vmatprep.subr.bf16.mxu0 0
  %1325 = vmatpush1.bf16.msra.mxu0 %v1237
  %1326 = vmatprep.subr.bf16.mxu0 0
  %1327 = vmatpush1.bf16.msra.mxu0 %v1240
  %1328 = vmatprep.subr.bf16.mxu0 0
  %1329 = vmatpush1.bf16.msra.mxu0 %v1243
  %1330 = vmatprep.subr.bf16.mxu0 0
  %1331 = vmatpush1.bf16.msra.mxu0 %v1246
  %1332 = vmatprep.subr.bf16.mxu0 0
  %1333 = vmatpush1.bf16.msra.mxu0 %v1249
  %1334 = vmatprep.subr.bf16.mxu0 0
  %1335 = vmatpush1.bf16.msra.mxu0 %v1252
  %1336 = vmatprep.subr.bf16.mxu0 0
  %1337 = vmatpush1.bf16.msra.mxu0 %v1255
  %1338 = vmatprep.subr.bf16.mxu0 0
  %1339 = vmatpush1.bf16.msra.mxu0 %v1258
  %1340 = vmatprep.subr.bf16.mxu0 0
  %1341 = vmatpush1.bf16.msra.mxu0 0
  %1342 = vmatprep.subr.bf16.mxu0 0
  %1343 = vmatpush1.bf16.msra.mxu0 0
  %1344 = vmatprep.subr.bf16.mxu0 0
  %1345 = vmatpush1.bf16.msra.mxu0 0
  %1346 = vmatprep.subr.bf16.mxu0 0
  %1347 = vmatpush1.bf16.msra.mxu0 0
  %1348 = vmatprep.subr.bf16.mxu0 0
  %1349 = vmatpush1.bf16.msra.mxu0 0
  %1350 = vmatprep.subr.bf16.mxu0 0
  %1351 = vmatpush1.bf16.msra.mxu0 0
  %1352 = vmatprep.subr.bf16.mxu0 0
  %1353 = vmatpush1.bf16.msra.mxu0 0
  %1354 = vmatprep.subr.bf16.mxu0 0
  %1355 = vmatpush1.bf16.msra.mxu0 0
  %1356 = vmatprep.mubr.bf16.mxu0 0
  %1357 = vmatmul.mubr.bf16.gmra.mrb[0].mxu0 %v1122
  %v1358 = vpop.f32.mrb[0].mxu0
  %v1359 = vadd.f32 0.0, %v1358
  %v1360 = vpop.f32.mrb[0].mxu0
  %v1361 = vpop.f32.mrb[0].mxu0
  %v1362 = vpop.f32.mrb[0].mxu0
  %1363 = vdwg.mxu0
  %s1364 = scalar_lea.vmem %s0, 32
  %v1365 = vld [vmem:[%s1364] sm:$0xff]
  %v1366 = vadd.f32 %v1365, %v1318
  %v1367 = vxor.u32 %v1366, 2147483648
  %v1368 = vmul.f32 %v1367, 1.442695
  %v1369 = vpow.pop %v1368
  %v1370 = vadd.f32 %v1369, 1.0
  %v1371 = vrcp.pop %v1370
  %v1372 = vmul.f32 1.0, %v1371
  %s1373 = scalar_lea.vmem %s1, 32
  %v1374 = vld [vmem:[%s1373] sm:$0xff]
  %v1375 = vadd.f32 %v1374, %v1320
  %v1376 = vxor.u32 %v1375, 2147483648
  %v1377 = vmul.f32 %v1376, 1.442695
  %v1378 = vpow.pop %v1377
  %v1379 = vadd.f32 %v1378, 1.0
  %v1380 = vrcp.pop %v1379
  %v1381 = vmul.f32 1.0, %v1380
  %s1382 = scalar_lea.vmem %s2, 32
  %v1383 = vld [vmem:[%s1382] sm:$0xff]
  %v1384 = vadd.f32 %v1359, %v35
  %v1385 = vmul.f32 %v1372, %v1384
  %v1386 = vadd.f32 %v1383, %v1385
  %v1387 = vtanh.pop %v1386
  %v1388 = vsub.f32 1.0, %v1381
  %v1389 = vmul.f32 %v1388, %v1387
  %v1390 = vmul.f32 %v1381, %v1119
  %v1391 = vadd.f32 %v1389, %v1390
  %s1392 = scalar_lea.vmem %s6, 32
  %1393 = vst [vmem:[%s1392] sm:$0xff] %v1391
  %v1394 = vpack.c.bf16 %v1391, %v1391
  %v1395 = vld [vmem:[%s4] sm:$0xff]
  %v1396 = vld [vmem:[%s4 + $0x8] sm:$0xf]
  %v1397 = vld [vmem:[%s4 + $0xc] sm:$0xff]
  %v1398 = vld [vmem:[%s4 + $0x14] sm:$0xf]
  %v1399 = vld [vmem:[%s4 + $0x18] sm:$0xff]
  %v1400 = vld [vmem:[%s4 + $0x20] sm:$0xf]
  %v1401 = vld [vmem:[%s4 + $0x24] sm:$0xff]
  %v1402 = vld [vmem:[%s4 + $0x2c] sm:$0xf]
  %v1403 = vld [vmem:[%s4 + $0x30] sm:$0xff]
  %v1404 = vld [vmem:[%s4 + $0x38] sm:$0xf]
  %v1405 = vld [vmem:[%s4 + $0x3c] sm:$0xff]
  %v1406 = vld [vmem:[%s4 + $0x44] sm:$0xf]
  %v1407 = vld [vmem:[%s4 + $0x48] sm:$0xff]
  %v1408 = vld [vmem:[%s4 + $0x50] sm:$0xf]
  %v1409 = vld [vmem:[%s4 + $0x54] sm:$0xff]
  %v1410 = vld [vmem:[%s4 + $0x5c] sm:$0xf]
  %v1411 = vld [vmem:[%s4 + $0x60] sm:$0xff]
  %v1412 = vld [vmem:[%s4 + $0x68] sm:$0xf]
  %v1413 = vld [vmem:[%s4 + $0x6c] sm:$0xff]
  %v1414 = vld [vmem:[%s4 + $0x74] sm:$0xf]
  %v1415 = vld [vmem:[%s4 + $0x78] sm:$0xff]
  %v1416 = vld [vmem:[%s4 + $0x80] sm:$0xf]
  %v1417 = vld [vmem:[%s4 + $0x84] sm:$0xff]
  %v1418 = vld [vmem:[%s4 + $0x8c] sm:$0xf]
  %v1419 = vld [vmem:[%s4 + $0x90] sm:$0xff]
  %v1420 = vld [vmem:[%s4 + $0x98] sm:$0xf]
  %v1421 = vld [vmem:[%s4 + $0x9c] sm:$0xff]
  %v1422 = vld [vmem:[%s4 + $0xa4] sm:$0xf]
  %v1423 = vld [vmem:[%s4 + $0xa8] sm:$0xff]
  %v1424 = vld [vmem:[%s4 + $0xb0] sm:$0xf]
  %v1425 = vld [vmem:[%s4 + $0xb4] sm:$0xff]
  %v1426 = vld [vmem:[%s4 + $0xbc] sm:$0xf]
  %v1459 = vunpack.c.l.b16 %v1395
  %v1460 = vunpack.c.h.b16 %v1395
  %v1461 = vunpack.c.l.b16 %v1396
  %v1462 = vunpack.c.l.b16 %v1397
  %v1463 = vunpack.c.h.b16 %v1397
  %v1464 = vunpack.c.l.b16 %v1398
  %v1465 = vunpack.c.l.b16 %v1399
  %v1466 = vunpack.c.h.b16 %v1399
  %v1467 = vunpack.c.l.b16 %v1400
  %v1468 = vunpack.c.l.b16 %v1401
  %v1469 = vunpack.c.h.b16 %v1401
  %v1470 = vunpack.c.l.b16 %v1402
  %v1471 = vunpack.c.l.b16 %v1403
  %v1472 = vunpack.c.h.b16 %v1403
  %v1473 = vunpack.c.l.b16 %v1404
  %v1474 = vunpack.c.l.b16 %v1405
  %v1475 = vunpack.c.h.b16 %v1405
  %v1476 = vunpack.c.l.b16 %v1406
  %v1477 = vunpack.c.l.b16 %v1407
  %v1478 = vunpack.c.h.b16 %v1407
  %v1479 = vunpack.c.l.b16 %v1408
  %v1480 = vunpack.c.l.b16 %v1409
  %v1481 = vunpack.c.h.b16 %v1409
  %v1482 = vunpack.c.l.b16 %v1410
  %v1483 = vunpack.c.l.b16 %v1411
  %v1484 = vunpack.c.h.b16 %v1411
  %v1485 = vunpack.c.l.b16 %v1412
  %v1486 = vunpack.c.l.b16 %v1413
  %v1487 = vunpack.c.h.b16 %v1413
  %v1488 = vunpack.c.l.b16 %v1414
  %v1489 = vunpack.c.l.b16 %v1415
  %v1490 = vunpack.c.h.b16 %v1415
  %v1491 = vunpack.c.l.b16 %v1416
  %v1492 = vunpack.c.l.b16 %v1417
  %v1493 = vunpack.c.h.b16 %v1417
  %v1494 = vunpack.c.l.b16 %v1418
  %v1495 = vunpack.c.l.b16 %v1419
  %v1496 = vunpack.c.h.b16 %v1419
  %v1497 = vunpack.c.l.b16 %v1420
  %v1498 = vunpack.c.l.b16 %v1421
  %v1499 = vunpack.c.h.b16 %v1421
  %v1500 = vunpack.c.l.b16 %v1422
  %v1501 = vunpack.c.l.b16 %v1423
  %v1502 = vunpack.c.h.b16 %v1423
  %v1503 = vunpack.c.l.b16 %v1424
  %v1504 = vunpack.c.l.b16 %v1425
  %v1505 = vunpack.c.h.b16 %v1425
  %v1506 = vunpack.c.l.b16 %v1426
  %v1507 = vpack.c.b16 %v1462, %v1459
  %v1508 = vpack.c.b16 %v1463, %v1460
  %v1509 = vpack.c.b16 %v1464, %v1461
  %v1510 = vpack.c.b16 %v1468, %v1465
  %v1511 = vpack.c.b16 %v1469, %v1466
  %v1512 = vpack.c.b16 %v1470, %v1467
  %v1513 = vpack.c.b16 %v1474, %v1471
  %v1514 = vpack.c.b16 %v1475, %v1472
  %v1515 = vpack.c.b16 %v1476, %v1473
  %v1516 = vpack.c.b16 %v1480, %v1477
  %v1517 = vpack.c.b16 %v1481, %v1478
  %v1518 = vpack.c.b16 %v1482, %v1479
  %v1519 = vpack.c.b16 %v1486, %v1483
  %v1520 = vpack.c.b16 %v1487, %v1484
  %v1521 = vpack.c.b16 %v1488, %v1485
  %v1522 = vpack.c.b16 %v1492, %v1489
  %v1523 = vpack.c.b16 %v1493, %v1490
  %v1524 = vpack.c.b16 %v1494, %v1491
  %v1525 = vpack.c.b16 %v1498, %v1495
  %v1526 = vpack.c.b16 %v1499, %v1496
  %v1527 = vpack.c.b16 %v1500, %v1497
  %v1528 = vpack.c.b16 %v1504, %v1501
  %v1529 = vpack.c.b16 %v1505, %v1502
  %v1530 = vpack.c.b16 %v1506, %v1503
  %1555 = vmatprep.subr.bf16.mxu0 %v1508
  %1556 = vmatpush1.bf16.msra.mxu0 %v1507
  %1557 = vmatprep.subr.bf16.mxu0 %v1511
  %1558 = vmatpush1.bf16.msra.mxu0 %v1510
  %1559 = vmatprep.subr.bf16.mxu0 %v1514
  %1560 = vmatpush1.bf16.msra.mxu0 %v1513
  %1561 = vmatprep.subr.bf16.mxu0 %v1517
  %1562 = vmatpush1.bf16.msra.mxu0 %v1516
  %1563 = vmatprep.subr.bf16.mxu0 %v1520
  %1564 = vmatpush1.bf16.msra.mxu0 %v1519
  %1565 = vmatprep.subr.bf16.mxu0 %v1523
  %1566 = vmatpush1.bf16.msra.mxu0 %v1522
  %1567 = vmatprep.subr.bf16.mxu0 %v1526
  %1568 = vmatpush1.bf16.msra.mxu0 %v1525
  %1569 = vmatprep.subr.bf16.mxu0 %v1529
  %1570 = vmatpush1.bf16.msra.mxu0 %v1528
  %1571 = vmatprep.subr.bf16.mxu0 0
  %1572 = vmatpush1.bf16.msra.mxu0 0
  %1573 = vmatprep.subr.bf16.mxu0 0
  %1574 = vmatpush1.bf16.msra.mxu0 0
  %1575 = vmatprep.subr.bf16.mxu0 0
  %1576 = vmatpush1.bf16.msra.mxu0 0
  %1577 = vmatprep.subr.bf16.mxu0 0
  %1578 = vmatpush1.bf16.msra.mxu0 0
  %1579 = vmatprep.subr.bf16.mxu0 0
  %1580 = vmatpush1.bf16.msra.mxu0 0
  %1581 = vmatprep.subr.bf16.mxu0 0
  %1582 = vmatpush1.bf16.msra.mxu0 0
  %1583 = vmatprep.subr.bf16.mxu0 0
  %1584 = vmatpush1.bf16.msra.mxu0 0
  %1585 = vmatprep.subr.bf16.mxu0 0
  %1586 = vmatpush1.bf16.msra.mxu0 0
  %1587 = vmatprep.mubr.bf16.mxu0 0
  %1588 = vmatmul.mubr.bf16.gmra.mrb[0].mxu0 %v1394
  %v1589 = vpop.f32.mrb[0].mxu0
  %v1590 = vadd.f32 0.0, %v1589
  %v1591 = vpop.f32.mrb[0].mxu0
  %v1592 = vadd.f32 0.0, %v1591
  %v1593 = vpop.f32.mrb[0].mxu0
  %v1594 = vpop.f32.mrb[0].mxu0
  %1595 = vdwg.mxu0
  %1596 = vmatprep.subr.bf16.mxu0 0
  %1597 = vmatpush1.bf16.msra.mxu0 %v1509
  %1598 = vmatprep.subr.bf16.mxu0 0
  %1599 = vmatpush1.bf16.msra.mxu0 %v1512
  %1600 = vmatprep.subr.bf16.mxu0 0
  %1601 = vmatpush1.bf16.msra.mxu0 %v1515
  %1602 = vmatprep.subr.bf16.mxu0 0
  %1603 = vmatpush1.bf16.msra.mxu0 %v1518
  %1604 = vmatprep.subr.bf16.mxu0 0
  %1605 = vmatpush1.bf16.msra.mxu0 %v1521
  %1606 = vmatprep.subr.bf16.mxu0 0
  %1607 = vmatpush1.bf16.msra.mxu0 %v1524
  %1608 = vmatprep.subr.bf16.mxu0 0
  %1609 = vmatpush1.bf16.msra.mxu0 %v1527
  %1610 = vmatprep.subr.bf16.mxu0 0
  %1611 = vmatpush1.bf16.msra.mxu0 %v1530
  %1612 = vmatprep.subr.bf16.mxu0 0
  %1613 = vmatpush1.bf16.msra.mxu0 0
  %1614 = vmatprep.subr.bf16.mxu0 0
  %1615 = vmatpush1.bf16.msra.mxu0 0
  %1616 = vmatprep.subr.bf16.mxu0 0
  %1617 = vmatpush1.bf16.msra.mxu0 0
  %1618 = vmatprep.subr.bf16.mxu0 0
  %1619 = vmatpush1.bf16.msra.mxu0 0
  %1620 = vmatprep.subr.bf16.mxu0 0
  %1621 = vmatpush1.bf16.msra.mxu0 0
  %1622 = vmatprep.subr.bf16.mxu0 0
  %1623 = vmatpush1.bf16.msra.mxu0 0
  %1624 = vmatprep.subr.bf16.mxu0 0
  %1625 = vmatpush1.bf16.msra.mxu0 0
  %1626 = vmatprep.subr.bf16.mxu0 0
  %1627 = vmatpush1.bf16.msra.mxu0 0
  %1628 = vmatprep.mubr.bf16.mxu0 0
  %1629 = vmatmul.mubr.bf16.gmra.mrb[0].mxu0 %v1394
  %v1630 = vpop.f32.mrb[0].mxu0
  %v1631 = vadd.f32 0.0, %v1630
  %v1632 = vpop.f32.mrb[0].mxu0
  %v1633 = vpop.f32.mrb[0].mxu0
  %v1634 = vpop.f32.mrb[0].mxu0
  %1635 = vdwg.mxu0
  %s1636 = scalar_lea.vmem %s0, 40
  %v1637 = vld [vmem:[%s1636] sm:$0xff]
  %v1638 = vadd.f32 %v1637, %v1590
  %v1639 = vxor.u32 %v1638, 2147483648
  %v1640 = vmul.f32 %v1639, 1.442695
  %v1641 = vpow.pop %v1640
  %v1642 = vadd.f32 %v1641, 1.0
  %v1643 = vrcp.pop %v1642
  %v1644 = vmul.f32 1.0, %v1643
  %s1645 = scalar_lea.vmem %s1, 40
  %v1646 = vld [vmem:[%s1645] sm:$0xff]
  %v1647 = vadd.f32 %v1646, %v1592
  %v1648 = vxor.u32 %v1647, 2147483648
  %v1649 = vmul.f32 %v1648, 1.442695
  %v1650 = vpow.pop %v1649
  %v1651 = vadd.f32 %v1650, 1.0
  %v1652 = vrcp.pop %v1651
  %v1653 = vmul.f32 1.0, %v1652
  %s1654 = scalar_lea.vmem %s2, 40
  %v1655 = vld [vmem:[%s1654] sm:$0xff]
  %v1656 = vadd.f32 %v1631, %v35
  %v1657 = vmul.f32 %v1644, %v1656
  %v1658 = vadd.f32 %v1655, %v1657
  %v1659 = vtanh.pop %v1658
  %v1660 = vsub.f32 1.0, %v1653
  %v1661 = vmul.f32 %v1660, %v1659
  %v1662 = vmul.f32 %v1653, %v1391
  %v1663 = vadd.f32 %v1661, %v1662
  %s1664 = scalar_lea.vmem %s6, 40
  %1665 = vst [vmem:[%s1664] sm:$0xff] %v1663
  %v1666 = vpack.c.bf16 %v1663, %v1663
  %v1667 = vld [vmem:[%s4] sm:$0xff]
  %v1668 = vld [vmem:[%s4 + $0x8] sm:$0xf]
  %v1669 = vld [vmem:[%s4 + $0xc] sm:$0xff]
  %v1670 = vld [vmem:[%s4 + $0x14] sm:$0xf]
  %v1671 = vld [vmem:[%s4 + $0x18] sm:$0xff]
  %v1672 = vld [vmem:[%s4 + $0x20] sm:$0xf]
  %v1673 = vld [vmem:[%s4 + $0x24] sm:$0xff]
  %v1674 = vld [vmem:[%s4 + $0x2c] sm:$0xf]
  %v1675 = vld [vmem:[%s4 + $0x30] sm:$0xff]
  %v1676 = vld [vmem:[%s4 + $0x38] sm:$0xf]
  %v1677 = vld [vmem:[%s4 + $0x3c] sm:$0xff]
  %v1678 = vld [vmem:[%s4 + $0x44] sm:$0xf]
  %v1679 = vld [vmem:[%s4 + $0x48] sm:$0xff]
  %v1680 = vld [vmem:[%s4 + $0x50] sm:$0xf]
  %v1681 = vld [vmem:[%s4 + $0x54] sm:$0xff]
  %v1682 = vld [vmem:[%s4 + $0x5c] sm:$0xf]
  %v1683 = vld [vmem:[%s4 + $0x60] sm:$0xff]
  %v1684 = vld [vmem:[%s4 + $0x68] sm:$0xf]
  %v1685 = vld [vmem:[%s4 + $0x6c] sm:$0xff]
  %v1686 = vld [vmem:[%s4 + $0x74] sm:$0xf]
  %v1687 = vld [vmem:[%s4 + $0x78] sm:$0xff]
  %v1688 = vld [vmem:[%s4 + $0x80] sm:$0xf]
  %v1689 = vld [vmem:[%s4 + $0x84] sm:$0xff]
  %v1690 = vld [vmem:[%s4 + $0x8c] sm:$0xf]
  %v1691 = vld [vmem:[%s4 + $0x90] sm:$0xff]
  %v1692 = vld [vmem:[%s4 + $0x98] sm:$0xf]
  %v1693 = vld [vmem:[%s4 + $0x9c] sm:$0xff]
  %v1694 = vld [vmem:[%s4 + $0xa4] sm:$0xf]
  %v1695 = vld [vmem:[%s4 + $0xa8] sm:$0xff]
  %v1696 = vld [vmem:[%s4 + $0xb0] sm:$0xf]
  %v1697 = vld [vmem:[%s4 + $0xb4] sm:$0xff]
  %v1698 = vld [vmem:[%s4 + $0xbc] sm:$0xf]
  %v1731 = vunpack.c.l.b16 %v1667
  %v1732 = vunpack.c.h.b16 %v1667
  %v1733 = vunpack.c.l.b16 %v1668
  %v1734 = vunpack.c.l.b16 %v1669
  %v1735 = vunpack.c.h.b16 %v1669
  %v1736 = vunpack.c.l.b16 %v1670
  %v1737 = vunpack.c.l.b16 %v1671
  %v1738 = vunpack.c.h.b16 %v1671
  %v1739 = vunpack.c.l.b16 %v1672
  %v1740 = vunpack.c.l.b16 %v1673
  %v1741 = vunpack.c.h.b16 %v1673
  %v1742 = vunpack.c.l.b16 %v1674
  %v1743 = vunpack.c.l.b16 %v1675
  %v1744 = vunpack.c.h.b16 %v1675
  %v1745 = vunpack.c.l.b16 %v1676
  %v1746 = vunpack.c.l.b16 %v1677
  %v1747 = vunpack.c.h.b16 %v1677
  %v1748 = vunpack.c.l.b16 %v1678
  %v1749 = vunpack.c.l.b16 %v1679
  %v1750 = vunpack.c.h.b16 %v1679
  %v1751 = vunpack.c.l.b16 %v1680
  %v1752 = vunpack.c.l.b16 %v1681
  %v1753 = vunpack.c.h.b16 %v1681
  %v1754 = vunpack.c.l.b16 %v1682
  %v1755 = vunpack.c.l.b16 %v1683
  %v1756 = vunpack.c.h.b16 %v1683
  %v1757 = vunpack.c.l.b16 %v1684
  %v1758 = vunpack.c.l.b16 %v1685
  %v1759 = vunpack.c.h.b16 %v1685
  %v1760 = vunpack.c.l.b16 %v1686
  %v1761 = vunpack.c.l.b16 %v1687
  %v1762 = vunpack.c.h.b16 %v1687
  %v1763 = vunpack.c.l.b16 %v1688
  %v1764 = vunpack.c.l.b16 %v1689
  %v1765 = vunpack.c.h.b16 %v1689
  %v1766 = vunpack.c.l.b16 %v1690
  %v1767 = vunpack.c.l.b16 %v1691
  %v1768 = vunpack.c.h.b16 %v1691
  %v1769 = vunpack.c.l.b16 %v1692
  %v1770 = vunpack.c.l.b16 %v1693
  %v1771 = vunpack.c.h.b16 %v1693
  %v1772 = vunpack.c.l.b16 %v1694
  %v1773 = vunpack.c.l.b16 %v1695
  %v1774 = vunpack.c.h.b16 %v1695
  %v1775 = vunpack.c.l.b16 %v1696
  %v1776 = vunpack.c.l.b16 %v1697
  %v1777 = vunpack.c.h.b16 %v1697
  %v1778 = vunpack.c.l.b16 %v1698
  %v1779 = vpack.c.b16 %v1734, %v1731
  %v1780 = vpack.c.b16 %v1735, %v1732
  %v1781 = vpack.c.b16 %v1736, %v1733
  %v1782 = vpack.c.b16 %v1740, %v1737
  %v1783 = vpack.c.b16 %v1741, %v1738
  %v1784 = vpack.c.b16 %v1742, %v1739
  %v1785 = vpack.c.b16 %v1746, %v1743
  %v1786 = vpack.c.b16 %v1747, %v1744
  %v1787 = vpack.c.b16 %v1748, %v1745
  %v1788 = vpack.c.b16 %v1752, %v1749
  %v1789 = vpack.c.b16 %v1753, %v1750
  %v1790 = vpack.c.b16 %v1754, %v1751
  %v1791 = vpack.c.b16 %v1758, %v1755
  %v1792 = vpack.c.b16 %v1759, %v1756
  %v1793 = vpack.c.b16 %v1760, %v1757
  %v1794 = vpack.c.b16 %v1764, %v1761
  %v1795 = vpack.c.b16 %v1765, %v1762
  %v1796 = vpack.c.b16 %v1766, %v1763
  %v1797 = vpack.c.b16 %v1770, %v1767
  %v1798 = vpack.c.b16 %v1771, %v1768
  %v1799 = vpack.c.b16 %v1772, %v1769
  %v1800 = vpack.c.b16 %v1776, %v1773
  %v1801 = vpack.c.b16 %v1777, %v1774
  %v1802 = vpack.c.b16 %v1778, %v1775
  %1827 = vmatprep.subr.bf16.mxu0 %v1780
  %1828 = vmatpush1.bf16.msra.mxu0 %v1779
  %1829 = vmatprep.subr.bf16.mxu0 %v1783
  %1830 = vmatpush1.bf16.msra.mxu0 %v1782
  %1831 = vmatprep.subr.bf16.mxu0 %v1786
  %1832 = vmatpush1.bf16.msra.mxu0 %v1785
  %1833 = vmatprep.subr.bf16.mxu0 %v1789
  %1834 = vmatpush1.bf16.msra.mxu0 %v1788
  %1835 = vmatprep.subr.bf16.mxu0 %v1792
  %1836 = vmatpush1.bf16.msra.mxu0 %v1791
  %1837 = vmatprep.subr.bf16.mxu0 %v1795
  %1838 = vmatpush1.bf16.msra.mxu0 %v1794
  %1839 = vmatprep.subr.bf16.mxu0 %v1798
  %1840 = vmatpush1.bf16.msra.mxu0 %v1797
  %1841 = vmatprep.subr.bf16.mxu0 %v1801
  %1842 = vmatpush1.bf16.msra.mxu0 %v1800
  %1843 = vmatprep.subr.bf16.mxu0 0
  %1844 = vmatpush1.bf16.msra.mxu0 0
  %1845 = vmatprep.subr.bf16.mxu0 0
  %1846 = vmatpush1.bf16.msra.mxu0 0
  %1847 = vmatprep.subr.bf16.mxu0 0
  %1848 = vmatpush1.bf16.msra.mxu0 0
  %1849 = vmatprep.subr.bf16.mxu0 0
  %1850 = vmatpush1.bf16.msra.mxu0 0
  %1851 = vmatprep.subr.bf16.mxu0 0
  %1852 = vmatpush1.bf16.msra.mxu0 0
  %1853 = vmatprep.subr.bf16.mxu0 0
  %1854 = vmatpush1.bf16.msra.mxu0 0
  %1855 = vmatprep.subr.bf16.mxu0 0
  %1856 = vmatpush1.bf16.msra.mxu0 0
  %1857 = vmatprep.subr.bf16.mxu0 0
  %1858 = vmatpush1.bf16.msra.mxu0 0
  %1859 = vmatprep.mubr.bf16.mxu0 0
  %1860 = vmatmul.mubr.bf16.gmra.mrb[0].mxu0 %v1666
  %v1861 = vpop.f32.mrb[0].mxu0
  %v1862 = vadd.f32 0.0, %v1861
  %v1863 = vpop.f32.mrb[0].mxu0
  %v1864 = vadd.f32 0.0, %v1863
  %v1865 = vpop.f32.mrb[0].mxu0
  %v1866 = vpop.f32.mrb[0].mxu0
  %1867 = vdwg.mxu0
  %1868 = vmatprep.subr.bf16.mxu0 0
  %1869 = vmatpush1.bf16.msra.mxu0 %v1781
  %1870 = vmatprep.subr.bf16.mxu0 0
  %1871 = vmatpush1.bf16.msra.mxu0 %v1784
  %1872 = vmatprep.subr.bf16.mxu0 0
  %1873 = vmatpush1.bf16.msra.mxu0 %v1787
  %1874 = vmatprep.subr.bf16.mxu0 0
  %1875 = vmatpush1.bf16.msra.mxu0 %v1790
  %1876 = vmatprep.subr.bf16.mxu0 0
  %1877 = vmatpush1.bf16.msra.mxu0 %v1793
  %1878 = vmatprep.subr.bf16.mxu0 0
  %1879 = vmatpush1.bf16.msra.mxu0 %v1796
  %1880 = vmatprep.subr.bf16.mxu0 0
  %1881 = vmatpush1.bf16.msra.mxu0 %v1799
  %1882 = vmatprep.subr.bf16.mxu0 0
  %1883 = vmatpush1.bf16.msra.mxu0 %v1802
  %1884 = vmatprep.subr.bf16.mxu0 0
  %1885 = vmatpush1.bf16.msra.mxu0 0
  %1886 = vmatprep.subr.bf16.mxu0 0
  %1887 = vmatpush1.bf16.msra.mxu0 0
  %1888 = vmatprep.subr.bf16.mxu0 0
  %1889 = vmatpush1.bf16.msra.mxu0 0
  %1890 = vmatprep.subr.bf16.mxu0 0
  %1891 = vmatpush1.bf16.msra.mxu0 0
  %1892 = vmatprep.subr.bf16.mxu0 0
  %1893 = vmatpush1.bf16.msra.mxu0 0
  %1894 = vmatprep.subr.bf16.mxu0 0
  %1895 = vmatpush1.bf16.msra.mxu0 0
  %1896 = vmatprep.subr.bf16.mxu0 0
  %1897 = vmatpush1.bf16.msra.mxu0 0
  %1898 = vmatprep.subr.bf16.mxu0 0
  %1899 = vmatpush1.bf16.msra.mxu0 0
  %1900 = vmatprep.mubr.bf16.mxu0 0
  %1901 = vmatmul.mubr.bf16.gmra.mrb[0].mxu0 %v1666
  %v1902 = vpop.f32.mrb[0].mxu0
  %v1903 = vadd.f32 0.0, %v1902
  %v1904 = vpop.f32.mrb[0].mxu0
  %v1905 = vpop.f32.mrb[0].mxu0
  %v1906 = vpop.f32.mrb[0].mxu0
  %1907 = vdwg.mxu0
  %s1908 = scalar_lea.vmem %s0, 48
  %v1909 = vld [vmem:[%s1908] sm:$0xff]
  %v1910 = vadd.f32 %v1909, %v1862
  %v1911 = vxor.u32 %v1910, 2147483648
  %v1912 = vmul.f32 %v1911, 1.442695
  %v1913 = vpow.pop %v1912
  %v1914 = vadd.f32 %v1913, 1.0
  %v1915 = vrcp.pop %v1914
  %v1916 = vmul.f32 1.0, %v1915
  %s1917 = scalar_lea.vmem %s1, 48
  %v1918 = vld [vmem:[%s1917] sm:$0xff]
  %v1919 = vadd.f32 %v1918, %v1864
  %v1920 = vxor.u32 %v1919, 2147483648
  %v1921 = vmul.f32 %v1920, 1.442695
  %v1922 = vpow.pop %v1921
  %v1923 = vadd.f32 %v1922, 1.0
  %v1924 = vrcp.pop %v1923
  %v1925 = vmul.f32 1.0, %v1924
  %s1926 = scalar_lea.vmem %s2, 48
  %v1927 = vld [vmem:[%s1926] sm:$0xff]
  %v1928 = vadd.f32 %v1903, %v35
  %v1929 = vmul.f32 %v1916, %v1928
  %v1930 = vadd.f32 %v1927, %v1929
  %v1931 = vtanh.pop %v1930
  %v1932 = vsub.f32 1.0, %v1925
  %v1933 = vmul.f32 %v1932, %v1931
  %v1934 = vmul.f32 %v1925, %v1663
  %v1935 = vadd.f32 %v1933, %v1934
  %s1936 = scalar_lea.vmem %s6, 48
  %1937 = vst [vmem:[%s1936] sm:$0xff] %v1935
  %v1938 = vpack.c.bf16 %v1935, %v1935
  %v1939 = vld [vmem:[%s4] sm:$0xff]
  %v1940 = vld [vmem:[%s4 + $0x8] sm:$0xf]
  %v1941 = vld [vmem:[%s4 + $0xc] sm:$0xff]
  %v1942 = vld [vmem:[%s4 + $0x14] sm:$0xf]
  %v1943 = vld [vmem:[%s4 + $0x18] sm:$0xff]
  %v1944 = vld [vmem:[%s4 + $0x20] sm:$0xf]
  %v1945 = vld [vmem:[%s4 + $0x24] sm:$0xff]
  %v1946 = vld [vmem:[%s4 + $0x2c] sm:$0xf]
  %v1947 = vld [vmem:[%s4 + $0x30] sm:$0xff]
  %v1948 = vld [vmem:[%s4 + $0x38] sm:$0xf]
  %v1949 = vld [vmem:[%s4 + $0x3c] sm:$0xff]
  %v1950 = vld [vmem:[%s4 + $0x44] sm:$0xf]
  %v1951 = vld [vmem:[%s4 + $0x48] sm:$0xff]
  %v1952 = vld [vmem:[%s4 + $0x50] sm:$0xf]
  %v1953 = vld [vmem:[%s4 + $0x54] sm:$0xff]
  %v1954 = vld [vmem:[%s4 + $0x5c] sm:$0xf]
  %v1955 = vld [vmem:[%s4 + $0x60] sm:$0xff]
  %v1956 = vld [vmem:[%s4 + $0x68] sm:$0xf]
  %v1957 = vld [vmem:[%s4 + $0x6c] sm:$0xff]
  %v1958 = vld [vmem:[%s4 + $0x74] sm:$0xf]
  %v1959 = vld [vmem:[%s4 + $0x78] sm:$0xff]
  %v1960 = vld [vmem:[%s4 + $0x80] sm:$0xf]
  %v1961 = vld [vmem:[%s4 + $0x84] sm:$0xff]
  %v1962 = vld [vmem:[%s4 + $0x8c] sm:$0xf]
  %v1963 = vld [vmem:[%s4 + $0x90] sm:$0xff]
  %v1964 = vld [vmem:[%s4 + $0x98] sm:$0xf]
  %v1965 = vld [vmem:[%s4 + $0x9c] sm:$0xff]
  %v1966 = vld [vmem:[%s4 + $0xa4] sm:$0xf]
  %v1967 = vld [vmem:[%s4 + $0xa8] sm:$0xff]
  %v1968 = vld [vmem:[%s4 + $0xb0] sm:$0xf]
  %v1969 = vld [vmem:[%s4 + $0xb4] sm:$0xff]
  %v1970 = vld [vmem:[%s4 + $0xbc] sm:$0xf]
  %v2003 = vunpack.c.l.b16 %v1939
  %v2004 = vunpack.c.h.b16 %v1939
  %v2005 = vunpack.c.l.b16 %v1940
  %v2006 = vunpack.c.l.b16 %v1941
  %v2007 = vunpack.c.h.b16 %v1941
  %v2008 = vunpack.c.l.b16 %v1942
  %v2009 = vunpack.c.l.b16 %v1943
  %v2010 = vunpack.c.h.b16 %v1943
  %v2011 = vunpack.c.l.b16 %v1944
  %v2012 = vunpack.c.l.b16 %v1945
  %v2013 = vunpack.c.h.b16 %v1945
  %v2014 = vunpack.c.l.b16 %v1946
  %v2015 = vunpack.c.l.b16 %v1947
  %v2016 = vunpack.c.h.b16 %v1947
  %v2017 = vunpack.c.l.b16 %v1948
  %v2018 = vunpack.c.l.b16 %v1949
  %v2019 = vunpack.c.h.b16 %v1949
  %v2020 = vunpack.c.l.b16 %v1950
  %v2021 = vunpack.c.l.b16 %v1951
  %v2022 = vunpack.c.h.b16 %v1951
  %v2023 = vunpack.c.l.b16 %v1952
  %v2024 = vunpack.c.l.b16 %v1953
  %v2025 = vunpack.c.h.b16 %v1953
  %v2026 = vunpack.c.l.b16 %v1954
  %v2027 = vunpack.c.l.b16 %v1955
  %v2028 = vunpack.c.h.b16 %v1955
  %v2029 = vunpack.c.l.b16 %v1956
  %v2030 = vunpack.c.l.b16 %v1957
  %v2031 = vunpack.c.h.b16 %v1957
  %v2032 = vunpack.c.l.b16 %v1958
  %v2033 = vunpack.c.l.b16 %v1959
  %v2034 = vunpack.c.h.b16 %v1959
  %v2035 = vunpack.c.l.b16 %v1960
  %v2036 = vunpack.c.l.b16 %v1961
  %v2037 = vunpack.c.h.b16 %v1961
  %v2038 = vunpack.c.l.b16 %v1962
  %v2039 = vunpack.c.l.b16 %v1963
  %v2040 = vunpack.c.h.b16 %v1963
  %v2041 = vunpack.c.l.b16 %v1964
  %v2042 = vunpack.c.l.b16 %v1965
  %v2043 = vunpack.c.h.b16 %v1965
  %v2044 = vunpack.c.l.b16 %v1966
  %v2045 = vunpack.c.l.b16 %v1967
  %v2046 = vunpack.c.h.b16 %v1967
  %v2047 = vunpack.c.l.b16 %v1968
  %v2048 = vunpack.c.l.b16 %v1969
  %v2049 = vunpack.c.h.b16 %v1969
  %v2050 = vunpack.c.l.b16 %v1970
  %v2051 = vpack.c.b16 %v2006, %v2003
  %v2052 = vpack.c.b16 %v2007, %v2004
  %v2053 = vpack.c.b16 %v2008, %v2005
  %v2054 = vpack.c.b16 %v2012, %v2009
  %v2055 = vpack.c.b16 %v2013, %v2010
  %v2056 = vpack.c.b16 %v2014, %v2011
  %v2057 = vpack.c.b16 %v2018, %v2015
  %v2058 = vpack.c.b16 %v2019, %v2016
  %v2059 = vpack.c.b16 %v2020, %v2017
  %v2060 = vpack.c.b16 %v2024, %v2021
  %v2061 = vpack.c.b16 %v2025, %v2022
  %v2062 = vpack.c.b16 %v2026, %v2023
  %v2063 = vpack.c.b16 %v2030, %v2027
  %v2064 = vpack.c.b16 %v2031, %v2028
  %v2065 = vpack.c.b16 %v2032, %v2029
  %v2066 = vpack.c.b16 %v2036, %v2033
  %v2067 = vpack.c.b16 %v2037, %v2034
  %v2068 = vpack.c.b16 %v2038, %v2035
  %v2069 = vpack.c.b16 %v2042, %v2039
  %v2070 = vpack.c.b16 %v2043, %v2040
  %v2071 = vpack.c.b16 %v2044, %v2041
  %v2072 = vpack.c.b16 %v2048, %v2045
  %v2073 = vpack.c.b16 %v2049, %v2046
  %v2074 = vpack.c.b16 %v2050, %v2047
  %2099 = vmatprep.subr.bf16.mxu0 %v2052
  %2100 = vmatpush1.bf16.msra.mxu0 %v2051
  %2101 = vmatprep.subr.bf16.mxu0 %v2055
  %2102 = vmatpush1.bf16.msra.mxu0 %v2054
  %2103 = vmatprep.subr.bf16.mxu0 %v2058
  %2104 = vmatpush1.bf16.msra.mxu0 %v2057
  %2105 = vmatprep.subr.bf16.mxu0 %v2061
  %2106 = vmatpush1.bf16.msra.mxu0 %v2060
  %2107 = vmatprep.subr.bf16.mxu0 %v2064
  %2108 = vmatpush1.bf16.msra.mxu0 %v2063
  %2109 = vmatprep.subr.bf16.mxu0 %v2067
  %2110 = vmatpush1.bf16.msra.mxu0 %v2066
  %2111 = vmatprep.subr.bf16.mxu0 %v2070
  %2112 = vmatpush1.bf16.msra.mxu0 %v2069
  %2113 = vmatprep.subr.bf16.mxu0 %v2073
  %2114 = vmatpush1.bf16.msra.mxu0 %v2072
  %2115 = vmatprep.subr.bf16.mxu0 0
  %2116 = vmatpush1.bf16.msra.mxu0 0
  %2117 = vmatprep.subr.bf16.mxu0 0
  %2118 = vmatpush1.bf16.msra.mxu0 0
  %2119 = vmatprep.subr.bf16.mxu0 0
  %2120 = vmatpush1.bf16.msra.mxu0 0
  %2121 = vmatprep.subr.bf16.mxu0 0
  %2122 = vmatpush1.bf16.msra.mxu0 0
  %2123 = vmatprep.subr.bf16.mxu0 0
  %2124 = vmatpush1.bf16.msra.mxu0 0
  %2125 = vmatprep.subr.bf16.mxu0 0
  %2126 = vmatpush1.bf16.msra.mxu0 0
  %2127 = vmatprep.subr.bf16.mxu0 0
  %2128 = vmatpush1.bf16.msra.mxu0 0
  %2129 = vmatprep.subr.bf16.mxu0 0
  %2130 = vmatpush1.bf16.msra.mxu0 0
  %2131 = vmatprep.mubr.bf16.mxu0 0
  %2132 = vmatmul.mubr.bf16.gmra.mrb[0].mxu0 %v1938
  %v2133 = vpop.f32.mrb[0].mxu0
  %v2134 = vadd.f32 0.0, %v2133
  %v2135 = vpop.f32.mrb[0].mxu0
  %v2136 = vadd.f32 0.0, %v2135
  %v2137 = vpop.f32.mrb[0].mxu0
  %v2138 = vpop.f32.mrb[0].mxu0
  %2139 = vdwg.mxu0
  %2140 = vmatprep.subr.bf16.mxu0 0
  %2141 = vmatpush1.bf16.msra.mxu0 %v2053
  %2142 = vmatprep.subr.bf16.mxu0 0
  %2143 = vmatpush1.bf16.msra.mxu0 %v2056
  %2144 = vmatprep.subr.bf16.mxu0 0
  %2145 = vmatpush1.bf16.msra.mxu0 %v2059
  %2146 = vmatprep.subr.bf16.mxu0 0
  %2147 = vmatpush1.bf16.msra.mxu0 %v2062
  %2148 = vmatprep.subr.bf16.mxu0 0
  %2149 = vmatpush1.bf16.msra.mxu0 %v2065
  %2150 = vmatprep.subr.bf16.mxu0 0
  %2151 = vmatpush1.bf16.msra.mxu0 %v2068
  %2152 = vmatprep.subr.bf16.mxu0 0
  %2153 = vmatpush1.bf16.msra.mxu0 %v2071
  %2154 = vmatprep.subr.bf16.mxu0 0
  %2155 = vmatpush1.bf16.msra.mxu0 %v2074
  %2156 = vmatprep.subr.bf16.mxu0 0
  %2157 = vmatpush1.bf16.msra.mxu0 0
  %2158 = vmatprep.subr.bf16.mxu0 0
  %2159 = vmatpush1.bf16.msra.mxu0 0
  %2160 = vmatprep.subr.bf16.mxu0 0
  %2161 = vmatpush1.bf16.msra.mxu0 0
  %2162 = vmatprep.subr.bf16.mxu0 0
  %2163 = vmatpush1.bf16.msra.mxu0 0
  %2164 = vmatprep.subr.bf16.mxu0 0
  %2165 = vmatpush1.bf16.msra.mxu0 0
  %2166 = vmatprep.subr.bf16.mxu0 0
  %2167 = vmatpush1.bf16.msra.mxu0 0
  %2168 = vmatprep.subr.bf16.mxu0 0
  %2169 = vmatpush1.bf16.msra.mxu0 0
  %2170 = vmatprep.subr.bf16.mxu0 0
  %2171 = vmatpush1.bf16.msra.mxu0 0
  %2172 = vmatprep.mubr.bf16.mxu0 0
  %2173 = vmatmul.mubr.bf16.gmra.mrb[0].mxu0 %v1938
  %v2174 = vpop.f32.mrb[0].mxu0
  %v2175 = vadd.f32 0.0, %v2174
  %v2176 = vpop.f32.mrb[0].mxu0
  %v2177 = vpop.f32.mrb[0].mxu0
  %v2178 = vpop.f32.mrb[0].mxu0
  %2179 = vdwg.mxu0
  %s2180 = scalar_lea.vmem %s0, 56
  %v2181 = vld [vmem:[%s2180] sm:$0xff]
  %v2182 = vadd.f32 %v2181, %v2134
  %v2183 = vxor.u32 %v2182, 2147483648
  %v2184 = vmul.f32 %v2183, 1.442695
  %v2185 = vpow.pop %v2184
  %v2186 = vadd.f32 %v2185, 1.0
  %v2187 = vrcp.pop %v2186
  %v2188 = vmul.f32 1.0, %v2187
  %s2189 = scalar_lea.vmem %s1, 56
  %v2190 = vld [vmem:[%s2189] sm:$0xff]
  %v2191 = vadd.f32 %v2190, %v2136
  %v2192 = vxor.u32 %v2191, 2147483648
  %v2193 = vmul.f32 %v2192, 1.442695
  %v2194 = vpow.pop %v2193
  %v2195 = vadd.f32 %v2194, 1.0
  %v2196 = vrcp.pop %v2195
  %v2197 = vmul.f32 1.0, %v2196
  %s2198 = scalar_lea.vmem %s2, 56
  %v2199 = vld [vmem:[%s2198] sm:$0xff]
  %v2200 = vadd.f32 %v2175, %v35
  %v2201 = vmul.f32 %v2188, %v2200
  %v2202 = vadd.f32 %v2199, %v2201
  %v2203 = vtanh.pop %v2202
  %v2204 = vsub.f32 1.0, %v2197
  %v2205 = vmul.f32 %v2204, %v2203
  %v2206 = vmul.f32 %v2197, %v1935
  %v2207 = vadd.f32 %v2205, %v2206
  %s2208 = scalar_lea.vmem %s6, 56
  %2209 = vst [vmem:[%s2208] sm:$0xff] %v2207
  %2210 = vst [vmem:[#allocation2] sm:$0xff] %v2207
  // Predicated region
  $region30: #{evid_gru_forward.4} parent=0 // pred_check
    _
  $region31: #{evid_gru_forward.4} parent=0 // pred_check_branch
    %2212 = sbr.rel (0) target = $region33
  $region32: #{evid_gru_forward.4} parent=0 // pred_region
    _
  $region33: #{evid_gru_forward.4} parent=0 // pred_fallthru
    _
  // Predicated region
  $region34: #{evid_gru_forward.4} parent=0 // pred_check
    _
  $region35: #{evid_gru_forward.4} parent=0 // pred_check_branch
    %2214 = sbr.rel (0) target = $region37
  $region36: #{evid_gru_forward.4} parent=0 // pred_region
    _
  $region37: #{evid_gru_forward.4} parent=0 // pred_fallthru
    _

</llo_original>
